<compile_context>
chip_gen: v7x
topology: tpu7x:2x2x1
jax: 0.10.0
libtpu: 0.0.40
codegen_flags: <defaults>
</compile_context>

<pallas_src>
import functools
import math

import jax
import jax.numpy as jnp
from jax import lax
from jax.experimental import pallas as pl
from jax.experimental.pallas import tpu as pltpu

EPS = 1e-5  # PyTorch LayerNorm default eps

# Row indices in the packed per-layer (depth, 11, D) vector table.
_NQ_G, _NQ_B, _NKV_G, _NKV_B, _BQ, _BK, _BV, _BO, _LN_G, _LN_B, _B2 = range(11)


def _layernorm(x, g, b):
    mu = jnp.mean(x, axis=-1, keepdims=True)
    xc = x - mu
    var = jnp.mean(xc * xc, axis=-1, keepdims=True)
    return xc * lax.rsqrt(var + EPS) * g + b


def _erf(x):
    # Abramowitz & Stegun 7.1.26 (max abs error ~1.5e-7); exp/abs/poly + EUP reciprocal.
    a1, a2, a3, a4, a5 = 0.254829592, -0.284496736, 1.421413741, -1.453152027, 1.061405429
    p = 0.3275911
    ax = jnp.abs(x)
    t = pl.reciprocal(1.0 + p * ax, approx=True)  # EUP slot instead of multi-op VPU divide
    poly = ((((a5 * t + a4) * t + a3) * t + a2) * t + a1) * t
    y = 1.0 - poly * jnp.exp(-ax * ax)
    return jnp.where(x >= 0, y, -y)


def _gelu_exact(x):
    return 0.5 * x * (1.0 + _erf(x * 0.7071067811865476))


def _catransformer_kernel(q_ref, kv_ref, wqkvo, vecs, w1t, w2t, b1, fnorm, o_ref,
                          *, heads, depth, nb, lq, lkv):
    """Full CATransformer forward for `nb` batch elements (all layers + final LN).

    q_ref:  (nb*lq,  D) f32   -- residual stream rows, stays in VMEM/vregs across layers
    kv_ref: (nb*lkv, D) f32
    wqkvo:  (depth, 4, D, D) bf16   [Wq^T*scale, Wk^T, Wv^T, Wo^T]
    vecs:   (depth, 11, D)   f32    per-layer LN params + biases (see _NQ_G.. indices)
    w1t:    (depth, D, mlp)  bf16 ; w2t: (depth, mlp, D) bf16 ; b1: (depth, 1, mlp) f32
    fnorm:  (2, D) f32              final LayerNorm gamma/beta
    """
    x = q_ref[...]
    kv = kv_ref[...]
    D = x.shape[-1]
    Dh = D // heads

    # TODO(synk): for depth >> 2, switch to lax.fori_loop with dynamic ref[l] indexing
    # (the packed weights already support it) to bound live ranges / compile time.
    for l in range(depth):
        vl = vecs[l]  # (11, D) f32 vector table for this layer

        # --- CrossAttentionLayer ---
        qn = _layernorm(x, vl[_NQ_G:_NQ_G + 1], vl[_NQ_B:_NQ_B + 1]).astype(jnp.bfloat16)
        kvn = _layernorm(kv, vl[_NKV_G:_NKV_G + 1], vl[_NKV_B:_NKV_B + 1]).astype(jnp.bfloat16)

        # Projections: weights pre-transposed; attention scale folded into Wq/bq.
        Q = (jnp.dot(qn, wqkvo[l, 0], preferred_element_type=jnp.float32)
             + vl[_BQ:_BQ + 1]).astype(jnp.bfloat16)
        K = (jnp.dot(kvn, wqkvo[l, 1], preferred_element_type=jnp.float32)
             + vl[_BK:_BK + 1]).astype(jnp.bfloat16)
        V = (jnp.dot(kvn, wqkvo[l, 2], preferred_element_type=jnp.float32)
             + vl[_BV:_BV + 1]).astype(jnp.bfloat16)

        # Attention core: tiny per-batch / per-head loops; head outputs are lane-
        # concatenated and projected by ONE K=D matmul against Wo^T (no per-head K=Dh
        # matmuls, no zeros init, no serial add chain).
        per_batch = []
        for b in range(nb):
            Qb = Q[b * lq:(b + 1) * lq]
            Kb = K[b * lkv:(b + 1) * lkv]
            Vb = V[b * lkv:(b + 1) * lkv]
            head_outs = []
            for h in range(heads):
                Qh = Qb[:, h * Dh:(h + 1) * Dh]
                Kh = Kb[:, h * Dh:(h + 1) * Dh]
                Vh = Vb[:, h * Dh:(h + 1) * Dh]
                s = lax.dot_general(Qh, Kh, (((1,), (1,)), ((), ())),
                                    preferred_element_type=jnp.float32)      # (lq, lkv)
                s = s - jnp.max(s, axis=-1, keepdims=True)
                p = jnp.exp(s)
                p = p * pl.reciprocal(jnp.sum(p, axis=-1, keepdims=True), approx=True)
                oh = jnp.dot(p.astype(jnp.bfloat16), Vh,
                             preferred_element_type=jnp.float32)             # (lq, Dh)
                head_outs.append(oh.astype(jnp.bfloat16))
            per_batch.append(jnp.concatenate(head_outs, axis=-1))            # (lq, D)
        attn_in = per_batch[0] if nb == 1 else jnp.concatenate(per_batch, axis=0)
        attn = jnp.dot(attn_in, wqkvo[l, 3], preferred_element_type=jnp.float32)  # (rows, D)

        x = x + attn + vl[_BO:_BO + 1]  # residual 1 (out_proj bias added once)

        # --- FeedForward ---
        xn = _layernorm(x, vl[_LN_G:_LN_G + 1], vl[_LN_B:_LN_B + 1]).astype(jnp.bfloat16)
        h1 = jnp.dot(xn, w1t[l], preferred_element_type=jnp.float32) + b1[l]
        h1 = _gelu_exact(h1).astype(jnp.bfloat16)
        h2 = jnp.dot(h1, w2t[l], preferred_element_type=jnp.float32) + vl[_B2:_B2 + 1]
        x = x + h2                      # residual 2

    # --- fused final LayerNorm ---
    # TODO(synk): for large Lq, emit a lane-dense (rows*D//128, 128) output slab and
    # reshape in the wrapper to avoid masked 32-lane stores.
    o_ref[...] = _layernorm(x, fnorm[0:1], fnorm[1:2])


def _full_spec(a):
    # Constant-index, full-array weight spec (fetched once).
    # TODO(synk): mark single-buffered (pipeline_mode=pl.Buffered(1)) once weight sizes
    # matter for VMEM; irrelevant at D=32.
    n = a.ndim
    return pl.BlockSpec(a.shape, lambda i, _n=n: (0,) * _n)


def _default_num_programs(batch):
    # v5e / v6e have a single TensorCore: fold the whole batch into one program
    # (M = B*Lq rows through every matmul).  Other chips (v7x: 2 TCs) keep one batch
    # element per "parallel" grid step so both cores get work.
    try:
        kind = jax.devices()[0].device_kind.lower()
    except Exception:
        kind = ""
    single_tc = any(t in kind for t in ("v5 lite", "v5e", "v6 lite", "v6e"))
    return 1 if single_tc else batch


def ca_transformer_forward(query, key_value, params, heads, num_programs=None):
    B, Lq, D = query.shape
    Lkv = key_value.shape[1]
    depth = len(params["layers"])
    Dh = D // heads
    scale = 1.0 / math.sqrt(Dh)

    def stack(name):
        return jnp.stack([lp[name] for lp in params["layers"]], axis=0)

    in_w = stack("in_w")      # (depth, 3D, D)
    in_b = stack("in_b")      # (depth, 1, 3D)
    out_w = stack("out_w")    # (depth, D, D)

    # Host-side prep: split QKV, pre-transpose (x @ W, no in-kernel .T), fold the
    # 1/sqrt(Dh) attention scale into Wq/bq before the bf16 cast.
    wq_t = jnp.transpose(in_w[:, 0:D, :], (0, 2, 1)) * scale
    wk_t = jnp.transpose(in_w[:, D:2 * D, :], (0, 2, 1))
    wv_t = jnp.transpose(in_w[:, 2 * D:3 * D, :], (0, 2, 1))
    wo_t = jnp.transpose(out_w, (0, 2, 1))

    # Packed weight operand classes: a handful of big DMAs instead of 22 tiny ones.
    wqkvo = jnp.stack([wq_t, wk_t, wv_t, wo_t], axis=1).astype(jnp.bfloat16)  # (depth,4,D,D)
    w1t = jnp.transpose(stack("w1"), (0, 2, 1)).astype(jnp.bfloat16)          # (depth,D,mlp)
    w2t = jnp.transpose(stack("w2"), (0, 2, 1)).astype(jnp.bfloat16)          # (depth,mlp,D)
    b1 = stack("b1")                                                          # (depth,1,mlp) f32

    bq = in_b[:, :, 0:D] * scale
    bk = in_b[:, :, D:2 * D]
    bv = in_b[:, :, 2 * D:3 * D]
    vecs = jnp.concatenate([stack("nq_g"), stack("nq_b"),
                            stack("nkv_g"), stack("nkv_b"),
                            bq, bk, bv, stack("out_b"),
                            stack("ln_g"), stack("ln_b"), stack("b2")],
                           axis=1)                                            # (depth,11,D) f32
    fnorm = jnp.concatenate([params["norm_g"], params["norm_b"]], axis=0)     # (2,D) f32

    if num_programs is None:
        num_programs = _default_num_programs(B)
    assert B % num_programs == 0
    nb = B // num_programs  # batch elements folded into M per grid step

    q_flat = query.reshape(B * Lq, D)
    kv_flat = key_value.reshape(B * Lkv, D)
    weights = [wqkvo, vecs, w1t, w2t, b1, fnorm]

    kernel = functools.partial(_catransformer_kernel, heads=heads, depth=depth,
                               nb=nb, lq=Lq, lkv=Lkv)

    out = pl.pallas_call(
        kernel,
        out_shape=jax.ShapeDtypeStruct((B * Lq, D), jnp.float32),
        grid=(num_programs,),
        in_specs=[pl.BlockSpec((nb * Lq, D), lambda i: (i, 0)),
                  pl.BlockSpec((nb * Lkv, D), lambda i: (i, 0))]
                 + [_full_spec(w) for w in weights],
        out_specs=pl.BlockSpec((nb * Lq, D), lambda i: (i, 0)),
        compiler_params=pltpu.CompilerParams(
            dimension_semantics=("parallel",),
            vmem_limit_bytes=32 * 1024 * 1024),
    )(q_flat, kv_flat, *weights)
    return out.reshape(B, Lq, D)


# ----------------------- parameter initialization (deterministic) -----------------------

def init_params(key, dim, depth, mlp_dim):
    def nrm(k, shape, scale):
        return (scale * jax.random.normal(k, shape)).astype(jnp.float32)

    layers = []
    for _ in range(depth):
        key, *ks = jax.random.split(key, 15)
        layers.append(dict(
            nq_g=1.0 + nrm(ks[0], (1, dim), 0.1),
            nq_b=nrm(ks[1], (1, dim), 0.1),
            nkv_g=1.0 + nrm(ks[2], (1, dim), 0.1),
            nkv_b=nrm(ks[3], (1, dim), 0.1),
            in_w=nrm(ks[4], (3 * dim, dim), 0.05),
            in_b=nrm(ks[5], (1, 3 * dim), 0.02),
            out_w=nrm(ks[6], (dim, dim), 0.05),
            out_b=nrm(ks[7], (1, dim), 0.02),
            ln_g=1.0 + nrm(ks[8], (1, dim), 0.1),
            ln_b=nrm(ks[9], (1, dim), 0.1),
            w1=nrm(ks[10], (mlp_dim, dim), 0.05),
            b1=nrm(ks[11], (1, mlp_dim), 0.02),
            w2=nrm(ks[12], (dim, mlp_dim), 0.05),
            b2=nrm(ks[13], (1, dim), 0.02),
        ))
    key, kg, kb = jax.random.split(key, 3)
    return dict(layers=layers,
                norm_g=1.0 + nrm(kg, (1, dim), 0.1),
                norm_b=nrm(kb, (1, dim), 0.1))


# ----------------------- pure-JAX reference (for verification) -----------------------

def reference_forward(query, key_value, params, heads):
    def ln(x, g, b):
        mu = x.mean(-1, keepdims=True)
        var = ((x - mu) ** 2).mean(-1, keepdims=True)
        return (x - mu) / jnp.sqrt(var + EPS) * g + b

    q = query
    B, Lq, D = q.shape
    Lkv = key_value.shape[1]
    Dh = D // heads
    for lp in params["layers"]:
        qn = ln(q, lp["nq_g"], lp["nq_b"])
        kvn = ln(key_value, lp["nkv_g"], lp["nkv_b"])
        Wq, Wk, Wv = jnp.split(lp["in_w"], 3, axis=0)
        bq, bk, bv = jnp.split(lp["in_b"][0], 3)
        Q = (qn @ Wq.T + bq).reshape(B, Lq, heads, Dh).transpose(0, 2, 1, 3)
        K = (kvn @ Wk.T + bk).reshape(B, Lkv, heads, Dh).transpose(0, 2, 1, 3)
        V = (kvn @ Wv.T + bv).reshape(B, Lkv, heads, Dh).transpose(0, 2, 1, 3)
        s = jnp.einsum('bhqd,bhkd->bhqk', Q, K) / jnp.sqrt(Dh)
        p = jax.nn.softmax(s, axis=-1)
        o = jnp.einsum('bhqk,bhkd->bhqd', p, V).transpose(0, 2, 1, 3).reshape(B, Lq, D)
        o = o @ lp["out_w"].T + lp["out_b"][0]
        q = o + q
        xn = ln(q, lp["ln_g"], lp["ln_b"])
        h1 = jax.nn.gelu(xn @ lp["w1"].T + lp["b1"][0], approximate=False)
        q = (h1 @ lp["w2"].T + lp["b2"][0]) + q
    return ln(q, params["norm_g"], params["norm_b"])


if __name__ == "__main__":
    B, Lq, Lkv = 2, 16, 8
    dim, depth, heads, dim_head, mlp_dim = 32, 2, 4, 8, 64  # dim_head unused by nn.MultiheadAttention

    key = jax.random.PRNGKey(0)
    kq, kkv, kp = jax.random.split(key, 3)
    query = jax.random.normal(kq, (B, Lq, dim), dtype=jnp.float32)
    key_value = jax.random.normal(kkv, (B, Lkv, dim), dtype=jnp.float32)
    params = init_params(kp, dim, depth, mlp_dim)

    out = ca_transformer_forward(query, key_value, params, heads)
    out = jax.block_until_ready(out)

    ref = reference_forward(query, key_value, params, heads)
    assert out.shape == (B, Lq, dim)
    assert bool(jnp.isfinite(out).all())
    # bf16 MXU inputs (f32 accumulation) + approx EUP reciprocals -> 5e-2 tolerance.
    assert bool(jnp.allclose(out, ref, atol=5e-2, rtol=5e-2)), "mismatch vs pure-JAX reference"

    print("KERNEL_OK")
</pallas_src>

<mosaic_0001>
module attributes {stable_mosaic.version = 11 : i64} {
  func.func @_catransformer_kernel(%arg0: i32, %arg1: memref<16x32xf32, #tpu.memory_space<vmem>>, %arg2: memref<8x32xf32, #tpu.memory_space<vmem>>, %arg3: memref<2x4x32x32xbf16, #tpu.memory_space<vmem>>, %arg4: memref<2x11x32xf32, #tpu.memory_space<vmem>>, %arg5: memref<2x32x64xbf16, #tpu.memory_space<vmem>>, %arg6: memref<2x64x32xbf16, #tpu.memory_space<vmem>>, %arg7: memref<2x1x64xf32, #tpu.memory_space<vmem>>, %arg8: memref<2x32xf32, #tpu.memory_space<vmem>>, %arg9: memref<16x32xf32, #tpu.memory_space<vmem>>) attributes {dimension_semantics = [#tpu.dimension_semantics<parallel>], iteration_bounds = array<i64: 2>, scalar_prefetch = 0 : i64, scratch_operands = 0 : i64, tpu.core_type = #tpu.core_type<tc>, window_params = [{transform_indices = @transform_0, window_bounds = array<i64: 16, 32>}, {transform_indices = @transform_1, window_bounds = array<i64: 8, 32>}, {pipeline_mode = #tpu.pipeline_mode<synchronous>, transform_indices = @transform_2, window_bounds = array<i64: 2, 4, 32, 32>}, {pipeline_mode = #tpu.pipeline_mode<synchronous>, transform_indices = @transform_3, window_bounds = array<i64: 2, 11, 32>}, {pipeline_mode = #tpu.pipeline_mode<synchronous>, transform_indices = @transform_4, window_bounds = array<i64: 2, 32, 64>}, {pipeline_mode = #tpu.pipeline_mode<synchronous>, transform_indices = @transform_5, window_bounds = array<i64: 2, 64, 32>}, {pipeline_mode = #tpu.pipeline_mode<synchronous>, transform_indices = @transform_6, window_bounds = array<i64: 2, 1, 64>}, {pipeline_mode = #tpu.pipeline_mode<synchronous>, transform_indices = @transform_7, window_bounds = array<i64: 2, 32>}, {transform_indices = @transform_8, window_bounds = array<i64: 16, 32>}]} {
    %c0 = arith.constant 0 : index
    %c0_0 = arith.constant 0 : index
    %0 = vector.load %arg1[%c0, %c0_0] : memref<16x32xf32, #tpu.memory_space<vmem>>, vector<16x32xf32>
    %c0_1 = arith.constant 0 : index
    %c0_2 = arith.constant 0 : index
    %1 = vector.load %arg2[%c0_1, %c0_2] : memref<8x32xf32, #tpu.memory_space<vmem>>, vector<8x32xf32>
    %c0_3 = arith.constant 0 : index
    %c0_4 = arith.constant 0 : index
    %c0_5 = arith.constant 0 : index
    %2 = vector.load %arg4[%c0_3, %c0_4, %c0_5] : memref<2x11x32xf32, #tpu.memory_space<vmem>>, vector<1x11x32xf32>
    %3 = vector.shape_cast %2 : vector<1x11x32xf32> to vector<11x32xf32>
    %4 = vector.extract_strided_slice %3 {offsets = [0, 0], sizes = [1, 32], strides = [1, 1]} : vector<11x32xf32> to vector<1x32xf32>
    %5 = vector.extract_strided_slice %3 {offsets = [1, 0], sizes = [1, 32], strides = [1, 1]} : vector<11x32xf32> to vector<1x32xf32>
    %cst = arith.constant dense<0.000000e+00> : vector<16xf32>
    %6 = vector.multi_reduction <add>, %0, %cst [1] : vector<16x32xf32> to vector<16xf32>
    %7 = vector.shape_cast %6 : vector<16xf32> to vector<16x1xf32>
    %cst_6 = arith.constant 3.200000e+01 : f32
    %8 = vector.broadcast %cst_6 : f32 to vector<16x1xf32>
    %9 = arith.divf %7, %8 : vector<16x1xf32>
    %10 = vector.broadcast %9 : vector<16x1xf32> to vector<16x32xf32>
    %11 = arith.subf %0, %10 : vector<16x32xf32>
    %12 = arith.mulf %11, %11 : vector<16x32xf32>
    %cst_7 = arith.constant dense<0.000000e+00> : vector<16xf32>
    %13 = vector.multi_reduction <add>, %12, %cst_7 [1] : vector<16x32xf32> to vector<16xf32>
    %14 = vector.shape_cast %13 : vector<16xf32> to vector<16x1xf32>
    %cst_8 = arith.constant 3.200000e+01 : f32
    %15 = vector.broadcast %cst_8 : f32 to vector<16x1xf32>
    %16 = arith.divf %14, %15 : vector<16x1xf32>
    %cst_9 = arith.constant 9.99999974E-6 : f32
    %17 = vector.broadcast %cst_9 : f32 to vector<16x1xf32>
    %18 = arith.addf %16, %17 : vector<16x1xf32>
    %19 = math.rsqrt %18 : vector<16x1xf32>
    %20 = vector.broadcast %19 : vector<16x1xf32> to vector<16x32xf32>
    %21 = arith.mulf %11, %20 : vector<16x32xf32>
    %22 = vector.broadcast %4 : vector<1x32xf32> to vector<16x32xf32>
    %23 = arith.mulf %21, %22 : vector<16x32xf32>
    %24 = vector.broadcast %5 : vector<1x32xf32> to vector<16x32xf32>
    %25 = arith.addf %23, %24 : vector<16x32xf32>
    %26 = arith.truncf %25 : vector<16x32xf32> to vector<16x32xbf16>
    %27 = vector.extract_strided_slice %3 {offsets = [2, 0], sizes = [1, 32], strides = [1, 1]} : vector<11x32xf32> to vector<1x32xf32>
    %28 = vector.extract_strided_slice %3 {offsets = [3, 0], sizes = [1, 32], strides = [1, 1]} : vector<11x32xf32> to vector<1x32xf32>
    %cst_10 = arith.constant dense<0.000000e+00> : vector<8xf32>
    %29 = vector.multi_reduction <add>, %1, %cst_10 [1] : vector<8x32xf32> to vector<8xf32>
    %30 = vector.shape_cast %29 : vector<8xf32> to vector<8x1xf32>
    %cst_11 = arith.constant 3.200000e+01 : f32
    %31 = vector.broadcast %cst_11 : f32 to vector<8x1xf32>
    %32 = arith.divf %30, %31 : vector<8x1xf32>
    %33 = vector.broadcast %32 : vector<8x1xf32> to vector<8x32xf32>
    %34 = arith.subf %1, %33 : vector<8x32xf32>
    %35 = arith.mulf %34, %34 : vector<8x32xf32>
    %cst_12 = arith.constant dense<0.000000e+00> : vector<8xf32>
    %36 = vector.multi_reduction <add>, %35, %cst_12 [1] : vector<8x32xf32> to vector<8xf32>
    %37 = vector.shape_cast %36 : vector<8xf32> to vector<8x1xf32>
    %cst_13 = arith.constant 3.200000e+01 : f32
    %38 = vector.broadcast %cst_13 : f32 to vector<8x1xf32>
    %39 = arith.divf %37, %38 : vector<8x1xf32>
    %cst_14 = arith.constant 9.99999974E-6 : f32
    %40 = vector.broadcast %cst_14 : f32 to vector<8x1xf32>
    %41 = arith.addf %39, %40 : vector<8x1xf32>
    %42 = math.rsqrt %41 : vector<8x1xf32>
    %43 = vector.broadcast %42 : vector<8x1xf32> to vector<8x32xf32>
    %44 = arith.mulf %34, %43 : vector<8x32xf32>
    %45 = vector.broadcast %27 : vector<1x32xf32> to vector<8x32xf32>
    %46 = arith.mulf %44, %45 : vector<8x32xf32>
    %47 = vector.broadcast %28 : vector<1x32xf32> to vector<8x32xf32>
    %48 = arith.addf %46, %47 : vector<8x32xf32>
    %49 = arith.truncf %48 : vector<8x32xf32> to vector<8x32xbf16>
    %c0_15 = arith.constant 0 : index
    %c0_16 = arith.constant 0 : index
    %c0_17 = arith.constant 0 : index
    %c0_18 = arith.constant 0 : index
    %50 = vector.load %arg3[%c0_15, %c0_16, %c0_17, %c0_18] : memref<2x4x32x32xbf16, #tpu.memory_space<vmem>>, vector<1x1x32x32xbf16>
    %51 = vector.shape_cast %50 : vector<1x1x32x32xbf16> to vector<32x32xbf16>
    %cst_19 = arith.constant dense<0.000000e+00> : vector<16x32xf32>
    %52 = tpu.matmul %26, %51, %cst_19 {dimension_numbers = #tpu.dot_dimension_numbers<[1], [0], [0], [1], [0, 0, 1, 1], [], []>} : vector<16x32xbf16>, vector<32x32xbf16>, vector<16x32xf32> -> vector<16x32xf32>
    %53 = vector.extract_strided_slice %3 {offsets = [4, 0], sizes = [1, 32], strides = [1, 1]} : vector<11x32xf32> to vector<1x32xf32>
    %54 = vector.broadcast %53 : vector<1x32xf32> to vector<16x32xf32>
    %55 = arith.addf %52, %54 : vector<16x32xf32>
    %56 = arith.truncf %55 : vector<16x32xf32> to vector<16x32xbf16>
    %c0_20 = arith.constant 0 : index
    %c1 = arith.constant 1 : index
    %c0_21 = arith.constant 0 : index
    %c0_22 = arith.constant 0 : index
    %57 = vector.load %arg3[%c0_20, %c1, %c0_21, %c0_22] : memref<2x4x32x32xbf16, #tpu.memory_space<vmem>>, vector<1x1x32x32xbf16>
    %58 = vector.shape_cast %57 : vector<1x1x32x32xbf16> to vector<32x32xbf16>
    %cst_23 = arith.constant dense<0.000000e+00> : vector<8x32xf32>
    %59 = tpu.matmul %49, %58, %cst_23 {dimension_numbers = #tpu.dot_dimension_numbers<[1], [0], [0], [1], [0, 0, 1, 1], [], []>} : vector<8x32xbf16>, vector<32x32xbf16>, vector<8x32xf32> -> vector<8x32xf32>
    %60 = vector.extract_strided_slice %3 {offsets = [5, 0], sizes = [1, 32], strides = [1, 1]} : vector<11x32xf32> to vector<1x32xf32>
    %61 = vector.broadcast %60 : vector<1x32xf32> to vector<8x32xf32>
    %62 = arith.addf %59, %61 : vector<8x32xf32>
    %63 = arith.truncf %62 : vector<8x32xf32> to vector<8x32xbf16>
    %c0_24 = arith.constant 0 : index
    %c2 = arith.constant 2 : index
    %c0_25 = arith.constant 0 : index
    %c0_26 = arith.constant 0 : index
    %64 = vector.load %arg3[%c0_24, %c2, %c0_25, %c0_26] : memref<2x4x32x32xbf16, #tpu.memory_space<vmem>>, vector<1x1x32x32xbf16>
    %65 = vector.shape_cast %64 : vector<1x1x32x32xbf16> to vector<32x32xbf16>
    %cst_27 = arith.constant dense<0.000000e+00> : vector<8x32xf32>
    %66 = tpu.matmul %49, %65, %cst_27 {dimension_numbers = #tpu.dot_dimension_numbers<[1], [0], [0], [1], [0, 0, 1, 1], [], []>} : vector<8x32xbf16>, vector<32x32xbf16>, vector<8x32xf32> -> vector<8x32xf32>
    %67 = vector.extract_strided_slice %3 {offsets = [6, 0], sizes = [1, 32], strides = [1, 1]} : vector<11x32xf32> to vector<1x32xf32>
    %68 = vector.broadcast %67 : vector<1x32xf32> to vector<8x32xf32>
    %69 = arith.addf %66, %68 : vector<8x32xf32>
    %70 = arith.truncf %69 : vector<8x32xf32> to vector<8x32xbf16>
    %71 = vector.extract_strided_slice %56 {offsets = [0, 0], sizes = [16, 8], strides = [1, 1]} : vector<16x32xbf16> to vector<16x8xbf16>
    %72 = vector.extract_strided_slice %63 {offsets = [0, 0], sizes = [8, 8], strides = [1, 1]} : vector<8x32xbf16> to vector<8x8xbf16>
    %73 = vector.extract_strided_slice %70 {offsets = [0, 0], sizes = [8, 8], strides = [1, 1]} : vector<8x32xbf16> to vector<8x8xbf16>
    %cst_28 = arith.constant dense<0.000000e+00> : vector<16x8xf32>
    %74 = tpu.matmul %71, %72, %cst_28 {dimension_numbers = #tpu.dot_dimension_numbers<[1], [1], [0], [0], [0, 0, 1, 0], [], []>} : vector<16x8xbf16>, vector<8x8xbf16>, vector<16x8xf32> -> vector<16x8xf32>
    %cst_29 = arith.constant dense<0xFF800000> : vector<16xf32>
    %75 = vector.multi_reduction <maximumf>, %74, %cst_29 [1] : vector<16x8xf32> to vector<16xf32>
    %76 = vector.shape_cast %75 : vector<16xf32> to vector<16x1xf32>
    %77 = vector.broadcast %76 : vector<16x1xf32> to vector<16x8xf32>
    %78 = arith.subf %74, %77 : vector<16x8xf32>
    %79 = math.exp %78 : vector<16x8xf32>
    %cst_30 = arith.constant dense<0.000000e+00> : vector<16xf32>
    %80 = vector.multi_reduction <add>, %79, %cst_30 [1] : vector<16x8xf32> to vector<16xf32>
    %81 = vector.shape_cast %80 : vector<16xf32> to vector<16x1xf32>
    %82 = tpu.reciprocal %81 {approx = true} : vector<16x1xf32> -> vector<16x1xf32>
    %83 = vector.broadcast %82 : vector<16x1xf32> to vector<16x8xf32>
    %84 = arith.mulf %79, %83 : vector<16x8xf32>
    %85 = arith.truncf %84 : vector<16x8xf32> to vector<16x8xbf16>
    %cst_31 = arith.constant dense<0.000000e+00> : vector<16x8xf32>
    %86 = tpu.matmul %85, %73, %cst_31 {dimension_numbers = #tpu.dot_dimension_numbers<[1], [0], [0], [1], [0, 0, 1, 1], [], []>} : vector<16x8xbf16>, vector<8x8xbf16>, vector<16x8xf32> -> vector<16x8xf32>
    %87 = arith.truncf %86 : vector<16x8xf32> to vector<16x8xbf16>
    %88 = vector.extract_strided_slice %56 {offsets = [0, 8], sizes = [16, 8], strides = [1, 1]} : vector<16x32xbf16> to vector<16x8xbf16>
    %89 = vector.extract_strided_slice %63 {offsets = [0, 8], sizes = [8, 8], strides = [1, 1]} : vector<8x32xbf16> to vector<8x8xbf16>
    %90 = vector.extract_strided_slice %70 {offsets = [0, 8], sizes = [8, 8], strides = [1, 1]} : vector<8x32xbf16> to vector<8x8xbf16>
    %cst_32 = arith.constant dense<0.000000e+00> : vector<16x8xf32>
    %91 = tpu.matmul %88, %89, %cst_32 {dimension_numbers = #tpu.dot_dimension_numbers<[1], [1], [0], [0], [0, 0, 1, 0], [], []>} : vector<16x8xbf16>, vector<8x8xbf16>, vector<16x8xf32> -> vector<16x8xf32>
    %cst_33 = arith.constant dense<0xFF800000> : vector<16xf32>
    %92 = vector.multi_reduction <maximumf>, %91, %cst_33 [1] : vector<16x8xf32> to vector<16xf32>
    %93 = vector.shape_cast %92 : vector<16xf32> to vector<16x1xf32>
    %94 = vector.broadcast %93 : vector<16x1xf32> to vector<16x8xf32>
    %95 = arith.subf %91, %94 : vector<16x8xf32>
    %96 = math.exp %95 : vector<16x8xf32>
    %cst_34 = arith.constant dense<0.000000e+00> : vector<16xf32>
    %97 = vector.multi_reduction <add>, %96, %cst_34 [1] : vector<16x8xf32> to vector<16xf32>
    %98 = vector.shape_cast %97 : vector<16xf32> to vector<16x1xf32>
    %99 = tpu.reciprocal %98 {approx = true} : vector<16x1xf32> -> vector<16x1xf32>
    %100 = vector.broadcast %99 : vector<16x1xf32> to vector<16x8xf32>
    %101 = arith.mulf %96, %100 : vector<16x8xf32>
    %102 = arith.truncf %101 : vector<16x8xf32> to vector<16x8xbf16>
    %cst_35 = arith.constant dense<0.000000e+00> : vector<16x8xf32>
    %103 = tpu.matmul %102, %90, %cst_35 {dimension_numbers = #tpu.dot_dimension_numbers<[1], [0], [0], [1], [0, 0, 1, 1], [], []>} : vector<16x8xbf16>, vector<8x8xbf16>, vector<16x8xf32> -> vector<16x8xf32>
    %104 = arith.truncf %103 : vector<16x8xf32> to vector<16x8xbf16>
    %105 = vector.extract_strided_slice %56 {offsets = [0, 16], sizes = [16, 8], strides = [1, 1]} : vector<16x32xbf16> to vector<16x8xbf16>
    %106 = vector.extract_strided_slice %63 {offsets = [0, 16], sizes = [8, 8], strides = [1, 1]} : vector<8x32xbf16> to vector<8x8xbf16>
    %107 = vector.extract_strided_slice %70 {offsets = [0, 16], sizes = [8, 8], strides = [1, 1]} : vector<8x32xbf16> to vector<8x8xbf16>
    %cst_36 = arith.constant dense<0.000000e+00> : vector<16x8xf32>
    %108 = tpu.matmul %105, %106, %cst_36 {dimension_numbers = #tpu.dot_dimension_numbers<[1], [1], [0], [0], [0, 0, 1, 0], [], []>} : vector<16x8xbf16>, vector<8x8xbf16>, vector<16x8xf32> -> vector<16x8xf32>
    %cst_37 = arith.constant dense<0xFF800000> : vector<16xf32>
    %109 = vector.multi_reduction <maximumf>, %108, %cst_37 [1] : vector<16x8xf32> to vector<16xf32>
    %110 = vector.shape_cast %109 : vector<16xf32> to vector<16x1xf32>
    %111 = vector.broadcast %110 : vector<16x1xf32> to vector<16x8xf32>
    %112 = arith.subf %108, %111 : vector<16x8xf32>
    %113 = math.exp %112 : vector<16x8xf32>
    %cst_38 = arith.constant dense<0.000000e+00> : vector<16xf32>
    %114 = vector.multi_reduction <add>, %113, %cst_38 [1] : vector<16x8xf32> to vector<16xf32>
    %115 = vector.shape_cast %114 : vector<16xf32> to vector<16x1xf32>
    %116 = tpu.reciprocal %115 {approx = true} : vector<16x1xf32> -> vector<16x1xf32>
    %117 = vector.broadcast %116 : vector<16x1xf32> to vector<16x8xf32>
    %118 = arith.mulf %113, %117 : vector<16x8xf32>
    %119 = arith.truncf %118 : vector<16x8xf32> to vector<16x8xbf16>
    %cst_39 = arith.constant dense<0.000000e+00> : vector<16x8xf32>
    %120 = tpu.matmul %119, %107, %cst_39 {dimension_numbers = #tpu.dot_dimension_numbers<[1], [0], [0], [1], [0, 0, 1, 1], [], []>} : vector<16x8xbf16>, vector<8x8xbf16>, vector<16x8xf32> -> vector<16x8xf32>
    %121 = arith.truncf %120 : vector<16x8xf32> to vector<16x8xbf16>
    %122 = vector.extract_strided_slice %56 {offsets = [0, 24], sizes = [16, 8], strides = [1, 1]} : vector<16x32xbf16> to vector<16x8xbf16>
    %123 = vector.extract_strided_slice %63 {offsets = [0, 24], sizes = [8, 8], strides = [1, 1]} : vector<8x32xbf16> to vector<8x8xbf16>
    %124 = vector.extract_strided_slice %70 {offsets = [0, 24], sizes = [8, 8], strides = [1, 1]} : vector<8x32xbf16> to vector<8x8xbf16>
    %cst_40 = arith.constant dense<0.000000e+00> : vector<16x8xf32>
    %125 = tpu.matmul %122, %123, %cst_40 {dimension_numbers = #tpu.dot_dimension_numbers<[1], [1], [0], [0], [0, 0, 1, 0], [], []>} : vector<16x8xbf16>, vector<8x8xbf16>, vector<16x8xf32> -> vector<16x8xf32>
    %cst_41 = arith.constant dense<0xFF800000> : vector<16xf32>
    %126 = vector.multi_reduction <maximumf>, %125, %cst_41 [1] : vector<16x8xf32> to vector<16xf32>
    %127 = vector.shape_cast %126 : vector<16xf32> to vector<16x1xf32>
    %128 = vector.broadcast %127 : vector<16x1xf32> to vector<16x8xf32>
    %129 = arith.subf %125, %128 : vector<16x8xf32>
    %130 = math.exp %129 : vector<16x8xf32>
    %cst_42 = arith.constant dense<0.000000e+00> : vector<16xf32>
    %131 = vector.multi_reduction <add>, %130, %cst_42 [1] : vector<16x8xf32> to vector<16xf32>
    %132 = vector.shape_cast %131 : vector<16xf32> to vector<16x1xf32>
    %133 = tpu.reciprocal %132 {approx = true} : vector<16x1xf32> -> vector<16x1xf32>
    %134 = vector.broadcast %133 : vector<16x1xf32> to vector<16x8xf32>
    %135 = arith.mulf %130, %134 : vector<16x8xf32>
    %136 = arith.truncf %135 : vector<16x8xf32> to vector<16x8xbf16>
    %cst_43 = arith.constant dense<0.000000e+00> : vector<16x8xf32>
    %137 = tpu.matmul %136, %124, %cst_43 {dimension_numbers = #tpu.dot_dimension_numbers<[1], [0], [0], [1], [0, 0, 1, 1], [], []>} : vector<16x8xbf16>, vector<8x8xbf16>, vector<16x8xf32> -> vector<16x8xf32>
    %138 = arith.truncf %137 : vector<16x8xf32> to vector<16x8xbf16>
    %139 = tpu.concatenate %87, %104, %121, %138 in 1 : vector<16x8xbf16>, vector<16x8xbf16>, vector<16x8xbf16>, vector<16x8xbf16> -> vector<16x32xbf16>
    %c0_44 = arith.constant 0 : index
    %c3 = arith.constant 3 : index
    %c0_45 = arith.constant 0 : index
    %c0_46 = arith.constant 0 : index
    %140 = vector.load %arg3[%c0_44, %c3, %c0_45, %c0_46] : memref<2x4x32x32xbf16, #tpu.memory_space<vmem>>, vector<1x1x32x32xbf16>
    %141 = vector.shape_cast %140 : vector<1x1x32x32xbf16> to vector<32x32xbf16>
    %cst_47 = arith.constant dense<0.000000e+00> : vector<16x32xf32>
    %142 = tpu.matmul %139, %141, %cst_47 {dimension_numbers = #tpu.dot_dimension_numbers<[1], [0], [0], [1], [0, 0, 1, 1], [], []>} : vector<16x32xbf16>, vector<32x32xbf16>, vector<16x32xf32> -> vector<16x32xf32>
    %143 = arith.addf %0, %142 : vector<16x32xf32>
    %144 = vector.extract_strided_slice %3 {offsets = [7, 0], sizes = [1, 32], strides = [1, 1]} : vector<11x32xf32> to vector<1x32xf32>
    %145 = vector.broadcast %144 : vector<1x32xf32> to vector<16x32xf32>
    %146 = arith.addf %143, %145 : vector<16x32xf32>
    %147 = vector.extract_strided_slice %3 {offsets = [8, 0], sizes = [1, 32], strides = [1, 1]} : vector<11x32xf32> to vector<1x32xf32>
    %148 = vector.extract_strided_slice %3 {offsets = [9, 0], sizes = [1, 32], strides = [1, 1]} : vector<11x32xf32> to vector<1x32xf32>
    %cst_48 = arith.constant dense<0.000000e+00> : vector<16xf32>
    %149 = vector.multi_reduction <add>, %146, %cst_48 [1] : vector<16x32xf32> to vector<16xf32>
    %150 = vector.shape_cast %149 : vector<16xf32> to vector<16x1xf32>
    %cst_49 = arith.constant 3.200000e+01 : f32
    %151 = vector.broadcast %cst_49 : f32 to vector<16x1xf32>
    %152 = arith.divf %150, %151 : vector<16x1xf32>
    %153 = vector.broadcast %152 : vector<16x1xf32> to vector<16x32xf32>
    %154 = arith.subf %146, %153 : vector<16x32xf32>
    %155 = arith.mulf %154, %154 : vector<16x32xf32>
    %cst_50 = arith.constant dense<0.000000e+00> : vector<16xf32>
    %156 = vector.multi_reduction <add>, %155, %cst_50 [1] : vector<16x32xf32> to vector<16xf32>
    %157 = vector.shape_cast %156 : vector<16xf32> to vector<16x1xf32>
    %cst_51 = arith.constant 3.200000e+01 : f32
    %158 = vector.broadcast %cst_51 : f32 to vector<16x1xf32>
    %159 = arith.divf %157, %158 : vector<16x1xf32>
    %cst_52 = arith.constant 9.99999974E-6 : f32
    %160 = vector.broadcast %cst_52 : f32 to vector<16x1xf32>
    %161 = arith.addf %159, %160 : vector<16x1xf32>
    %162 = math.rsqrt %161 : vector<16x1xf32>
    %163 = vector.broadcast %162 : vector<16x1xf32> to vector<16x32xf32>
    %164 = arith.mulf %154, %163 : vector<16x32xf32>
    %165 = vector.broadcast %147 : vector<1x32xf32> to vector<16x32xf32>
    %166 = arith.mulf %164, %165 : vector<16x32xf32>
    %167 = vector.broadcast %148 : vector<1x32xf32> to vector<16x32xf32>
    %168 = arith.addf %166, %167 : vector<16x32xf32>
    %169 = arith.truncf %168 : vector<16x32xf32> to vector<16x32xbf16>
    %c0_53 = arith.constant 0 : index
    %c0_54 = arith.constant 0 : index
    %c0_55 = arith.constant 0 : index
    %170 = vector.load %arg5[%c0_53, %c0_54, %c0_55] : memref<2x32x64xbf16, #tpu.memory_space<vmem>>, vector<1x32x64xbf16>
    %171 = vector.shape_cast %170 : vector<1x32x64xbf16> to vector<32x64xbf16>
    %cst_56 = arith.constant dense<0.000000e+00> : vector<16x64xf32>
    %172 = tpu.matmul %169, %171, %cst_56 {dimension_numbers = #tpu.dot_dimension_numbers<[1], [0], [0], [1], [0, 0, 1, 1], [], []>} : vector<16x32xbf16>, vector<32x64xbf16>, vector<16x64xf32> -> vector<16x64xf32>
    %c0_57 = arith.constant 0 : index
    %c0_58 = arith.constant 0 : index
    %c0_59 = arith.constant 0 : index
    %173 = vector.load %arg7[%c0_57, %c0_58, %c0_59] : memref<2x1x64xf32, #tpu.memory_space<vmem>>, vector<1x1x64xf32>
    %174 = vector.shape_cast %173 : vector<1x1x64xf32> to vector<1x64xf32>
    %175 = vector.broadcast %174 : vector<1x64xf32> to vector<16x64xf32>
    %176 = arith.addf %172, %175 : vector<16x64xf32>
    %cst_60 = arith.constant 5.000000e-01 : f32
    %177 = vector.broadcast %cst_60 : f32 to vector<16x64xf32>
    %178 = arith.mulf %177, %176 : vector<16x64xf32>
    %cst_61 = arith.constant 0.707106769 : f32
    %179 = vector.broadcast %cst_61 : f32 to vector<16x64xf32>
    %180 = arith.mulf %176, %179 : vector<16x64xf32>
    %181 = math.absf %180 : vector<16x64xf32>
    %cst_62 = arith.constant 0.327591091 : f32
    %182 = vector.broadcast %cst_62 : f32 to vector<16x64xf32>
    %183 = arith.mulf %182, %181 : vector<16x64xf32>
    %cst_63 = arith.constant 1.000000e+00 : f32
    %184 = vector.broadcast %cst_63 : f32 to vector<16x64xf32>
    %185 = arith.addf %184, %183 : vector<16x64xf32>
    %186 = tpu.reciprocal %185 {approx = true} : vector<16x64xf32> -> vector<16x64xf32>
    %cst_64 = arith.constant 1.06140542 : f32
    %187 = vector.broadcast %cst_64 : f32 to vector<16x64xf32>
    %188 = arith.mulf %187, %186 : vector<16x64xf32>
    %cst_65 = arith.constant -1.45315206 : f32
    %189 = vector.broadcast %cst_65 : f32 to vector<16x64xf32>
    %190 = arith.addf %188, %189 : vector<16x64xf32>
    %191 = arith.mulf %190, %186 : vector<16x64xf32>
    %cst_66 = arith.constant 1.42141378 : f32
    %192 = vector.broadcast %cst_66 : f32 to vector<16x64xf32>
    %193 = arith.addf %191, %192 : vector<16x64xf32>
    %194 = arith.mulf %193, %186 : vector<16x64xf32>
    %cst_67 = arith.constant -0.284496725 : f32
    %195 = vector.broadcast %cst_67 : f32 to vector<16x64xf32>
    %196 = arith.addf %194, %195 : vector<16x64xf32>
    %197 = arith.mulf %196, %186 : vector<16x64xf32>
    %cst_68 = arith.constant 0.254829586 : f32
    %198 = vector.broadcast %cst_68 : f32 to vector<16x64xf32>
    %199 = arith.addf %197, %198 : vector<16x64xf32>
    %200 = arith.mulf %199, %186 : vector<16x64xf32>
    %cst_69 = arith.constant 0.000000e+00 : f32
    %201 = vector.broadcast %cst_69 : f32 to vector<16x64xf32>
    %202 = arith.subf %201, %181 : vector<16x64xf32>
    %203 = arith.mulf %202, %181 : vector<16x64xf32>
    %204 = math.exp %203 : vector<16x64xf32>
    %205 = arith.mulf %200, %204 : vector<16x64xf32>
    %cst_70 = arith.constant 1.000000e+00 : f32
    %206 = vector.broadcast %cst_70 : f32 to vector<16x64xf32>
    %207 = arith.subf %206, %205 : vector<16x64xf32>
    %cst_71 = arith.constant 0.000000e+00 : f32
    %208 = vector.broadcast %cst_71 : f32 to vector<16x64xf32>
    %209 = arith.cmpf oge, %180, %208 : vector<16x64xf32>
    %cst_72 = arith.constant 0.000000e+00 : f32
    %210 = vector.broadcast %cst_72 : f32 to vector<16x64xf32>
    %211 = arith.subf %210, %207 : vector<16x64xf32>
    %212 = arith.select %209, %207, %211 : vector<16x64xi1>, vector<16x64xf32>
    %cst_73 = arith.constant 1.000000e+00 : f32
    %213 = vector.broadcast %cst_73 : f32 to vector<16x64xf32>
    %214 = arith.addf %213, %212 : vector<16x64xf32>
    %215 = arith.mulf %178, %214 : vector<16x64xf32>
    %216 = arith.truncf %215 : vector<16x64xf32> to vector<16x64xbf16>
    %c0_74 = arith.constant 0 : index
    %c0_75 = arith.constant 0 : index
    %c0_76 = arith.constant 0 : index
    %217 = vector.load %arg6[%c0_74, %c0_75, %c0_76] : memref<2x64x32xbf16, #tpu.memory_space<vmem>>, vector<1x64x32xbf16>
    %218 = vector.shape_cast %217 : vector<1x64x32xbf16> to vector<64x32xbf16>
    %cst_77 = arith.constant dense<0.000000e+00> : vector<16x32xf32>
    %219 = tpu.matmul %216, %218, %cst_77 {dimension_numbers = #tpu.dot_dimension_numbers<[1], [0], [0], [1], [0, 0, 1, 1], [], []>} : vector<16x64xbf16>, vector<64x32xbf16>, vector<16x32xf32> -> vector<16x32xf32>
    %220 = vector.extract_strided_slice %3 {offsets = [10, 0], sizes = [1, 32], strides = [1, 1]} : vector<11x32xf32> to vector<1x32xf32>
    %221 = vector.broadcast %220 : vector<1x32xf32> to vector<16x32xf32>
    %222 = arith.addf %219, %221 : vector<16x32xf32>
    %223 = arith.addf %146, %222 : vector<16x32xf32>
    %c1_78 = arith.constant 1 : index
    %c0_79 = arith.constant 0 : index
    %c0_80 = arith.constant 0 : index
    %224 = vector.load %arg4[%c1_78, %c0_79, %c0_80] : memref<2x11x32xf32, #tpu.memory_space<vmem>>, vector<1x11x32xf32>
    %225 = vector.shape_cast %224 : vector<1x11x32xf32> to vector<11x32xf32>
    %226 = vector.extract_strided_slice %225 {offsets = [0, 0], sizes = [1, 32], strides = [1, 1]} : vector<11x32xf32> to vector<1x32xf32>
    %227 = vector.extract_strided_slice %225 {offsets = [1, 0], sizes = [1, 32], strides = [1, 1]} : vector<11x32xf32> to vector<1x32xf32>
    %cst_81 = arith.constant dense<0.000000e+00> : vector<16xf32>
    %228 = vector.multi_reduction <add>, %223, %cst_81 [1] : vector<16x32xf32> to vector<16xf32>
    %229 = vector.shape_cast %228 : vector<16xf32> to vector<16x1xf32>
    %cst_82 = arith.constant 3.200000e+01 : f32
    %230 = vector.broadcast %cst_82 : f32 to vector<16x1xf32>
    %231 = arith.divf %229, %230 : vector<16x1xf32>
    %232 = vector.broadcast %231 : vector<16x1xf32> to vector<16x32xf32>
    %233 = arith.subf %223, %232 : vector<16x32xf32>
    %234 = arith.mulf %233, %233 : vector<16x32xf32>
    %cst_83 = arith.constant dense<0.000000e+00> : vector<16xf32>
    %235 = vector.multi_reduction <add>, %234, %cst_83 [1] : vector<16x32xf32> to vector<16xf32>
    %236 = vector.shape_cast %235 : vector<16xf32> to vector<16x1xf32>
    %cst_84 = arith.constant 3.200000e+01 : f32
    %237 = vector.broadcast %cst_84 : f32 to vector<16x1xf32>
    %238 = arith.divf %236, %237 : vector<16x1xf32>
    %cst_85 = arith.constant 9.99999974E-6 : f32
    %239 = vector.broadcast %cst_85 : f32 to vector<16x1xf32>
    %240 = arith.addf %238, %239 : vector<16x1xf32>
    %241 = math.rsqrt %240 : vector<16x1xf32>
    %242 = vector.broadcast %241 : vector<16x1xf32> to vector<16x32xf32>
    %243 = arith.mulf %233, %242 : vector<16x32xf32>
    %244 = vector.broadcast %226 : vector<1x32xf32> to vector<16x32xf32>
    %245 = arith.mulf %243, %244 : vector<16x32xf32>
    %246 = vector.broadcast %227 : vector<1x32xf32> to vector<16x32xf32>
    %247 = arith.addf %245, %246 : vector<16x32xf32>
    %248 = arith.truncf %247 : vector<16x32xf32> to vector<16x32xbf16>
    %249 = vector.extract_strided_slice %225 {offsets = [2, 0], sizes = [1, 32], strides = [1, 1]} : vector<11x32xf32> to vector<1x32xf32>
    %250 = vector.extract_strided_slice %225 {offsets = [3, 0], sizes = [1, 32], strides = [1, 1]} : vector<11x32xf32> to vector<1x32xf32>
    %cst_86 = arith.constant dense<0.000000e+00> : vector<8xf32>
    %251 = vector.multi_reduction <add>, %1, %cst_86 [1] : vector<8x32xf32> to vector<8xf32>
    %252 = vector.shape_cast %251 : vector<8xf32> to vector<8x1xf32>
    %cst_87 = arith.constant 3.200000e+01 : f32
    %253 = vector.broadcast %cst_87 : f32 to vector<8x1xf32>
    %254 = arith.divf %252, %253 : vector<8x1xf32>
    %255 = vector.broadcast %254 : vector<8x1xf32> to vector<8x32xf32>
    %256 = arith.subf %1, %255 : vector<8x32xf32>
    %257 = arith.mulf %256, %256 : vector<8x32xf32>
    %cst_88 = arith.constant dense<0.000000e+00> : vector<8xf32>
    %258 = vector.multi_reduction <add>, %257, %cst_88 [1] : vector<8x32xf32> to vector<8xf32>
    %259 = vector.shape_cast %258 : vector<8xf32> to vector<8x1xf32>
    %cst_89 = arith.constant 3.200000e+01 : f32
    %260 = vector.broadcast %cst_89 : f32 to vector<8x1xf32>
    %261 = arith.divf %259, %260 : vector<8x1xf32>
    %cst_90 = arith.constant 9.99999974E-6 : f32
    %262 = vector.broadcast %cst_90 : f32 to vector<8x1xf32>
    %263 = arith.addf %261, %262 : vector<8x1xf32>
    %264 = math.rsqrt %263 : vector<8x1xf32>
    %265 = vector.broadcast %264 : vector<8x1xf32> to vector<8x32xf32>
    %266 = arith.mulf %256, %265 : vector<8x32xf32>
    %267 = vector.broadcast %249 : vector<1x32xf32> to vector<8x32xf32>
    %268 = arith.mulf %266, %267 : vector<8x32xf32>
    %269 = vector.broadcast %250 : vector<1x32xf32> to vector<8x32xf32>
    %270 = arith.addf %268, %269 : vector<8x32xf32>
    %271 = arith.truncf %270 : vector<8x32xf32> to vector<8x32xbf16>
    %c1_91 = arith.constant 1 : index
    %c0_92 = arith.constant 0 : index
    %c0_93 = arith.constant 0 : index
    %c0_94 = arith.constant 0 : index
    %272 = vector.load %arg3[%c1_91, %c0_92, %c0_93, %c0_94] : memref<2x4x32x32xbf16, #tpu.memory_space<vmem>>, vector<1x1x32x32xbf16>
    %273 = vector.shape_cast %272 : vector<1x1x32x32xbf16> to vector<32x32xbf16>
    %cst_95 = arith.constant dense<0.000000e+00> : vector<16x32xf32>
    %274 = tpu.matmul %248, %273, %cst_95 {dimension_numbers = #tpu.dot_dimension_numbers<[1], [0], [0], [1], [0, 0, 1, 1], [], []>} : vector<16x32xbf16>, vector<32x32xbf16>, vector<16x32xf32> -> vector<16x32xf32>
    %275 = vector.extract_strided_slice %225 {offsets = [4, 0], sizes = [1, 32], strides = [1, 1]} : vector<11x32xf32> to vector<1x32xf32>
    %276 = vector.broadcast %275 : vector<1x32xf32> to vector<16x32xf32>
    %277 = arith.addf %274, %276 : vector<16x32xf32>
    %278 = arith.truncf %277 : vector<16x32xf32> to vector<16x32xbf16>
    %c1_96 = arith.constant 1 : index
    %c1_97 = arith.constant 1 : index
    %c0_98 = arith.constant 0 : index
    %c0_99 = arith.constant 0 : index
    %279 = vector.load %arg3[%c1_96, %c1_97, %c0_98, %c0_99] : memref<2x4x32x32xbf16, #tpu.memory_space<vmem>>, vector<1x1x32x32xbf16>
    %280 = vector.shape_cast %279 : vector<1x1x32x32xbf16> to vector<32x32xbf16>
    %cst_100 = arith.constant dense<0.000000e+00> : vector<8x32xf32>
    %281 = tpu.matmul %271, %280, %cst_100 {dimension_numbers = #tpu.dot_dimension_numbers<[1], [0], [0], [1], [0, 0, 1, 1], [], []>} : vector<8x32xbf16>, vector<32x32xbf16>, vector<8x32xf32> -> vector<8x32xf32>
    %282 = vector.extract_strided_slice %225 {offsets = [5, 0], sizes = [1, 32], strides = [1, 1]} : vector<11x32xf32> to vector<1x32xf32>
    %283 = vector.broadcast %282 : vector<1x32xf32> to vector<8x32xf32>
    %284 = arith.addf %281, %283 : vector<8x32xf32>
    %285 = arith.truncf %284 : vector<8x32xf32> to vector<8x32xbf16>
    %c1_101 = arith.constant 1 : index
    %c2_102 = arith.constant 2 : index
    %c0_103 = arith.constant 0 : index
    %c0_104 = arith.constant 0 : index
    %286 = vector.load %arg3[%c1_101, %c2_102, %c0_103, %c0_104] : memref<2x4x32x32xbf16, #tpu.memory_space<vmem>>, vector<1x1x32x32xbf16>
    %287 = vector.shape_cast %286 : vector<1x1x32x32xbf16> to vector<32x32xbf16>
    %cst_105 = arith.constant dense<0.000000e+00> : vector<8x32xf32>
    %288 = tpu.matmul %271, %287, %cst_105 {dimension_numbers = #tpu.dot_dimension_numbers<[1], [0], [0], [1], [0, 0, 1, 1], [], []>} : vector<8x32xbf16>, vector<32x32xbf16>, vector<8x32xf32> -> vector<8x32xf32>
    %289 = vector.extract_strided_slice %225 {offsets = [6, 0], sizes = [1, 32], strides = [1, 1]} : vector<11x32xf32> to vector<1x32xf32>
    %290 = vector.broadcast %289 : vector<1x32xf32> to vector<8x32xf32>
    %291 = arith.addf %288, %290 : vector<8x32xf32>
    %292 = arith.truncf %291 : vector<8x32xf32> to vector<8x32xbf16>
    %293 = vector.extract_strided_slice %278 {offsets = [0, 0], sizes = [16, 8], strides = [1, 1]} : vector<16x32xbf16> to vector<16x8xbf16>
    %294 = vector.extract_strided_slice %285 {offsets = [0, 0], sizes = [8, 8], strides = [1, 1]} : vector<8x32xbf16> to vector<8x8xbf16>
    %295 = vector.extract_strided_slice %292 {offsets = [0, 0], sizes = [8, 8], strides = [1, 1]} : vector<8x32xbf16> to vector<8x8xbf16>
    %cst_106 = arith.constant dense<0.000000e+00> : vector<16x8xf32>
    %296 = tpu.matmul %293, %294, %cst_106 {dimension_numbers = #tpu.dot_dimension_numbers<[1], [1], [0], [0], [0, 0, 1, 0], [], []>} : vector<16x8xbf16>, vector<8x8xbf16>, vector<16x8xf32> -> vector<16x8xf32>
    %cst_107 = arith.constant dense<0xFF800000> : vector<16xf32>
    %297 = vector.multi_reduction <maximumf>, %296, %cst_107 [1] : vector<16x8xf32> to vector<16xf32>
    %298 = vector.shape_cast %297 : vector<16xf32> to vector<16x1xf32>
    %299 = vector.broadcast %298 : vector<16x1xf32> to vector<16x8xf32>
    %300 = arith.subf %296, %299 : vector<16x8xf32>
    %301 = math.exp %300 : vector<16x8xf32>
    %cst_108 = arith.constant dense<0.000000e+00> : vector<16xf32>
    %302 = vector.multi_reduction <add>, %301, %cst_108 [1] : vector<16x8xf32> to vector<16xf32>
    %303 = vector.shape_cast %302 : vector<16xf32> to vector<16x1xf32>
    %304 = tpu.reciprocal %303 {approx = true} : vector<16x1xf32> -> vector<16x1xf32>
    %305 = vector.broadcast %304 : vector<16x1xf32> to vector<16x8xf32>
    %306 = arith.mulf %301, %305 : vector<16x8xf32>
    %307 = arith.truncf %306 : vector<16x8xf32> to vector<16x8xbf16>
    %cst_109 = arith.constant dense<0.000000e+00> : vector<16x8xf32>
    %308 = tpu.matmul %307, %295, %cst_109 {dimension_numbers = #tpu.dot_dimension_numbers<[1], [0], [0], [1], [0, 0, 1, 1], [], []>} : vector<16x8xbf16>, vector<8x8xbf16>, vector<16x8xf32> -> vector<16x8xf32>
    %309 = arith.truncf %308 : vector<16x8xf32> to vector<16x8xbf16>
    %310 = vector.extract_strided_slice %278 {offsets = [0, 8], sizes = [16, 8], strides = [1, 1]} : vector<16x32xbf16> to vector<16x8xbf16>
    %311 = vector.extract_strided_slice %285 {offsets = [0, 8], sizes = [8, 8], strides = [1, 1]} : vector<8x32xbf16> to vector<8x8xbf16>
    %312 = vector.extract_strided_slice %292 {offsets = [0, 8], sizes = [8, 8], strides = [1, 1]} : vector<8x32xbf16> to vector<8x8xbf16>
    %cst_110 = arith.constant dense<0.000000e+00> : vector<16x8xf32>
    %313 = tpu.matmul %310, %311, %cst_110 {dimension_numbers = #tpu.dot_dimension_numbers<[1], [1], [0], [0], [0, 0, 1, 0], [], []>} : vector<16x8xbf16>, vector<8x8xbf16>, vector<16x8xf32> -> vector<16x8xf32>
    %cst_111 = arith.constant dense<0xFF800000> : vector<16xf32>
    %314 = vector.multi_reduction <maximumf>, %313, %cst_111 [1] : vector<16x8xf32> to vector<16xf32>
    %315 = vector.shape_cast %314 : vector<16xf32> to vector<16x1xf32>
    %316 = vector.broadcast %315 : vector<16x1xf32> to vector<16x8xf32>
    %317 = arith.subf %313, %316 : vector<16x8xf32>
    %318 = math.exp %317 : vector<16x8xf32>
    %cst_112 = arith.constant dense<0.000000e+00> : vector<16xf32>
    %319 = vector.multi_reduction <add>, %318, %cst_112 [1] : vector<16x8xf32> to vector<16xf32>
    %320 = vector.shape_cast %319 : vector<16xf32> to vector<16x1xf32>
    %321 = tpu.reciprocal %320 {approx = true} : vector<16x1xf32> -> vector<16x1xf32>
    %322 = vector.broadcast %321 : vector<16x1xf32> to vector<16x8xf32>
    %323 = arith.mulf %318, %322 : vector<16x8xf32>
    %324 = arith.truncf %323 : vector<16x8xf32> to vector<16x8xbf16>
    %cst_113 = arith.constant dense<0.000000e+00> : vector<16x8xf32>
    %325 = tpu.matmul %324, %312, %cst_113 {dimension_numbers = #tpu.dot_dimension_numbers<[1], [0], [0], [1], [0, 0, 1, 1], [], []>} : vector<16x8xbf16>, vector<8x8xbf16>, vector<16x8xf32> -> vector<16x8xf32>
    %326 = arith.truncf %325 : vector<16x8xf32> to vector<16x8xbf16>
    %327 = vector.extract_strided_slice %278 {offsets = [0, 16], sizes = [16, 8], strides = [1, 1]} : vector<16x32xbf16> to vector<16x8xbf16>
    %328 = vector.extract_strided_slice %285 {offsets = [0, 16], sizes = [8, 8], strides = [1, 1]} : vector<8x32xbf16> to vector<8x8xbf16>
    %329 = vector.extract_strided_slice %292 {offsets = [0, 16], sizes = [8, 8], strides = [1, 1]} : vector<8x32xbf16> to vector<8x8xbf16>
    %cst_114 = arith.constant dense<0.000000e+00> : vector<16x8xf32>
    %330 = tpu.matmul %327, %328, %cst_114 {dimension_numbers = #tpu.dot_dimension_numbers<[1], [1], [0], [0], [0, 0, 1, 0], [], []>} : vector<16x8xbf16>, vector<8x8xbf16>, vector<16x8xf32> -> vector<16x8xf32>
    %cst_115 = arith.constant dense<0xFF800000> : vector<16xf32>
    %331 = vector.multi_reduction <maximumf>, %330, %cst_115 [1] : vector<16x8xf32> to vector<16xf32>
    %332 = vector.shape_cast %331 : vector<16xf32> to vector<16x1xf32>
    %333 = vector.broadcast %332 : vector<16x1xf32> to vector<16x8xf32>
    %334 = arith.subf %330, %333 : vector<16x8xf32>
    %335 = math.exp %334 : vector<16x8xf32>
    %cst_116 = arith.constant dense<0.000000e+00> : vector<16xf32>
    %336 = vector.multi_reduction <add>, %335, %cst_116 [1] : vector<16x8xf32> to vector<16xf32>
    %337 = vector.shape_cast %336 : vector<16xf32> to vector<16x1xf32>
    %338 = tpu.reciprocal %337 {approx = true} : vector<16x1xf32> -> vector<16x1xf32>
    %339 = vector.broadcast %338 : vector<16x1xf32> to vector<16x8xf32>
    %340 = arith.mulf %335, %339 : vector<16x8xf32>
    %341 = arith.truncf %340 : vector<16x8xf32> to vector<16x8xbf16>
    %cst_117 = arith.constant dense<0.000000e+00> : vector<16x8xf32>
    %342 = tpu.matmul %341, %329, %cst_117 {dimension_numbers = #tpu.dot_dimension_numbers<[1], [0], [0], [1], [0, 0, 1, 1], [], []>} : vector<16x8xbf16>, vector<8x8xbf16>, vector<16x8xf32> -> vector<16x8xf32>
    %343 = arith.truncf %342 : vector<16x8xf32> to vector<16x8xbf16>
    %344 = vector.extract_strided_slice %278 {offsets = [0, 24], sizes = [16, 8], strides = [1, 1]} : vector<16x32xbf16> to vector<16x8xbf16>
    %345 = vector.extract_strided_slice %285 {offsets = [0, 24], sizes = [8, 8], strides = [1, 1]} : vector<8x32xbf16> to vector<8x8xbf16>
    %346 = vector.extract_strided_slice %292 {offsets = [0, 24], sizes = [8, 8], strides = [1, 1]} : vector<8x32xbf16> to vector<8x8xbf16>
    %cst_118 = arith.constant dense<0.000000e+00> : vector<16x8xf32>
    %347 = tpu.matmul %344, %345, %cst_118 {dimension_numbers = #tpu.dot_dimension_numbers<[1], [1], [0], [0], [0, 0, 1, 0], [], []>} : vector<16x8xbf16>, vector<8x8xbf16>, vector<16x8xf32> -> vector<16x8xf32>
    %cst_119 = arith.constant dense<0xFF800000> : vector<16xf32>
    %348 = vector.multi_reduction <maximumf>, %347, %cst_119 [1] : vector<16x8xf32> to vector<16xf32>
    %349 = vector.shape_cast %348 : vector<16xf32> to vector<16x1xf32>
    %350 = vector.broadcast %349 : vector<16x1xf32> to vector<16x8xf32>
    %351 = arith.subf %347, %350 : vector<16x8xf32>
    %352 = math.exp %351 : vector<16x8xf32>
    %cst_120 = arith.constant dense<0.000000e+00> : vector<16xf32>
    %353 = vector.multi_reduction <add>, %352, %cst_120 [1] : vector<16x8xf32> to vector<16xf32>
    %354 = vector.shape_cast %353 : vector<16xf32> to vector<16x1xf32>
    %355 = tpu.reciprocal %354 {approx = true} : vector<16x1xf32> -> vector<16x1xf32>
    %356 = vector.broadcast %355 : vector<16x1xf32> to vector<16x8xf32>
    %357 = arith.mulf %352, %356 : vector<16x8xf32>
    %358 = arith.truncf %357 : vector<16x8xf32> to vector<16x8xbf16>
    %cst_121 = arith.constant dense<0.000000e+00> : vector<16x8xf32>
    %359 = tpu.matmul %358, %346, %cst_121 {dimension_numbers = #tpu.dot_dimension_numbers<[1], [0], [0], [1], [0, 0, 1, 1], [], []>} : vector<16x8xbf16>, vector<8x8xbf16>, vector<16x8xf32> -> vector<16x8xf32>
    %360 = arith.truncf %359 : vector<16x8xf32> to vector<16x8xbf16>
    %361 = tpu.concatenate %309, %326, %343, %360 in 1 : vector<16x8xbf16>, vector<16x8xbf16>, vector<16x8xbf16>, vector<16x8xbf16> -> vector<16x32xbf16>
    %c1_122 = arith.constant 1 : index
    %c3_123 = arith.constant 3 : index
    %c0_124 = arith.constant 0 : index
    %c0_125 = arith.constant 0 : index
    %362 = vector.load %arg3[%c1_122, %c3_123, %c0_124, %c0_125] : memref<2x4x32x32xbf16, #tpu.memory_space<vmem>>, vector<1x1x32x32xbf16>
    %363 = vector.shape_cast %362 : vector<1x1x32x32xbf16> to vector<32x32xbf16>
    %cst_126 = arith.constant dense<0.000000e+00> : vector<16x32xf32>
    %364 = tpu.matmul %361, %363, %cst_126 {dimension_numbers = #tpu.dot_dimension_numbers<[1], [0], [0], [1], [0, 0, 1, 1], [], []>} : vector<16x32xbf16>, vector<32x32xbf16>, vector<16x32xf32> -> vector<16x32xf32>
    %365 = arith.addf %223, %364 : vector<16x32xf32>
    %366 = vector.extract_strided_slice %225 {offsets = [7, 0], sizes = [1, 32], strides = [1, 1]} : vector<11x32xf32> to vector<1x32xf32>
    %367 = vector.broadcast %366 : vector<1x32xf32> to vector<16x32xf32>
    %368 = arith.addf %365, %367 : vector<16x32xf32>
    %369 = vector.extract_strided_slice %225 {offsets = [8, 0], sizes = [1, 32], strides = [1, 1]} : vector<11x32xf32> to vector<1x32xf32>
    %370 = vector.extract_strided_slice %225 {offsets = [9, 0], sizes = [1, 32], strides = [1, 1]} : vector<11x32xf32> to vector<1x32xf32>
    %cst_127 = arith.constant dense<0.000000e+00> : vector<16xf32>
    %371 = vector.multi_reduction <add>, %368, %cst_127 [1] : vector<16x32xf32> to vector<16xf32>
    %372 = vector.shape_cast %371 : vector<16xf32> to vector<16x1xf32>
    %cst_128 = arith.constant 3.200000e+01 : f32
    %373 = vector.broadcast %cst_128 : f32 to vector<16x1xf32>
    %374 = arith.divf %372, %373 : vector<16x1xf32>
    %375 = vector.broadcast %374 : vector<16x1xf32> to vector<16x32xf32>
    %376 = arith.subf %368, %375 : vector<16x32xf32>
    %377 = arith.mulf %376, %376 : vector<16x32xf32>
    %cst_129 = arith.constant dense<0.000000e+00> : vector<16xf32>
    %378 = vector.multi_reduction <add>, %377, %cst_129 [1] : vector<16x32xf32> to vector<16xf32>
    %379 = vector.shape_cast %378 : vector<16xf32> to vector<16x1xf32>
    %cst_130 = arith.constant 3.200000e+01 : f32
    %380 = vector.broadcast %cst_130 : f32 to vector<16x1xf32>
    %381 = arith.divf %379, %380 : vector<16x1xf32>
    %cst_131 = arith.constant 9.99999974E-6 : f32
    %382 = vector.broadcast %cst_131 : f32 to vector<16x1xf32>
    %383 = arith.addf %381, %382 : vector<16x1xf32>
    %384 = math.rsqrt %383 : vector<16x1xf32>
    %385 = vector.broadcast %384 : vector<16x1xf32> to vector<16x32xf32>
    %386 = arith.mulf %376, %385 : vector<16x32xf32>
    %387 = vector.broadcast %369 : vector<1x32xf32> to vector<16x32xf32>
    %388 = arith.mulf %386, %387 : vector<16x32xf32>
    %389 = vector.broadcast %370 : vector<1x32xf32> to vector<16x32xf32>
    %390 = arith.addf %388, %389 : vector<16x32xf32>
    %391 = arith.truncf %390 : vector<16x32xf32> to vector<16x32xbf16>
    %c1_132 = arith.constant 1 : index
    %c0_133 = arith.constant 0 : index
    %c0_134 = arith.constant 0 : index
    %392 = vector.load %arg5[%c1_132, %c0_133, %c0_134] : memref<2x32x64xbf16, #tpu.memory_space<vmem>>, vector<1x32x64xbf16>
    %393 = vector.shape_cast %392 : vector<1x32x64xbf16> to vector<32x64xbf16>
    %cst_135 = arith.constant dense<0.000000e+00> : vector<16x64xf32>
    %394 = tpu.matmul %391, %393, %cst_135 {dimension_numbers = #tpu.dot_dimension_numbers<[1], [0], [0], [1], [0, 0, 1, 1], [], []>} : vector<16x32xbf16>, vector<32x64xbf16>, vector<16x64xf32> -> vector<16x64xf32>
    %c1_136 = arith.constant 1 : index
    %c0_137 = arith.constant 0 : index
    %c0_138 = arith.constant 0 : index
    %395 = vector.load %arg7[%c1_136, %c0_137, %c0_138] : memref<2x1x64xf32, #tpu.memory_space<vmem>>, vector<1x1x64xf32>
    %396 = vector.shape_cast %395 : vector<1x1x64xf32> to vector<1x64xf32>
    %397 = vector.broadcast %396 : vector<1x64xf32> to vector<16x64xf32>
    %398 = arith.addf %394, %397 : vector<16x64xf32>
    %cst_139 = arith.constant 5.000000e-01 : f32
    %399 = vector.broadcast %cst_139 : f32 to vector<16x64xf32>
    %400 = arith.mulf %399, %398 : vector<16x64xf32>
    %cst_140 = arith.constant 0.707106769 : f32
    %401 = vector.broadcast %cst_140 : f32 to vector<16x64xf32>
    %402 = arith.mulf %398, %401 : vector<16x64xf32>
    %403 = math.absf %402 : vector<16x64xf32>
    %cst_141 = arith.constant 0.327591091 : f32
    %404 = vector.broadcast %cst_141 : f32 to vector<16x64xf32>
    %405 = arith.mulf %404, %403 : vector<16x64xf32>
    %cst_142 = arith.constant 1.000000e+00 : f32
    %406 = vector.broadcast %cst_142 : f32 to vector<16x64xf32>
    %407 = arith.addf %406, %405 : vector<16x64xf32>
    %408 = tpu.reciprocal %407 {approx = true} : vector<16x64xf32> -> vector<16x64xf32>
    %cst_143 = arith.constant 1.06140542 : f32
    %409 = vector.broadcast %cst_143 : f32 to vector<16x64xf32>
    %410 = arith.mulf %409, %408 : vector<16x64xf32>
    %cst_144 = arith.constant -1.45315206 : f32
    %411 = vector.broadcast %cst_144 : f32 to vector<16x64xf32>
    %412 = arith.addf %410, %411 : vector<16x64xf32>
    %413 = arith.mulf %412, %408 : vector<16x64xf32>
    %cst_145 = arith.constant 1.42141378 : f32
    %414 = vector.broadcast %cst_145 : f32 to vector<16x64xf32>
    %415 = arith.addf %413, %414 : vector<16x64xf32>
    %416 = arith.mulf %415, %408 : vector<16x64xf32>
    %cst_146 = arith.constant -0.284496725 : f32
    %417 = vector.broadcast %cst_146 : f32 to vector<16x64xf32>
    %418 = arith.addf %416, %417 : vector<16x64xf32>
    %419 = arith.mulf %418, %408 : vector<16x64xf32>
    %cst_147 = arith.constant 0.254829586 : f32
    %420 = vector.broadcast %cst_147 : f32 to vector<16x64xf32>
    %421 = arith.addf %419, %420 : vector<16x64xf32>
    %422 = arith.mulf %421, %408 : vector<16x64xf32>
    %cst_148 = arith.constant 0.000000e+00 : f32
    %423 = vector.broadcast %cst_148 : f32 to vector<16x64xf32>
    %424 = arith.subf %423, %403 : vector<16x64xf32>
    %425 = arith.mulf %424, %403 : vector<16x64xf32>
    %426 = math.exp %425 : vector<16x64xf32>
    %427 = arith.mulf %422, %426 : vector<16x64xf32>
    %cst_149 = arith.constant 1.000000e+00 : f32
    %428 = vector.broadcast %cst_149 : f32 to vector<16x64xf32>
    %429 = arith.subf %428, %427 : vector<16x64xf32>
    %cst_150 = arith.constant 0.000000e+00 : f32
    %430 = vector.broadcast %cst_150 : f32 to vector<16x64xf32>
    %431 = arith.cmpf oge, %402, %430 : vector<16x64xf32>
    %cst_151 = arith.constant 0.000000e+00 : f32
    %432 = vector.broadcast %cst_151 : f32 to vector<16x64xf32>
    %433 = arith.subf %432, %429 : vector<16x64xf32>
    %434 = arith.select %431, %429, %433 : vector<16x64xi1>, vector<16x64xf32>
    %cst_152 = arith.constant 1.000000e+00 : f32
    %435 = vector.broadcast %cst_152 : f32 to vector<16x64xf32>
    %436 = arith.addf %435, %434 : vector<16x64xf32>
    %437 = arith.mulf %400, %436 : vector<16x64xf32>
    %438 = arith.truncf %437 : vector<16x64xf32> to vector<16x64xbf16>
    %c1_153 = arith.constant 1 : index
    %c0_154 = arith.constant 0 : index
    %c0_155 = arith.constant 0 : index
    %439 = vector.load %arg6[%c1_153, %c0_154, %c0_155] : memref<2x64x32xbf16, #tpu.memory_space<vmem>>, vector<1x64x32xbf16>
    %440 = vector.shape_cast %439 : vector<1x64x32xbf16> to vector<64x32xbf16>
    %cst_156 = arith.constant dense<0.000000e+00> : vector<16x32xf32>
    %441 = tpu.matmul %438, %440, %cst_156 {dimension_numbers = #tpu.dot_dimension_numbers<[1], [0], [0], [1], [0, 0, 1, 1], [], []>} : vector<16x64xbf16>, vector<64x32xbf16>, vector<16x32xf32> -> vector<16x32xf32>
    %442 = vector.extract_strided_slice %225 {offsets = [10, 0], sizes = [1, 32], strides = [1, 1]} : vector<11x32xf32> to vector<1x32xf32>
    %443 = vector.broadcast %442 : vector<1x32xf32> to vector<16x32xf32>
    %444 = arith.addf %441, %443 : vector<16x32xf32>
    %445 = arith.addf %368, %444 : vector<16x32xf32>
    %c0_157 = arith.constant 0 : index
    %c0_158 = arith.constant 0 : index
    %446 = vector.load %arg8[%c0_157, %c0_158] : memref<2x32xf32, #tpu.memory_space<vmem>>, vector<1x32xf32>
    %c1_159 = arith.constant 1 : index
    %c0_160 = arith.constant 0 : index
    %447 = vector.load %arg8[%c1_159, %c0_160] : memref<2x32xf32, #tpu.memory_space<vmem>>, vector<1x32xf32>
    %cst_161 = arith.constant dense<0.000000e+00> : vector<16xf32>
    %448 = vector.multi_reduction <add>, %445, %cst_161 [1] : vector<16x32xf32> to vector<16xf32>
    %449 = vector.shape_cast %448 : vector<16xf32> to vector<16x1xf32>
    %cst_162 = arith.constant 3.200000e+01 : f32
    %450 = vector.broadcast %cst_162 : f32 to vector<16x1xf32>
    %451 = arith.divf %449, %450 : vector<16x1xf32>
    %452 = vector.broadcast %451 : vector<16x1xf32> to vector<16x32xf32>
    %453 = arith.subf %445, %452 : vector<16x32xf32>
    %454 = arith.mulf %453, %453 : vector<16x32xf32>
    %cst_163 = arith.constant dense<0.000000e+00> : vector<16xf32>
    %455 = vector.multi_reduction <add>, %454, %cst_163 [1] : vector<16x32xf32> to vector<16xf32>
    %456 = vector.shape_cast %455 : vector<16xf32> to vector<16x1xf32>
    %cst_164 = arith.constant 3.200000e+01 : f32
    %457 = vector.broadcast %cst_164 : f32 to vector<16x1xf32>
    %458 = arith.divf %456, %457 : vector<16x1xf32>
    %cst_165 = arith.constant 9.99999974E-6 : f32
    %459 = vector.broadcast %cst_165 : f32 to vector<16x1xf32>
    %460 = arith.addf %458, %459 : vector<16x1xf32>
    %461 = math.rsqrt %460 : vector<16x1xf32>
    %462 = vector.broadcast %461 : vector<16x1xf32> to vector<16x32xf32>
    %463 = arith.mulf %453, %462 : vector<16x32xf32>
    %464 = vector.broadcast %446 : vector<1x32xf32> to vector<16x32xf32>
    %465 = arith.mulf %463, %464 : vector<16x32xf32>
    %466 = vector.broadcast %447 : vector<1x32xf32> to vector<16x32xf32>
    %467 = arith.addf %465, %466 : vector<16x32xf32>
    %c0_166 = arith.constant 0 : index
    %c0_167 = arith.constant 0 : index
    %468 = vector.load %arg9[%c0_166, %c0_167] : memref<16x32xf32, #tpu.memory_space<vmem>>, vector<16x32xf32>
    tpu.vector_store %arg9[%c0_166, %c0_167], %467 {strides = array<i32>} : memref<16x32xf32, #tpu.memory_space<vmem>>, vector<16x32xf32>,
    return
  }
  func.func @transform_0(%arg0: i32) -> (i32, i32) {
    %c0_i32 = arith.constant 0 : i32
    %c0_i32_0 = arith.constant 0 : i32
    return %arg0, %c0_i32 : i32, i32
  }
  func.func @transform_1(%arg0: i32) -> (i32, i32) {
    %c0_i32 = arith.constant 0 : i32
    %c0_i32_0 = arith.constant 0 : i32
    return %arg0, %c0_i32 : i32, i32
  }
  func.func @transform_2(%arg0: i32) -> (i32, i32, i32, i32) {
    %c0_i32 = arith.constant 0 : i32
    %c0_i32_0 = arith.constant 0 : i32
    %c0_i32_1 = arith.constant 0 : i32
    %c0_i32_2 = arith.constant 0 : i32
    %c0_i32_3 = arith.constant 0 : i32
    return %c0_i32, %c0_i32_0, %c0_i32_1, %c0_i32_2 : i32, i32, i32, i32
  }
  func.func @transform_3(%arg0: i32) -> (i32, i32, i32) {
    %c0_i32 = arith.constant 0 : i32
    %c0_i32_0 = arith.constant 0 : i32
    %c0_i32_1 = arith.constant 0 : i32
    %c0_i32_2 = arith.constant 0 : i32
    return %c0_i32, %c0_i32_0, %c0_i32_1 : i32, i32, i32
  }
  func.func @transform_4(%arg0: i32) -> (i32, i32, i32) {
    %c0_i32 = arith.constant 0 : i32
    %c0_i32_0 = arith.constant 0 : i32
    %c0_i32_1 = arith.constant 0 : i32
    %c0_i32_2 = arith.constant 0 : i32
    return %c0_i32, %c0_i32_0, %c0_i32_1 : i32, i32, i32
  }
  func.func @transform_5(%arg0: i32) -> (i32, i32, i32) {
    %c0_i32 = arith.constant 0 : i32
    %c0_i32_0 = arith.constant 0 : i32
    %c0_i32_1 = arith.constant 0 : i32
    %c0_i32_2 = arith.constant 0 : i32
    return %c0_i32, %c0_i32_0, %c0_i32_1 : i32, i32, i32
  }
  func.func @transform_6(%arg0: i32) -> (i32, i32, i32) {
    %c0_i32 = arith.constant 0 : i32
    %c0_i32_0 = arith.constant 0 : i32
    %c0_i32_1 = arith.constant 0 : i32
    %c0_i32_2 = arith.constant 0 : i32
    return %c0_i32, %c0_i32_0, %c0_i32_1 : i32, i32, i32
  }
  func.func @transform_7(%arg0: i32) -> (i32, i32) {
    %c0_i32 = arith.constant 0 : i32
    %c0_i32_0 = arith.constant 0 : i32
    %c0_i32_1 = arith.constant 0 : i32
    return %c0_i32, %c0_i32_0 : i32, i32
  }
  func.func @transform_8(%arg0: i32) -> (i32, i32) {
    %c0_i32 = arith.constant 0 : i32
    %c0_i32_0 = arith.constant 0 : i32
    return %arg0, %c0_i32 : i32, i32
  }
}

</mosaic_0001>

<llo_original>
// kernel: tpu_custom_call.1
$region0: #{tpu_custom_call.1}
  #allocation0 [shape = 'u32[]', space=smem, size = 0x4, offset = 0x4, fixed_abs, tag = 'smem constant byte address 0x4 - core index']
  #allocation1 [shape = 'u32[144,128]{1,0:T(1,128)}', space=vmem, size = 0x12000, scoped, tag = 'internal scratch']
  %s0 = inlined_call_operand.hbm [shape: f32[32,32], index: 0, kind: input, shape index: {}]
  %s1 = inlined_call_operand.hbm [shape: f32[16,32], index: 1, kind: input, shape index: {}]
  %s2 = inlined_call_operand.vmem [shape: bf16[2,4,32,32], index: 2, kind: input, shape index: {}]
  %s3 = inlined_call_operand.vmem [shape: f32[2,11,32], index: 3, kind: input, shape index: {}]
  %s4 = inlined_call_operand.hbm [shape: bf16[2,32,64], index: 4, kind: input, shape index: {}]
  %s5 = inlined_call_operand.vmem [shape: bf16[2,64,32], index: 5, kind: input, shape index: {}]
  %s6 = inlined_call_operand.vmem [shape: f32[2,1,64], index: 6, kind: input, shape index: {}]
  %s7 = inlined_call_operand.vmem [shape: f32[2,32], index: 7, kind: input, shape index: {}]
  %s8 = inlined_call_operand.hbm [shape: f32[32,32], index: 8, kind: output, shape index: {}]
  %s9 = sld [smem:[#allocation0]]
  $region77: #{tpu_custom_call.1} parent=0
    _
  %s11 = ssub.s32 1, %s9
  %s12 = scalar_select 0, %s11, %s9
  $region1: #{tpu_custom_call.1} parent=0
    #allocation2 [shape = 'u8[16384]{0}', space=vmem, size = 0x4000, scoped, tag = 'input window, operand 0']
    #allocation3 [shape = 's32[2]{0}', space=sflag, size = 0x8, scoped, tag = 'scoped memory for tpu_custom_call.1']
    #allocation4 [shape = 's32[2]{0}', space=sflag, size = 0x8, scoped, tag = 'scoped memory for tpu_custom_call.1']
    #allocation5 [shape = 'u8[8192]{0}', space=vmem, size = 0x2000, scoped, tag = 'input window, operand 1']
    #allocation6 [shape = 's32[2]{0}', space=sflag, size = 0x8, scoped, tag = 'scoped memory for tpu_custom_call.1']
    #allocation7 [shape = 'u8[16384]{0}', space=vmem, size = 0x4000, scoped, tag = 'input window, operand 4, single buffered']
    #allocation8 [shape = 'u8[16384]{0}', space=vmem, size = 0x4000, scoped, tag = 'output window, operand 0']
    %13 = vsyncpa [#allocation3], 0
    %s14 = scalar_lea.sflag [#allocation3], 1
    %15 = vsyncpa %s14, 0
    %16 = vsyncpa [#allocation6], 0
    %s17 = scalar_lea.sflag [#allocation6], 1
    %18 = vsyncpa %s17, 0
    %19 = vsyncpa [#allocation4], 0
    %s20 = scalar_lea.sflag [#allocation4], 1
    %21 = vsyncpa %s20, 0
    loop: start=0, step=1, limit=4
    $region2: #{tpu_custom_call.1} parent=1 // loop_pre_header
      _
    $region3: #{tpu_custom_call.1} parent=1 // loop_header
      %s23 = sphi 0, %s27
      %p24 = scmp.ge.s32.totalorder %s23, 4
      %s33 = sphi 0, %s35
      %s36 = sphi 0, %s33
      %s37 = sphi 0, %s36
      %s53 = sphi 0, %s37
      %s59 = sphi 0, %s61
      %s62 = sphi 0, %s59
      %s63 = sphi 0, %s62
      %s79 = sphi 0, %s63
      %s83 = sphi 0, %s83
      %s85 = sphi 0, %s83
      %s86 = sphi 0, %s85
      %s100 = sphi 0, %s86
      %s104 = sphi 0, %s104
      %s106 = sphi 0, %s104
      %s107 = sphi 0, %s106
      %s121 = sphi 0, %s107
      %s125 = sphi 0, %s125
      %s127 = sphi 0, %s125
      %s128 = sphi 0, %s127
      %s142 = sphi 0, %s128
      %s146 = sphi 0, %s146
      %s148 = sphi 0, %s146
      %s149 = sphi 0, %s148
      %s163 = sphi 0, %s149
      %s167 = sphi 0, %s167
      %s169 = sphi 0, %s167
      %s170 = sphi 0, %s169
      %s184 = sphi 0, %s170
      %s188 = sphi 0, %s188
      %s190 = sphi 0, %s188
      %s191 = sphi 0, %s190
      %s205 = sphi 0, %s191
      %s211 = sphi 0, %s213
      %s214 = sphi 0, %s211
      %s215 = sphi 0, %s214
      %s231 = sphi 0, %s215
    $region4: #{tpu_custom_call.1} parent=1 // loop_header_branch
      %26 = sbr.rel (%p24) target = $region8
    $region5: #{tpu_custom_call.1} parent=1 // loop_body
      %s28 = ssub.s32 %s23, 1
      %s29 = ssub.s32 %s23, 2
      %s30 = sadd.s32 %s23, 1
      %s31 = ssub.s32 %s23, %s30
      %p32 = scmp.eq.s32.totalorder %s31, 0
      %s34 = sadd.s32 %s33, 1
      %s35 = scalar_select %p32, %s33, %s34
      %p38 = pneg %p32
      %p39 = scmp.eq.s32.totalorder %s23, 1
      %p40 = por %p38, %p39
      %p41 = scmp.ne.s32.totalorder %s33, %s36
      %p42 = scmp.eq.s32.totalorder %s23, 0
      %p43 = por %p41, %p42
      %p44 = scmp.ne.s32.totalorder %s33, %s36
      %p45 = scmp.eq.s32.totalorder %s28, 1
      %p46 = por %p44, %p45
      %p47 = scmp.ne.s32.totalorder %s36, %s37
      %p48 = scmp.eq.s32.totalorder %s28, 0
      %p49 = por %p47, %p48
      %p50 = scmp.ne.s32.totalorder %s36, %s37
      %p51 = scmp.eq.s32.totalorder %s29, 1
      %p52 = por %p50, %p51
      %p54 = scmp.ne.s32.totalorder %s37, %s53
      %p55 = scmp.eq.s32.totalorder %s29, 0
      %p56 = por %p54, %p55
      %s57 = ssub.s32 %s23, %s30
      %p58 = scmp.eq.s32.totalorder %s57, 0
      %s60 = sadd.s32 %s59, 1
      %s61 = scalar_select %p58, %s59, %s60
      %p64 = pneg %p58
      %p65 = scmp.eq.s32.totalorder %s23, 1
      %p66 = por %p64, %p65
      %p67 = scmp.ne.s32.totalorder %s59, %s62
      %p68 = scmp.eq.s32.totalorder %s23, 0
      %p69 = por %p67, %p68
      %p70 = scmp.ne.s32.totalorder %s59, %s62
      %p71 = scmp.eq.s32.totalorder %s28, 1
      %p72 = por %p70, %p71
      %p73 = scmp.ne.s32.totalorder %s62, %s63
      %p74 = scmp.eq.s32.totalorder %s28, 0
      %p75 = por %p73, %p74
      %p76 = scmp.ne.s32.totalorder %s62, %s63
      %p77 = scmp.eq.s32.totalorder %s29, 1
      %p78 = por %p76, %p77
      %p80 = scmp.ne.s32.totalorder %s63, %s79
      %p81 = scmp.eq.s32.totalorder %s29, 0
      %p82 = por %p80, %p81
      %s84 = sadd.s32 %s83, 1
      %p87 = scmp.eq.s32.totalorder %s23, 1
      %p88 = scmp.ne.s32.totalorder %s83, %s85
      %p89 = scmp.eq.s32.totalorder %s23, 0
      %p90 = por %p88, %p89
      %p91 = scmp.ne.s32.totalorder %s83, %s85
      %p92 = scmp.eq.s32.totalorder %s28, 1
      %p93 = por %p91, %p92
      %p94 = scmp.ne.s32.totalorder %s85, %s86
      %p95 = scmp.eq.s32.totalorder %s28, 0
      %p96 = por %p94, %p95
      %p97 = scmp.ne.s32.totalorder %s85, %s86
      %p98 = scmp.eq.s32.totalorder %s29, 1
      %p99 = por %p97, %p98
      %p101 = scmp.ne.s32.totalorder %s86, %s100
      %p102 = scmp.eq.s32.totalorder %s29, 0
      %p103 = por %p101, %p102
      %s105 = sadd.s32 %s104, 1
      %p108 = scmp.eq.s32.totalorder %s23, 1
      %p109 = scmp.ne.s32.totalorder %s104, %s106
      %p110 = scmp.eq.s32.totalorder %s23, 0
      %p111 = por %p109, %p110
      %p112 = scmp.ne.s32.totalorder %s104, %s106
      %p113 = scmp.eq.s32.totalorder %s28, 1
      %p114 = por %p112, %p113
      %p115 = scmp.ne.s32.totalorder %s106, %s107
      %p116 = scmp.eq.s32.totalorder %s28, 0
      %p117 = por %p115, %p116
      %p118 = scmp.ne.s32.totalorder %s106, %s107
      %p119 = scmp.eq.s32.totalorder %s29, 1
      %p120 = por %p118, %p119
      %p122 = scmp.ne.s32.totalorder %s107, %s121
      %p123 = scmp.eq.s32.totalorder %s29, 0
      %p124 = por %p122, %p123
      %s126 = sadd.s32 %s125, 1
      %p129 = scmp.eq.s32.totalorder %s23, 1
      %p130 = scmp.ne.s32.totalorder %s125, %s127
      %p131 = scmp.eq.s32.totalorder %s23, 0
      %p132 = por %p130, %p131
      %p133 = scmp.ne.s32.totalorder %s125, %s127
      %p134 = scmp.eq.s32.totalorder %s28, 1
      %p135 = por %p133, %p134
      %p136 = scmp.ne.s32.totalorder %s127, %s128
      %p137 = scmp.eq.s32.totalorder %s28, 0
      %p138 = por %p136, %p137
      %p139 = scmp.ne.s32.totalorder %s127, %s128
      %p140 = scmp.eq.s32.totalorder %s29, 1
      %p141 = por %p139, %p140
      %p143 = scmp.ne.s32.totalorder %s128, %s142
      %p144 = scmp.eq.s32.totalorder %s29, 0
      %p145 = por %p143, %p144
      %s147 = sadd.s32 %s146, 1
      %p150 = scmp.eq.s32.totalorder %s23, 1
      %p151 = scmp.ne.s32.totalorder %s146, %s148
      %p152 = scmp.eq.s32.totalorder %s23, 0
      %p153 = por %p151, %p152
      %p154 = scmp.ne.s32.totalorder %s146, %s148
      %p155 = scmp.eq.s32.totalorder %s28, 1
      %p156 = por %p154, %p155
      %p157 = scmp.ne.s32.totalorder %s148, %s149
      %p158 = scmp.eq.s32.totalorder %s28, 0
      %p159 = por %p157, %p158
      %p160 = scmp.ne.s32.totalorder %s148, %s149
      %p161 = scmp.eq.s32.totalorder %s29, 1
      %p162 = por %p160, %p161
      %p164 = scmp.ne.s32.totalorder %s149, %s163
      %p165 = scmp.eq.s32.totalorder %s29, 0
      %p166 = por %p164, %p165
      %s168 = sadd.s32 %s167, 1
      %p171 = scmp.eq.s32.totalorder %s23, 1
      %p172 = scmp.ne.s32.totalorder %s167, %s169
      %p173 = scmp.eq.s32.totalorder %s23, 0
      %p174 = por %p172, %p173
      %p175 = scmp.ne.s32.totalorder %s167, %s169
      %p176 = scmp.eq.s32.totalorder %s28, 1
      %p177 = por %p175, %p176
      %p178 = scmp.ne.s32.totalorder %s169, %s170
      %p179 = scmp.eq.s32.totalorder %s28, 0
      %p180 = por %p178, %p179
      %p181 = scmp.ne.s32.totalorder %s169, %s170
      %p182 = scmp.eq.s32.totalorder %s29, 1
      %p183 = por %p181, %p182
      %p185 = scmp.ne.s32.totalorder %s170, %s184
      %p186 = scmp.eq.s32.totalorder %s29, 0
      %p187 = por %p185, %p186
      %s189 = sadd.s32 %s188, 1
      %p192 = scmp.eq.s32.totalorder %s23, 1
      %p193 = scmp.ne.s32.totalorder %s188, %s190
      %p194 = scmp.eq.s32.totalorder %s23, 0
      %p195 = por %p193, %p194
      %p196 = scmp.ne.s32.totalorder %s188, %s190
      %p197 = scmp.eq.s32.totalorder %s28, 1
      %p198 = por %p196, %p197
      %p199 = scmp.ne.s32.totalorder %s190, %s191
      %p200 = scmp.eq.s32.totalorder %s28, 0
      %p201 = por %p199, %p200
      %p202 = scmp.ne.s32.totalorder %s190, %s191
      %p203 = scmp.eq.s32.totalorder %s29, 1
      %p204 = por %p202, %p203
      %p206 = scmp.ne.s32.totalorder %s191, %s205
      %p207 = scmp.eq.s32.totalorder %s29, 0
      %p208 = por %p206, %p207
      %s209 = ssub.s32 %s23, %s30
      %p210 = scmp.eq.s32.totalorder %s209, 0
      %s212 = sadd.s32 %s211, 1
      %s213 = scalar_select %p210, %s211, %s212
      %p216 = pneg %p210
      %p217 = scmp.eq.s32.totalorder %s23, 1
      %p218 = por %p216, %p217
      %p219 = scmp.ne.s32.totalorder %s211, %s214
      %p220 = scmp.eq.s32.totalorder %s23, 0
      %p221 = por %p219, %p220
      %p222 = scmp.ne.s32.totalorder %s211, %s214
      %p223 = scmp.eq.s32.totalorder %s28, 1
      %p224 = por %p222, %p223
      %p225 = scmp.ne.s32.totalorder %s214, %s215
      %p226 = scmp.eq.s32.totalorder %s28, 0
      %p227 = por %p225, %p226
      %p228 = scmp.ne.s32.totalorder %s214, %s215
      %p229 = scmp.eq.s32.totalorder %s29, 1
      %p230 = por %p228, %p229
      %p232 = scmp.ne.s32.totalorder %s215, %s231
      %p233 = scmp.eq.s32.totalorder %s29, 0
      %p234 = por %p232, %p233
      %p235 = scmp.le.s32.totalorder 1, %s23
      %p236 = scmp.lt.s32.totalorder %s23, 3
      %p237 = pnand %p235, %p236
      %p238 = pneg %p237
      // Predicated region
      $region9: #{tpu_custom_call.1} parent=5 // pred_check
        _
      $region10: #{tpu_custom_call.1} parent=5 // pred_check_branch
        %240 = sbr.rel (%p237) target = $region12
      $region11: #{tpu_custom_call.1} parent=5 // pred_region
        %s241 = ssub.s32 %s23, 1
        // Predicated region
        $region13: #{tpu_custom_call.1} parent=11 // pred_check
          %p242 = pneg %p96
        $region14: #{tpu_custom_call.1} parent=11 // pred_check_branch
          %244 = sbr.rel (%p242) target = $region16
        $region15: #{tpu_custom_call.1} parent=11 // pred_region
          _
        $region16: #{tpu_custom_call.1} parent=11 // pred_fallthru
          _
        // Predicated region
        $region17: #{tpu_custom_call.1} parent=11 // pred_check
          %p245 = pneg %p117
        $region18: #{tpu_custom_call.1} parent=11 // pred_check_branch
          %247 = sbr.rel (%p245) target = $region20
        $region19: #{tpu_custom_call.1} parent=11 // pred_region
          _
        $region20: #{tpu_custom_call.1} parent=11 // pred_fallthru
          _
        // Predicated region
        $region21: #{tpu_custom_call.1} parent=11 // pred_check
          %p248 = pneg %p138
        $region22: #{tpu_custom_call.1} parent=11 // pred_check_branch
          %250 = sbr.rel (%p248) target = $region24
        $region23: #{tpu_custom_call.1} parent=11 // pred_region
          %s252 = ssub.s32 512, 512
          %253 = vsyncadd [#allocation6], %s252
          %s254 = sshll.u32 [#allocation7], 4
          %s255 = int_to_ptr.vmem [resolvable:$true] %s254
          %260 = dma.hbm_to_vmem [thread:$0]  %s4, 512, %s255, [#allocation6], 64, 64, 4
        $region24: #{tpu_custom_call.1} parent=11 // pred_fallthru
          _
        // Predicated region
        $region25: #{tpu_custom_call.1} parent=11 // pred_check
          %p261 = pneg %p159
        $region26: #{tpu_custom_call.1} parent=11 // pred_check_branch
          %263 = sbr.rel (%p261) target = $region28
        $region27: #{tpu_custom_call.1} parent=11 // pred_region
          _
        $region28: #{tpu_custom_call.1} parent=11 // pred_fallthru
          _
        // Predicated region
        $region29: #{tpu_custom_call.1} parent=11 // pred_check
          %p264 = pneg %p180
        $region30: #{tpu_custom_call.1} parent=11 // pred_check_branch
          %266 = sbr.rel (%p264) target = $region32
        $region31: #{tpu_custom_call.1} parent=11 // pred_region
          _
        $region32: #{tpu_custom_call.1} parent=11 // pred_fallthru
          _
        // Predicated region
        $region33: #{tpu_custom_call.1} parent=11 // pred_check
          %p267 = pneg %p201
        $region34: #{tpu_custom_call.1} parent=11 // pred_check_branch
          %269 = sbr.rel (%p267) target = $region36
        $region35: #{tpu_custom_call.1} parent=11 // pred_region
          _
        $region36: #{tpu_custom_call.1} parent=11 // pred_fallthru
          _
      $region12: #{tpu_custom_call.1} parent=5 // pred_fallthru
        _
      %p270 = scmp.lt.s32.totalorder %s23, 2
      // Predicated region
      $region37: #{tpu_custom_call.1} parent=5 // pred_check
        %p271 = pneg %p270
      $region38: #{tpu_custom_call.1} parent=5 // pred_check_branch
        %273 = sbr.rel (%p271) target = $region40
      $region39: #{tpu_custom_call.1} parent=5 // pred_region
        // Predicated region
        $region41: #{tpu_custom_call.1} parent=39 // pred_check
          %p274 = pneg %p43
        $region42: #{tpu_custom_call.1} parent=39 // pred_check_branch
          %276 = sbr.rel (%p274) target = $region44
        $region43: #{tpu_custom_call.1} parent=39 // pred_region
          %s277 = sand.u32 %s33, 1
          %s278 = scalar_lea.sflag [#allocation3], %s277
          %s279 = sand.u32 %s33, 1
          %s280 = smul.addr %s279, 16
          %s281 = scalar_lea.vmem [#allocation2], %s280
          %s282 = smul.u32 2, %s23
          %s284 = ssub.s32 256, 256
          %285 = vsyncadd %s278, %s284
          %s286 = smul.addr %s282, 128
          %s287 = scalar_lea.hbm %s0, %s286
          %s288 = sshll.u32 %s281, 4
          %s289 = int_to_ptr.vmem [resolvable:$true] %s288
          %294 = dma.hbm_to_vmem [thread:$0]  %s287, 256, %s289, %s278, 128, 128, 8
        $region44: #{tpu_custom_call.1} parent=39 // pred_fallthru
          _
        // Predicated region
        $region45: #{tpu_custom_call.1} parent=39 // pred_check
          %p295 = pneg %p69
        $region46: #{tpu_custom_call.1} parent=39 // pred_check_branch
          %297 = sbr.rel (%p295) target = $region48
        $region47: #{tpu_custom_call.1} parent=39 // pred_region
          %s298 = sand.u32 %s23, 1
          %s299 = scalar_lea.sflag [#allocation6], %s298
          %s300 = sand.u32 %s59, 1
          %s301 = smul.addr %s300, 8
          %s302 = scalar_lea.vmem [#allocation5], %s301
          %s304 = ssub.s32 128, 128
          %305 = vsyncadd %s299, %s304
          %s306 = smul.addr %s23, 128
          %s307 = scalar_lea.hbm %s1, %s306
          %s309 = sshll.u32 %s302, 4
          %s310 = int_to_ptr.vmem [resolvable:$true] %s309
          %312 = dma.hbm_to_vmem [thread:$0]  %s307, 128, %s310, %s299
        $region48: #{tpu_custom_call.1} parent=39 // pred_fallthru
          _
      $region40: #{tpu_custom_call.1} parent=5 // pred_fallthru
        _
      %p313 = scmp.le.s32.totalorder 1, %s23
      %p314 = scmp.lt.s32.totalorder %s23, 3
      %p315 = pnand %p313, %p314
      %p316 = pneg %p315
      // Predicated region
      $region49: #{tpu_custom_call.1} parent=5 // pred_check
        _
      $region50: #{tpu_custom_call.1} parent=5 // pred_check_branch
        %318 = sbr.rel (%p315) target = $region52
      $region51: #{tpu_custom_call.1} parent=5 // pred_region
        %s319 = ssub.s32 %s23, 1
        %s320 = sand.u32 %s36, 1
        %s321 = scalar_lea.sflag [#allocation3], %s320
        %s322 = sand.u32 %s36, 1
        %s323 = smul.addr %s322, 16
        %s324 = scalar_lea.vmem [#allocation2], %s323
        // Predicated region
        $region53: #{tpu_custom_call.1} parent=51 // pred_check
          %p325 = pneg %p49
        $region54: #{tpu_custom_call.1} parent=51 // pred_check_branch
          %327 = sbr.rel (%p325) target = $region56
        $region55: #{tpu_custom_call.1} parent=51 // pred_region
          %328 = dma.done %s321, 256
        $region56: #{tpu_custom_call.1} parent=51 // pred_fallthru
          _
        %s329 = sand.u32 %s28, 1
        %s330 = scalar_lea.sflag [#allocation6], %s329
        %s331 = sand.u32 %s62, 1
        %s332 = smul.addr %s331, 8
        %s333 = scalar_lea.vmem [#allocation5], %s332
        // Predicated region
        $region57: #{tpu_custom_call.1} parent=51 // pred_check
          %p334 = pneg %p75
        $region58: #{tpu_custom_call.1} parent=51 // pred_check_branch
          %336 = sbr.rel (%p334) target = $region60
        $region59: #{tpu_custom_call.1} parent=51 // pred_region
          %337 = dma.done %s330, 128
        $region60: #{tpu_custom_call.1} parent=51 // pred_fallthru
          _
        // Predicated region
        $region61: #{tpu_custom_call.1} parent=51 // pred_check
          %p338 = pneg %p138
        $region62: #{tpu_custom_call.1} parent=51 // pred_check_branch
          %340 = sbr.rel (%p338) target = $region64
        $region63: #{tpu_custom_call.1} parent=51 // pred_region
          %341 = dma.done [#allocation6], 512
        $region64: #{tpu_custom_call.1} parent=51 // pred_fallthru
          _
        %s342 = sand.u32 %s36, 1
        %s343 = scalar_lea.sflag [#allocation3], %s342
        %s344 = sand.u32 %s36, 1
        %s345 = smul.addr %s344, 16
        %s346 = scalar_lea.vmem [#allocation2], %s345
        %p347 = pneg %p49
        %p348 = pneg %p46
        %s349 = sand.u32 %s28, 1
        %s350 = scalar_lea.sflag [#allocation6], %s349
        %s351 = sand.u32 %s62, 1
        %s352 = smul.addr %s351, 8
        %s353 = scalar_lea.vmem [#allocation5], %s352
        %p354 = pneg %p75
        %p355 = pneg %p72
        %p356 = pneg %p96
        %p357 = pneg %p93
        %p358 = pneg %p117
        %p359 = pneg %p114
        %p360 = pneg %p138
        %p361 = pneg %p135
        %p362 = pneg %p159
        %p363 = pneg %p156
        %p364 = pneg %p180
        %p365 = pneg %p177
        %p366 = pneg %p201
        %p367 = pneg %p198
        %p368 = pneg %p227
        %p369 = pneg %p224
        %s370 = sand.u32 %s214, 1
        %s371 = scalar_lea.sflag [#allocation4], %s370
        %s372 = sand.u32 %s214, 1
        %s373 = smul.addr %s372, 16
        %s374 = scalar_lea.vmem [#allocation8], %s373
        %s375 = smul.u32 2, %s28
        %s376 = smul.u32 2, %s28
        %v378 = vld [vmem:[%s324] sm:$0xff]
        %v379 = vld [vmem:[%s324 + $0x8] sm:$0xff]
        %v380 = vld [vmem:[%s333] sm:$0xff]
        %v381 = vld [vmem:[%s3] sm:$0xff]
        %v382 = vld [vmem:[%s3 + $0x8] sm:$0x7]
        %vm383 = vcmask 261120
        %v384 = vsel %vm383, %v378, 0.0
        %385 = vadd.xlane.f32.xlu0 %v384
        %v386 = vpop.xlane.xlu0 %385
        %v387 = vsel %vm383, %v379, 0.0
        %388 = vadd.xlane.f32.xlu0 %v387
        %v389 = vpop.xlane.xlu0 %388
        %v390 = vrcp.pop 32.0
        %v391 = vmul.f32 %v386, %v390
        %v392 = vmul.f32 %v389, %v390
        %v393 = vsub.f32 %v378, %v391
        %v394 = vsub.f32 %v379, %v392
        %v395 = vmul.f32 %v393, %v393
        %v396 = vmul.f32 %v394, %v394
        %v397 = vsel %vm383, %v395, 0.0
        %398 = vadd.xlane.f32.xlu0 %v397
        %v399 = vpop.xlane.xlu0 %398
        %v400 = vsel %vm383, %v396, 0.0
        %401 = vadd.xlane.f32.xlu0 %v400
        %v402 = vpop.xlane.xlu0 %401
        %v403 = vmul.f32 %v399, %v390
        %v404 = vmul.f32 %v402, %v390
        %v405 = vadd.f32 %v403, 1e-05
        %v406 = vadd.f32 %v404, 1e-05
        %v407 = vrsqrt.pop %v405
        %v408 = vrsqrt.pop %v406
        %v409 = vmul.f32 %v393, %v407
        %v410 = vmul.f32 %v394, %v408
        %v411 = vlaneseq
        %v412 = vshrl.u32 %v411, 7
        %v413 = vsub.s32 0, %v412
        %v414 = vrot.slane %v381, %v413
        %v415 = vmul.f32 %v409, %v414
        %v416 = vmul.f32 %v410, %v414
        %v417 = vlaneseq
        %v418 = vshrl.u32 %v417, 7
        %v419 = vsub.s32 1, %v418
        %v420 = vrot.slane %v381, %v419
        %v421 = vadd.f32 %v415, %v420
        %v422 = vadd.f32 %v416, %v420
        %v423 = vpack.c.bf16 %v422, %v421
        %v424 = vsel %vm383, %v380, 0.0
        %425 = vadd.xlane.f32.xlu0 %v424
        %v426 = vpop.xlane.xlu0 %425
        %v427 = vmul.f32 %v426, %v390
        %v428 = vsub.f32 %v380, %v427
        %v429 = vmul.f32 %v428, %v428
        %v430 = vsel %vm383, %v429, 0.0
        %431 = vadd.xlane.f32.xlu0 %v430
        %v432 = vpop.xlane.xlu0 %431
        %v433 = vmul.f32 %v432, %v390
        %v434 = vadd.f32 %v433, 1e-05
        %v435 = vrsqrt.pop %v434
        %v436 = vmul.f32 %v428, %v435
        %v437 = vlaneseq
        %v438 = vshrl.u32 %v437, 7
        %v439 = vsub.s32 2, %v438
        %v440 = vrot.slane %v381, %v439
        %v441 = vmul.f32 %v436, %v440
        %v442 = vlaneseq
        %v443 = vshrl.u32 %v442, 7
        %v444 = vsub.s32 3, %v443
        %v445 = vrot.slane %v381, %v444
        %v446 = vadd.f32 %v441, %v445
        %v447 = vpack.c.bf16 %v446, %v446
        %v448 = vld [vmem:[%s2] sm:$0xf]
        %v449 = vld [vmem:[%s2 + $0x4] sm:$0xf]
        %v450 = vld [vmem:[%s2 + $0x8] sm:$0xf]
        %v451 = vld [vmem:[%s2 + $0xc] sm:$0xf]
        %v452 = vlaneseq
        %v453 = vshrl.u32 %v452, 7
        %v454 = vsub.s32 4, %v453
        %v455 = vrot.slane %v381, %v454
        %v460 = vunpack.c.l.b16 %v448
        %v461 = vunpack.c.l.b16 %v449
        %v462 = vunpack.c.l.b16 %v450
        %v463 = vunpack.c.l.b16 %v451
        %v464 = vpack.c.b16 %v461, %v460
        %v465 = vpack.c.b16 %v463, %v462
        %v469 = vsel %vm383, %v423, 0
        %471 = vmatprep.subr.bf16.mxu0 0
        %472 = vmatpush1.bf16.msra.mxu0 %v464
        %473 = vmatprep.subr.bf16.mxu0 0
        %474 = vmatpush1.bf16.msra.mxu0 %v465
        %475 = vmatprep.subr.bf16.mxu0 0
        %476 = vmatpush1.bf16.msra.mxu0 0
        %477 = vmatprep.subr.bf16.mxu0 0
        %478 = vmatpush1.bf16.msra.mxu0 0
        %479 = vmatprep.subr.bf16.mxu0 0
        %480 = vmatpush1.bf16.msra.mxu0 0
        %481 = vmatprep.subr.bf16.mxu0 0
        %482 = vmatpush1.bf16.msra.mxu0 0
        %483 = vmatprep.subr.bf16.mxu0 0
        %484 = vmatpush1.bf16.msra.mxu0 0
        %485 = vmatprep.subr.bf16.mxu0 0
        %486 = vmatpush1.bf16.msra.mxu0 0
        %487 = vmatprep.subr.bf16.mxu0 0
        %488 = vmatpush1.bf16.msra.mxu0 0
        %489 = vmatprep.subr.bf16.mxu0 0
        %490 = vmatpush1.bf16.msra.mxu0 0
        %491 = vmatprep.subr.bf16.mxu0 0
        %492 = vmatpush1.bf16.msra.mxu0 0
        %493 = vmatprep.subr.bf16.mxu0 0
        %494 = vmatpush1.bf16.msra.mxu0 0
        %495 = vmatprep.subr.bf16.mxu0 0
        %496 = vmatpush1.bf16.msra.mxu0 0
        %497 = vmatprep.subr.bf16.mxu0 0
        %498 = vmatpush1.bf16.msra.mxu0 0
        %499 = vmatprep.subr.bf16.mxu0 0
        %500 = vmatpush1.bf16.msra.mxu0 0
        %501 = vmatprep.subr.bf16.mxu0 0
        %502 = vmatpush1.bf16.msra.mxu0 0
        %503 = vmatprep.mubr.bf16.mxu0 0
        %504 = vmatmul.mubr.bf16.gmra.mrb[0].mxu0 %v469
        %v505 = vpop.f32.mrb[0].mxu0
        %v506 = vadd.f32 %v455, %v505
        %v507 = vpop.f32.mrb[0].mxu0
        %v508 = vpop.f32.mrb[0].mxu0
        %v509 = vadd.f32 %v455, %v508
        %v510 = vpop.f32.mrb[0].mxu0
        %511 = vdwg.mxu0
        %v512 = vpack.c.bf16 %v509, %v506
        %s513 = scalar_lea.vmem %s2, 16
        %v514 = vld [vmem:[%s513] sm:$0xf]
        %v515 = vld [vmem:[%s513 + $0x4] sm:$0xf]
        %v516 = vld [vmem:[%s513 + $0x8] sm:$0xf]
        %v517 = vld [vmem:[%s513 + $0xc] sm:$0xf]
        %v518 = vlaneseq
        %v519 = vshrl.u32 %v518, 7
        %v520 = vsub.s32 5, %v519
        %v521 = vrot.slane %v381, %v520
        %v526 = vunpack.c.l.b16 %v514
        %v527 = vunpack.c.l.b16 %v515
        %v528 = vunpack.c.l.b16 %v516
        %v529 = vunpack.c.l.b16 %v517
        %v530 = vpack.c.b16 %v527, %v526
        %v531 = vpack.c.b16 %v529, %v528
        %v535 = vsel %vm383, %v447, 0
        %537 = vmatprep.subr.bf16.mxu0 0
        %538 = vmatpush1.bf16.msra.mxu0 %v530
        %539 = vmatprep.subr.bf16.mxu0 0
        %540 = vmatpush1.bf16.msra.mxu0 %v531
        %541 = vmatprep.subr.bf16.mxu0 0
        %542 = vmatpush1.bf16.msra.mxu0 0
        %543 = vmatprep.subr.bf16.mxu0 0
        %544 = vmatpush1.bf16.msra.mxu0 0
        %545 = vmatprep.subr.bf16.mxu0 0
        %546 = vmatpush1.bf16.msra.mxu0 0
        %547 = vmatprep.subr.bf16.mxu0 0
        %548 = vmatpush1.bf16.msra.mxu0 0
        %549 = vmatprep.subr.bf16.mxu0 0
        %550 = vmatpush1.bf16.msra.mxu0 0
        %551 = vmatprep.subr.bf16.mxu0 0
        %552 = vmatpush1.bf16.msra.mxu0 0
        %553 = vmatprep.subr.bf16.mxu0 0
        %554 = vmatpush1.bf16.msra.mxu0 0
        %555 = vmatprep.subr.bf16.mxu0 0
        %556 = vmatpush1.bf16.msra.mxu0 0
        %557 = vmatprep.subr.bf16.mxu0 0
        %558 = vmatpush1.bf16.msra.mxu0 0
        %559 = vmatprep.subr.bf16.mxu0 0
        %560 = vmatpush1.bf16.msra.mxu0 0
        %561 = vmatprep.subr.bf16.mxu0 0
        %562 = vmatpush1.bf16.msra.mxu0 0
        %563 = vmatprep.subr.bf16.mxu0 0
        %564 = vmatpush1.bf16.msra.mxu0 0
        %565 = vmatprep.subr.bf16.mxu0 0
        %566 = vmatpush1.bf16.msra.mxu0 0
        %567 = vmatprep.subr.bf16.mxu0 0
        %568 = vmatpush1.bf16.msra.mxu0 0
        %569 = vmatprep.mubr.bf16.mxu0 0
        %570 = vmatmul.mubr.bf16.gmra.mrb[0].mxu0 %v535
        %v571 = vpop.f32.mrb[0].mxu0
        %v572 = vadd.f32 %v521, %v571
        %v573 = vpop.f32.mrb[0].mxu0
        %v574 = vpop.f32.mrb[0].mxu0
        %v575 = vpop.f32.mrb[0].mxu0
        %576 = vdwg.mxu0
        %v577 = vpack.c.bf16 %v572, %v572
        %s578 = scalar_lea.vmem %s2, 32
        %v579 = vld [vmem:[%s578] sm:$0xf]
        %v580 = vld [vmem:[%s578 + $0x4] sm:$0xf]
        %v581 = vld [vmem:[%s578 + $0x8] sm:$0xf]
        %v582 = vld [vmem:[%s578 + $0xc] sm:$0xf]
        %v583 = vlaneseq
        %v584 = vshrl.u32 %v583, 7
        %v585 = vsub.s32 6, %v584
        %v586 = vrot.slane %v381, %v585
        %v591 = vunpack.c.l.b16 %v579
        %v592 = vunpack.c.l.b16 %v580
        %v593 = vunpack.c.l.b16 %v581
        %v594 = vunpack.c.l.b16 %v582
        %v595 = vpack.c.b16 %v592, %v591
        %v596 = vpack.c.b16 %v594, %v593
        %599 = vmatprep.subr.bf16.mxu0 0
        %600 = vmatpush1.bf16.msra.mxu0 %v595
        %601 = vmatprep.subr.bf16.mxu0 0
        %602 = vmatpush1.bf16.msra.mxu0 %v596
        %603 = vmatprep.subr.bf16.mxu0 0
        %604 = vmatpush1.bf16.msra.mxu0 0
        %605 = vmatprep.subr.bf16.mxu0 0
        %606 = vmatpush1.bf16.msra.mxu0 0
        %607 = vmatprep.subr.bf16.mxu0 0
        %608 = vmatpush1.bf16.msra.mxu0 0
        %609 = vmatprep.subr.bf16.mxu0 0
        %610 = vmatpush1.bf16.msra.mxu0 0
        %611 = vmatprep.subr.bf16.mxu0 0
        %612 = vmatpush1.bf16.msra.mxu0 0
        %613 = vmatprep.subr.bf16.mxu0 0
        %614 = vmatpush1.bf16.msra.mxu0 0
        %615 = vmatprep.subr.bf16.mxu0 0
        %616 = vmatpush1.bf16.msra.mxu0 0
        %617 = vmatprep.subr.bf16.mxu0 0
        %618 = vmatpush1.bf16.msra.mxu0 0
        %619 = vmatprep.subr.bf16.mxu0 0
        %620 = vmatpush1.bf16.msra.mxu0 0
        %621 = vmatprep.subr.bf16.mxu0 0
        %622 = vmatpush1.bf16.msra.mxu0 0
        %623 = vmatprep.subr.bf16.mxu0 0
        %624 = vmatpush1.bf16.msra.mxu0 0
        %625 = vmatprep.subr.bf16.mxu0 0
        %626 = vmatpush1.bf16.msra.mxu0 0
        %627 = vmatprep.subr.bf16.mxu0 0
        %628 = vmatpush1.bf16.msra.mxu0 0
        %629 = vmatprep.subr.bf16.mxu0 0
        %630 = vmatpush1.bf16.msra.mxu0 0
        %631 = vmatprep.mubr.bf16.mxu0 0
        %632 = vmatmul.mubr.bf16.gmra.mrb[0].mxu0 %v535
        %v633 = vpop.f32.mrb[0].mxu0
        %v634 = vadd.f32 %v586, %v633
        %v635 = vpop.f32.mrb[0].mxu0
        %v636 = vpop.f32.mrb[0].mxu0
        %v637 = vpop.f32.mrb[0].mxu0
        %638 = vdwg.mxu0
        %v639 = vpack.c.bf16 %v634, %v634
        %vm640 = vcmask 64512
        %v642 = vsel %vm640, %v512, 0
        %v645 = vsel %vm640, %v577, 0
        %647 = vmatprep.subr.bf16.mxu0 0
        %648 = vmatpush1.bf16.xpose.msra.mxu0 %v645
        %649 = vmatprep.subr.bf16.mxu0 0
        %650 = vmatpush1.bf16.xpose.msra.mxu0 0
        %651 = vmatprep.subr.bf16.mxu0 0
        %652 = vmatpush1.bf16.xpose.msra.mxu0 0
        %653 = vmatprep.subr.bf16.mxu0 0
        %654 = vmatpush1.bf16.xpose.msra.mxu0 0
        %655 = vmatprep.subr.bf16.mxu0 0
        %656 = vmatpush1.bf16.xpose.msra.mxu0 0
        %657 = vmatprep.subr.bf16.mxu0 0
        %658 = vmatpush1.bf16.xpose.msra.mxu0 0
        %659 = vmatprep.subr.bf16.mxu0 0
        %660 = vmatpush1.bf16.xpose.msra.mxu0 0
        %661 = vmatprep.subr.bf16.mxu0 0
        %662 = vmatpush1.bf16.xpose.msra.mxu0 0
        %663 = vmatprep.subr.bf16.mxu0 0
        %664 = vmatpush1.bf16.xpose.msra.mxu0 0
        %665 = vmatprep.subr.bf16.mxu0 0
        %666 = vmatpush1.bf16.xpose.msra.mxu0 0
        %667 = vmatprep.subr.bf16.mxu0 0
        %668 = vmatpush1.bf16.xpose.msra.mxu0 0
        %669 = vmatprep.subr.bf16.mxu0 0
        %670 = vmatpush1.bf16.xpose.msra.mxu0 0
        %671 = vmatprep.subr.bf16.mxu0 0
        %672 = vmatpush1.bf16.xpose.msra.mxu0 0
        %673 = vmatprep.subr.bf16.mxu0 0
        %674 = vmatpush1.bf16.xpose.msra.mxu0 0
        %675 = vmatprep.subr.bf16.mxu0 0
        %676 = vmatpush1.bf16.xpose.msra.mxu0 0
        %677 = vmatprep.subr.bf16.mxu0 0
        %678 = vmatpush1.bf16.xpose.msra.mxu0 0
        %679 = vmatprep.mubr.bf16.mxu0 0
        %680 = vmatmul.mubr.bf16.gmra.mrb[0].mxu0 %v642
        %v681 = vpop.f32.mrb[0].mxu0
        %v682 = vadd.f32 0.0, %v681
        %v683 = vpop.f32.mrb[0].mxu0
        %v684 = vpop.f32.mrb[0].mxu0
        %v685 = vadd.f32 0.0, %v684
        %v686 = vpop.f32.mrb[0].mxu0
        %687 = vdwg.mxu0
        %v688 = vsel %vm640, %v682, -inf
        %689 = vmax.xlane.f32.xlu0 %v688
        %v690 = vpop.xlane.xlu0 %689
        %v691 = vsel %vm640, %v685, -inf
        %692 = vmax.xlane.f32.xlu0 %v691
        %v693 = vpop.xlane.xlu0 %692
        %v694 = vsub.f32 %v682, %v690
        %v695 = vsub.f32 %v685, %v693
        %v696 = vmul.f32 %v694, 1.442695
        %v697 = vpow.pop %v696
        %v698 = vmul.f32 %v695, 1.442695
        %v699 = vpow.pop %v698
        %v700 = vsel %vm640, %v697, 0.0
        %701 = vadd.xlane.f32.xlu0 %v700
        %v702 = vpop.xlane.xlu0 %701
        %v703 = vsel %vm640, %v699, 0.0
        %704 = vadd.xlane.f32.xlu0 %v703
        %v705 = vpop.xlane.xlu0 %704
        %v706 = vrcp.pop %v702
        %v707 = vrcp.pop %v705
        %v708 = vmul.f32 %v697, %v706
        %v709 = vmul.f32 %v699, %v707
        %v710 = vpack.c.bf16 %v709, %v708
        %v712 = vsel %vm640, %v710, 0
        %vm714 = vcmask 1043456
        %v716 = vsel %vm714, %v639, 0
        %718 = vmatprep.subr.bf16.mxu0 0
        %719 = vmatpush1.bf16.msra.mxu0 %v716
        %720 = vmatprep.subr.bf16.mxu0 0
        %721 = vmatpush1.bf16.msra.mxu0 0
        %722 = vmatprep.subr.bf16.mxu0 0
        %723 = vmatpush1.bf16.msra.mxu0 0
        %724 = vmatprep.subr.bf16.mxu0 0
        %725 = vmatpush1.bf16.msra.mxu0 0
        %726 = vmatprep.subr.bf16.mxu0 0
        %727 = vmatpush1.bf16.msra.mxu0 0
        %728 = vmatprep.subr.bf16.mxu0 0
        %729 = vmatpush1.bf16.msra.mxu0 0
        %730 = vmatprep.subr.bf16.mxu0 0
        %731 = vmatpush1.bf16.msra.mxu0 0
        %732 = vmatprep.subr.bf16.mxu0 0
        %733 = vmatpush1.bf16.msra.mxu0 0
        %734 = vmatprep.subr.bf16.mxu0 0
        %735 = vmatpush1.bf16.msra.mxu0 0
        %736 = vmatprep.subr.bf16.mxu0 0
        %737 = vmatpush1.bf16.msra.mxu0 0
        %738 = vmatprep.subr.bf16.mxu0 0
        %739 = vmatpush1.bf16.msra.mxu0 0
        %740 = vmatprep.subr.bf16.mxu0 0
        %741 = vmatpush1.bf16.msra.mxu0 0
        %742 = vmatprep.subr.bf16.mxu0 0
        %743 = vmatpush1.bf16.msra.mxu0 0
        %744 = vmatprep.subr.bf16.mxu0 0
        %745 = vmatpush1.bf16.msra.mxu0 0
        %746 = vmatprep.subr.bf16.mxu0 0
        %747 = vmatpush1.bf16.msra.mxu0 0
        %748 = vmatprep.subr.bf16.mxu0 0
        %749 = vmatpush1.bf16.msra.mxu0 0
        %750 = vmatprep.mubr.bf16.mxu0 0
        %751 = vmatmul.mubr.bf16.gmra.mrb[0].mxu0 %v712
        %v752 = vpop.f32.mrb[0].mxu0
        %v753 = vadd.f32 0.0, %v752
        %v754 = vpop.f32.mrb[0].mxu0
        %v755 = vpop.f32.mrb[0].mxu0
        %v756 = vadd.f32 0.0, %v755
        %v757 = vpop.f32.mrb[0].mxu0
        %758 = vdwg.mxu0
        %v759 = vpack.c.bf16 %v756, %v753
        %761 = vrot.lane.b32.xlu0 %v512, 120
        %v762 = vpop.permute.xlu0 %761
        %764 = vrot.lane.b32.xlu0 %v577, 120
        %v765 = vpop.permute.xlu0 %764
        %v767 = vsel %vm640, %v762, 0
        %v770 = vsel %vm640, %v765, 0
        %772 = vmatprep.subr.bf16.mxu0 0
        %773 = vmatpush1.bf16.xpose.msra.mxu0 %v770
        %774 = vmatprep.subr.bf16.mxu0 0
        %775 = vmatpush1.bf16.xpose.msra.mxu0 0
        %776 = vmatprep.subr.bf16.mxu0 0
        %777 = vmatpush1.bf16.xpose.msra.mxu0 0
        %778 = vmatprep.subr.bf16.mxu0 0
        %779 = vmatpush1.bf16.xpose.msra.mxu0 0
        %780 = vmatprep.subr.bf16.mxu0 0
        %781 = vmatpush1.bf16.xpose.msra.mxu0 0
        %782 = vmatprep.subr.bf16.mxu0 0
        %783 = vmatpush1.bf16.xpose.msra.mxu0 0
        %784 = vmatprep.subr.bf16.mxu0 0
        %785 = vmatpush1.bf16.xpose.msra.mxu0 0
        %786 = vmatprep.subr.bf16.mxu0 0
        %787 = vmatpush1.bf16.xpose.msra.mxu0 0
        %788 = vmatprep.subr.bf16.mxu0 0
        %789 = vmatpush1.bf16.xpose.msra.mxu0 0
        %790 = vmatprep.subr.bf16.mxu0 0
        %791 = vmatpush1.bf16.xpose.msra.mxu0 0
        %792 = vmatprep.subr.bf16.mxu0 0
        %793 = vmatpush1.bf16.xpose.msra.mxu0 0
        %794 = vmatprep.subr.bf16.mxu0 0
        %795 = vmatpush1.bf16.xpose.msra.mxu0 0
        %796 = vmatprep.subr.bf16.mxu0 0
        %797 = vmatpush1.bf16.xpose.msra.mxu0 0
        %798 = vmatprep.subr.bf16.mxu0 0
        %799 = vmatpush1.bf16.xpose.msra.mxu0 0
        %800 = vmatprep.subr.bf16.mxu0 0
        %801 = vmatpush1.bf16.xpose.msra.mxu0 0
        %802 = vmatprep.subr.bf16.mxu0 0
        %803 = vmatpush1.bf16.xpose.msra.mxu0 0
        %804 = vmatprep.mubr.bf16.mxu0 0
        %805 = vmatmul.mubr.bf16.gmra.mrb[0].mxu0 %v767
        %v806 = vpop.f32.mrb[0].mxu0
        %v807 = vadd.f32 0.0, %v806
        %v808 = vpop.f32.mrb[0].mxu0
        %v809 = vpop.f32.mrb[0].mxu0
        %v810 = vadd.f32 0.0, %v809
        %v811 = vpop.f32.mrb[0].mxu0
        %812 = vdwg.mxu0
        %v813 = vsel %vm640, %v807, -inf
        %814 = vmax.xlane.f32.xlu0 %v813
        %v815 = vpop.xlane.xlu0 %814
        %v816 = vsel %vm640, %v810, -inf
        %817 = vmax.xlane.f32.xlu0 %v816
        %v818 = vpop.xlane.xlu0 %817
        %v819 = vsub.f32 %v807, %v815
        %v820 = vsub.f32 %v810, %v818
        %v821 = vmul.f32 %v819, 1.442695
        %v822 = vpow.pop %v821
        %v823 = vmul.f32 %v820, 1.442695
        %v824 = vpow.pop %v823
        %v825 = vsel %vm640, %v822, 0.0
        %826 = vadd.xlane.f32.xlu0 %v825
        %v827 = vpop.xlane.xlu0 %826
        %v828 = vsel %vm640, %v824, 0.0
        %829 = vadd.xlane.f32.xlu0 %v828
        %v830 = vpop.xlane.xlu0 %829
        %v831 = vrcp.pop %v827
        %v832 = vrcp.pop %v830
        %v833 = vmul.f32 %v822, %v831
        %v834 = vmul.f32 %v824, %v832
        %v835 = vpack.c.bf16 %v834, %v833
        %837 = vrot.lane.b32.xlu0 %v639, 120
        %v838 = vpop.permute.xlu0 %837
        %v840 = vsel %vm640, %v835, 0
        %v843 = vsel %vm714, %v838, 0
        %845 = vmatprep.subr.bf16.mxu0 0
        %846 = vmatpush1.bf16.msra.mxu0 %v843
        %847 = vmatprep.subr.bf16.mxu0 0
        %848 = vmatpush1.bf16.msra.mxu0 0
        %849 = vmatprep.subr.bf16.mxu0 0
        %850 = vmatpush1.bf16.msra.mxu0 0
        %851 = vmatprep.subr.bf16.mxu0 0
        %852 = vmatpush1.bf16.msra.mxu0 0
        %853 = vmatprep.subr.bf16.mxu0 0
        %854 = vmatpush1.bf16.msra.mxu0 0
        %855 = vmatprep.subr.bf16.mxu0 0
        %856 = vmatpush1.bf16.msra.mxu0 0
        %857 = vmatprep.subr.bf16.mxu0 0
        %858 = vmatpush1.bf16.msra.mxu0 0
        %859 = vmatprep.subr.bf16.mxu0 0
        %860 = vmatpush1.bf16.msra.mxu0 0
        %861 = vmatprep.subr.bf16.mxu0 0
        %862 = vmatpush1.bf16.msra.mxu0 0
        %863 = vmatprep.subr.bf16.mxu0 0
        %864 = vmatpush1.bf16.msra.mxu0 0
        %865 = vmatprep.subr.bf16.mxu0 0
        %866 = vmatpush1.bf16.msra.mxu0 0
        %867 = vmatprep.subr.bf16.mxu0 0
        %868 = vmatpush1.bf16.msra.mxu0 0
        %869 = vmatprep.subr.bf16.mxu0 0
        %870 = vmatpush1.bf16.msra.mxu0 0
        %871 = vmatprep.subr.bf16.mxu0 0
        %872 = vmatpush1.bf16.msra.mxu0 0
        %873 = vmatprep.subr.bf16.mxu0 0
        %874 = vmatpush1.bf16.msra.mxu0 0
        %875 = vmatprep.subr.bf16.mxu0 0
        %876 = vmatpush1.bf16.msra.mxu0 0
        %877 = vmatprep.mubr.bf16.mxu0 0
        %878 = vmatmul.mubr.bf16.gmra.mrb[0].mxu0 %v840
        %v879 = vpop.f32.mrb[0].mxu0
        %v880 = vadd.f32 0.0, %v879
        %v881 = vpop.f32.mrb[0].mxu0
        %v882 = vpop.f32.mrb[0].mxu0
        %v883 = vadd.f32 0.0, %v882
        %v884 = vpop.f32.mrb[0].mxu0
        %885 = vdwg.mxu0
        %v886 = vpack.c.bf16 %v883, %v880
        %887 = vrot.lane.b32.xlu0 %v512, 112
        %v888 = vpop.permute.xlu0 %887
        %889 = vrot.lane.b32.xlu0 %v577, 112
        %v890 = vpop.permute.xlu0 %889
        %v892 = vsel %vm640, %v888, 0
        %v895 = vsel %vm640, %v890, 0
        %897 = vmatprep.subr.bf16.mxu0 0
        %898 = vmatpush1.bf16.xpose.msra.mxu0 %v895
        %899 = vmatprep.subr.bf16.mxu0 0
        %900 = vmatpush1.bf16.xpose.msra.mxu0 0
        %901 = vmatprep.subr.bf16.mxu0 0
        %902 = vmatpush1.bf16.xpose.msra.mxu0 0
        %903 = vmatprep.subr.bf16.mxu0 0
        %904 = vmatpush1.bf16.xpose.msra.mxu0 0
        %905 = vmatprep.subr.bf16.mxu0 0
        %906 = vmatpush1.bf16.xpose.msra.mxu0 0
        %907 = vmatprep.subr.bf16.mxu0 0
        %908 = vmatpush1.bf16.xpose.msra.mxu0 0
        %909 = vmatprep.subr.bf16.mxu0 0
        %910 = vmatpush1.bf16.xpose.msra.mxu0 0
        %911 = vmatprep.subr.bf16.mxu0 0
        %912 = vmatpush1.bf16.xpose.msra.mxu0 0
        %913 = vmatprep.subr.bf16.mxu0 0
        %914 = vmatpush1.bf16.xpose.msra.mxu0 0
        %915 = vmatprep.subr.bf16.mxu0 0
        %916 = vmatpush1.bf16.xpose.msra.mxu0 0
        %917 = vmatprep.subr.bf16.mxu0 0
        %918 = vmatpush1.bf16.xpose.msra.mxu0 0
        %919 = vmatprep.subr.bf16.mxu0 0
        %920 = vmatpush1.bf16.xpose.msra.mxu0 0
        %921 = vmatprep.subr.bf16.mxu0 0
        %922 = vmatpush1.bf16.xpose.msra.mxu0 0
        %923 = vmatprep.subr.bf16.mxu0 0
        %924 = vmatpush1.bf16.xpose.msra.mxu0 0
        %925 = vmatprep.subr.bf16.mxu0 0
        %926 = vmatpush1.bf16.xpose.msra.mxu0 0
        %927 = vmatprep.subr.bf16.mxu0 0
        %928 = vmatpush1.bf16.xpose.msra.mxu0 0
        %929 = vmatprep.mubr.bf16.mxu0 0
        %930 = vmatmul.mubr.bf16.gmra.mrb[0].mxu0 %v892
        %v931 = vpop.f32.mrb[0].mxu0
        %v932 = vadd.f32 0.0, %v931
        %v933 = vpop.f32.mrb[0].mxu0
        %v934 = vpop.f32.mrb[0].mxu0
        %v935 = vadd.f32 0.0, %v934
        %v936 = vpop.f32.mrb[0].mxu0
        %937 = vdwg.mxu0
        %v938 = vsel %vm640, %v932, -inf
        %939 = vmax.xlane.f32.xlu0 %v938
        %v940 = vpop.xlane.xlu0 %939
        %v941 = vsel %vm640, %v935, -inf
        %942 = vmax.xlane.f32.xlu0 %v941
        %v943 = vpop.xlane.xlu0 %942
        %v944 = vsub.f32 %v932, %v940
        %v945 = vsub.f32 %v935, %v943
        %v946 = vmul.f32 %v944, 1.442695
        %v947 = vpow.pop %v946
        %v948 = vmul.f32 %v945, 1.442695
        %v949 = vpow.pop %v948
        %v950 = vsel %vm640, %v947, 0.0
        %951 = vadd.xlane.f32.xlu0 %v950
        %v952 = vpop.xlane.xlu0 %951
        %v953 = vsel %vm640, %v949, 0.0
        %954 = vadd.xlane.f32.xlu0 %v953
        %v955 = vpop.xlane.xlu0 %954
        %v956 = vrcp.pop %v952
        %v957 = vrcp.pop %v955
        %v958 = vmul.f32 %v947, %v956
        %v959 = vmul.f32 %v949, %v957
        %v960 = vpack.c.bf16 %v959, %v958
        %961 = vrot.lane.b32.xlu0 %v639, 112
        %v962 = vpop.permute.xlu0 %961
        %v964 = vsel %vm640, %v960, 0
        %v967 = vsel %vm714, %v962, 0
        %969 = vmatprep.subr.bf16.mxu0 0
        %970 = vmatpush1.bf16.msra.mxu0 %v967
        %971 = vmatprep.subr.bf16.mxu0 0
        %972 = vmatpush1.bf16.msra.mxu0 0
        %973 = vmatprep.subr.bf16.mxu0 0
        %974 = vmatpush1.bf16.msra.mxu0 0
        %975 = vmatprep.subr.bf16.mxu0 0
        %976 = vmatpush1.bf16.msra.mxu0 0
        %977 = vmatprep.subr.bf16.mxu0 0
        %978 = vmatpush1.bf16.msra.mxu0 0
        %979 = vmatprep.subr.bf16.mxu0 0
        %980 = vmatpush1.bf16.msra.mxu0 0
        %981 = vmatprep.subr.bf16.mxu0 0
        %982 = vmatpush1.bf16.msra.mxu0 0
        %983 = vmatprep.subr.bf16.mxu0 0
        %984 = vmatpush1.bf16.msra.mxu0 0
        %985 = vmatprep.subr.bf16.mxu0 0
        %986 = vmatpush1.bf16.msra.mxu0 0
        %987 = vmatprep.subr.bf16.mxu0 0
        %988 = vmatpush1.bf16.msra.mxu0 0
        %989 = vmatprep.subr.bf16.mxu0 0
        %990 = vmatpush1.bf16.msra.mxu0 0
        %991 = vmatprep.subr.bf16.mxu0 0
        %992 = vmatpush1.bf16.msra.mxu0 0
        %993 = vmatprep.subr.bf16.mxu0 0
        %994 = vmatpush1.bf16.msra.mxu0 0
        %995 = vmatprep.subr.bf16.mxu0 0
        %996 = vmatpush1.bf16.msra.mxu0 0
        %997 = vmatprep.subr.bf16.mxu0 0
        %998 = vmatpush1.bf16.msra.mxu0 0
        %999 = vmatprep.subr.bf16.mxu0 0
        %1000 = vmatpush1.bf16.msra.mxu0 0
        %1001 = vmatprep.mubr.bf16.mxu0 0
        %1002 = vmatmul.mubr.bf16.gmra.mrb[0].mxu0 %v964
        %v1003 = vpop.f32.mrb[0].mxu0
        %v1004 = vadd.f32 0.0, %v1003
        %v1005 = vpop.f32.mrb[0].mxu0
        %v1006 = vpop.f32.mrb[0].mxu0
        %v1007 = vadd.f32 0.0, %v1006
        %v1008 = vpop.f32.mrb[0].mxu0
        %1009 = vdwg.mxu0
        %v1010 = vpack.c.bf16 %v1007, %v1004
        %1011 = vrot.lane.b32.xlu0 %v512, 104
        %v1012 = vpop.permute.xlu0 %1011
        %1013 = vrot.lane.b32.xlu0 %v577, 104
        %v1014 = vpop.permute.xlu0 %1013
        %v1016 = vsel %vm640, %v1012, 0
        %v1019 = vsel %vm640, %v1014, 0
        %1021 = vmatprep.subr.bf16.mxu0 0
        %1022 = vmatpush1.bf16.xpose.msra.mxu0 %v1019
        %1023 = vmatprep.subr.bf16.mxu0 0
        %1024 = vmatpush1.bf16.xpose.msra.mxu0 0
        %1025 = vmatprep.subr.bf16.mxu0 0
        %1026 = vmatpush1.bf16.xpose.msra.mxu0 0
        %1027 = vmatprep.subr.bf16.mxu0 0
        %1028 = vmatpush1.bf16.xpose.msra.mxu0 0
        %1029 = vmatprep.subr.bf16.mxu0 0
        %1030 = vmatpush1.bf16.xpose.msra.mxu0 0
        %1031 = vmatprep.subr.bf16.mxu0 0
        %1032 = vmatpush1.bf16.xpose.msra.mxu0 0
        %1033 = vmatprep.subr.bf16.mxu0 0
        %1034 = vmatpush1.bf16.xpose.msra.mxu0 0
        %1035 = vmatprep.subr.bf16.mxu0 0
        %1036 = vmatpush1.bf16.xpose.msra.mxu0 0
        %1037 = vmatprep.subr.bf16.mxu0 0
        %1038 = vmatpush1.bf16.xpose.msra.mxu0 0
        %1039 = vmatprep.subr.bf16.mxu0 0
        %1040 = vmatpush1.bf16.xpose.msra.mxu0 0
        %1041 = vmatprep.subr.bf16.mxu0 0
        %1042 = vmatpush1.bf16.xpose.msra.mxu0 0
        %1043 = vmatprep.subr.bf16.mxu0 0
        %1044 = vmatpush1.bf16.xpose.msra.mxu0 0
        %1045 = vmatprep.subr.bf16.mxu0 0
        %1046 = vmatpush1.bf16.xpose.msra.mxu0 0
        %1047 = vmatprep.subr.bf16.mxu0 0
        %1048 = vmatpush1.bf16.xpose.msra.mxu0 0
        %1049 = vmatprep.subr.bf16.mxu0 0
        %1050 = vmatpush1.bf16.xpose.msra.mxu0 0
        %1051 = vmatprep.subr.bf16.mxu0 0
        %1052 = vmatpush1.bf16.xpose.msra.mxu0 0
        %1053 = vmatprep.mubr.bf16.mxu0 0
        %1054 = vmatmul.mubr.bf16.gmra.mrb[0].mxu0 %v1016
        %v1055 = vpop.f32.mrb[0].mxu0
        %v1056 = vadd.f32 0.0, %v1055
        %v1057 = vpop.f32.mrb[0].mxu0
        %v1058 = vpop.f32.mrb[0].mxu0
        %v1059 = vadd.f32 0.0, %v1058
        %v1060 = vpop.f32.mrb[0].mxu0
        %1061 = vdwg.mxu0
        %v1062 = vsel %vm640, %v1056, -inf
        %1063 = vmax.xlane.f32.xlu0 %v1062
        %v1064 = vpop.xlane.xlu0 %1063
        %v1065 = vsel %vm640, %v1059, -inf
        %1066 = vmax.xlane.f32.xlu0 %v1065
        %v1067 = vpop.xlane.xlu0 %1066
        %v1068 = vsub.f32 %v1056, %v1064
        %v1069 = vsub.f32 %v1059, %v1067
        %v1070 = vmul.f32 %v1068, 1.442695
        %v1071 = vpow.pop %v1070
        %v1072 = vmul.f32 %v1069, 1.442695
        %v1073 = vpow.pop %v1072
        %v1074 = vsel %vm640, %v1071, 0.0
        %1075 = vadd.xlane.f32.xlu0 %v1074
        %v1076 = vpop.xlane.xlu0 %1075
        %v1077 = vsel %vm640, %v1073, 0.0
        %1078 = vadd.xlane.f32.xlu0 %v1077
        %v1079 = vpop.xlane.xlu0 %1078
        %v1080 = vrcp.pop %v1076
        %v1081 = vrcp.pop %v1079
        %v1082 = vmul.f32 %v1071, %v1080
        %v1083 = vmul.f32 %v1073, %v1081
        %v1084 = vpack.c.bf16 %v1083, %v1082
        %1085 = vrot.lane.b32.xlu0 %v639, 104
        %v1086 = vpop.permute.xlu0 %1085
        %v1088 = vsel %vm640, %v1084, 0
        %v1091 = vsel %vm714, %v1086, 0
        %1093 = vmatprep.subr.bf16.mxu0 0
        %1094 = vmatpush1.bf16.msra.mxu0 %v1091
        %1095 = vmatprep.subr.bf16.mxu0 0
        %1096 = vmatpush1.bf16.msra.mxu0 0
        %1097 = vmatprep.subr.bf16.mxu0 0
        %1098 = vmatpush1.bf16.msra.mxu0 0
        %1099 = vmatprep.subr.bf16.mxu0 0
        %1100 = vmatpush1.bf16.msra.mxu0 0
        %1101 = vmatprep.subr.bf16.mxu0 0
        %1102 = vmatpush1.bf16.msra.mxu0 0
        %1103 = vmatprep.subr.bf16.mxu0 0
        %1104 = vmatpush1.bf16.msra.mxu0 0
        %1105 = vmatprep.subr.bf16.mxu0 0
        %1106 = vmatpush1.bf16.msra.mxu0 0
        %1107 = vmatprep.subr.bf16.mxu0 0
        %1108 = vmatpush1.bf16.msra.mxu0 0
        %1109 = vmatprep.subr.bf16.mxu0 0
        %1110 = vmatpush1.bf16.msra.mxu0 0
        %1111 = vmatprep.subr.bf16.mxu0 0
        %1112 = vmatpush1.bf16.msra.mxu0 0
        %1113 = vmatprep.subr.bf16.mxu0 0
        %1114 = vmatpush1.bf16.msra.mxu0 0
        %1115 = vmatprep.subr.bf16.mxu0 0
        %1116 = vmatpush1.bf16.msra.mxu0 0
        %1117 = vmatprep.subr.bf16.mxu0 0
        %1118 = vmatpush1.bf16.msra.mxu0 0
        %1119 = vmatprep.subr.bf16.mxu0 0
        %1120 = vmatpush1.bf16.msra.mxu0 0
        %1121 = vmatprep.subr.bf16.mxu0 0
        %1122 = vmatpush1.bf16.msra.mxu0 0
        %1123 = vmatprep.subr.bf16.mxu0 0
        %1124 = vmatpush1.bf16.msra.mxu0 0
        %1125 = vmatprep.mubr.bf16.mxu0 0
        %1126 = vmatmul.mubr.bf16.gmra.mrb[0].mxu0 %v1088
        %v1127 = vpop.f32.mrb[0].mxu0
        %v1128 = vadd.f32 0.0, %v1127
        %v1129 = vpop.f32.mrb[0].mxu0
        %v1130 = vpop.f32.mrb[0].mxu0
        %v1131 = vadd.f32 0.0, %v1130
        %v1132 = vpop.f32.mrb[0].mxu0
        %1133 = vdwg.mxu0
        %v1134 = vpack.c.bf16 %v1131, %v1128
        %1136 = vrot.lane.b32.xlu0 %v886, 8
        %v1137 = vpop.permute.xlu0 %1136
        %1139 = vrot.lane.b32.xlu0 %v1010, 16
        %v1140 = vpop.permute.xlu0 %1139
        %1142 = vrot.lane.b32.xlu0 %v1134, 24
        %v1143 = vpop.permute.xlu0 %1142
        %v1146 = vsel %vm640, %v759, %v1137
        %vm1147 = vcmask 130048
        %v1149 = vsel %vm1147, %v1146, %v1140
        %vm1150 = vcmask 195584
        %v1152 = vsel %vm1150, %v1149, %v1143
        %s1153 = scalar_lea.vmem %s2, 48
        %v1154 = vld [vmem:[%s1153] sm:$0xf]
        %v1155 = vld [vmem:[%s1153 + $0x4] sm:$0xf]
        %v1156 = vld [vmem:[%s1153 + $0x8] sm:$0xf]
        %v1157 = vld [vmem:[%s1153 + $0xc] sm:$0xf]
        %v1162 = vunpack.c.l.b16 %v1154
        %v1163 = vunpack.c.l.b16 %v1155
        %v1164 = vunpack.c.l.b16 %v1156
        %v1165 = vunpack.c.l.b16 %v1157
        %v1166 = vpack.c.b16 %v1163, %v1162
        %v1167 = vpack.c.b16 %v1165, %v1164
        %v1170 = vsel %vm383, %v1152, 0
        %1172 = vmatprep.subr.bf16.mxu0 0
        %1173 = vmatpush1.bf16.msra.mxu0 %v1166
        %1174 = vmatprep.subr.bf16.mxu0 0
        %1175 = vmatpush1.bf16.msra.mxu0 %v1167
        %1176 = vmatprep.subr.bf16.mxu0 0
        %1177 = vmatpush1.bf16.msra.mxu0 0
        %1178 = vmatprep.subr.bf16.mxu0 0
        %1179 = vmatpush1.bf16.msra.mxu0 0
        %1180 = vmatprep.subr.bf16.mxu0 0
        %1181 = vmatpush1.bf16.msra.mxu0 0
        %1182 = vmatprep.subr.bf16.mxu0 0
        %1183 = vmatpush1.bf16.msra.mxu0 0
        %1184 = vmatprep.subr.bf16.mxu0 0
        %1185 = vmatpush1.bf16.msra.mxu0 0
        %1186 = vmatprep.subr.bf16.mxu0 0
        %1187 = vmatpush1.bf16.msra.mxu0 0
        %1188 = vmatprep.subr.bf16.mxu0 0
        %1189 = vmatpush1.bf16.msra.mxu0 0
        %1190 = vmatprep.subr.bf16.mxu0 0
        %1191 = vmatpush1.bf16.msra.mxu0 0
        %1192 = vmatprep.subr.bf16.mxu0 0
        %1193 = vmatpush1.bf16.msra.mxu0 0
        %1194 = vmatprep.subr.bf16.mxu0 0
        %1195 = vmatpush1.bf16.msra.mxu0 0
        %1196 = vmatprep.subr.bf16.mxu0 0
        %1197 = vmatpush1.bf16.msra.mxu0 0
        %1198 = vmatprep.subr.bf16.mxu0 0
        %1199 = vmatpush1.bf16.msra.mxu0 0
        %1200 = vmatprep.subr.bf16.mxu0 0
        %1201 = vmatpush1.bf16.msra.mxu0 0
        %1202 = vmatprep.subr.bf16.mxu0 0
        %1203 = vmatpush1.bf16.msra.mxu0 0
        %1204 = vmatprep.mubr.bf16.mxu0 0
        %1205 = vmatmul.mubr.bf16.gmra.mrb[0].mxu0 %v1170
        %v1206 = vpop.f32.mrb[0].mxu0
        %v1207 = vadd.f32 0.0, %v1206
        %v1208 = vpop.f32.mrb[0].mxu0
        %v1209 = vpop.f32.mrb[0].mxu0
        %v1210 = vadd.f32 0.0, %v1209
        %v1211 = vpop.f32.mrb[0].mxu0
        %1212 = vdwg.mxu0
        %v1213 = vadd.f32 %v378, %v1207
        %v1214 = vadd.f32 %v379, %v1210
        %v1215 = vlaneseq
        %v1216 = vshrl.u32 %v1215, 7
        %v1217 = vsub.s32 7, %v1216
        %v1218 = vrot.slane %v381, %v1217
        %v1219 = vadd.f32 %v1213, %v1218
        %v1220 = vadd.f32 %v1214, %v1218
        %v1221 = vsel %vm383, %v1219, 0.0
        %1222 = vadd.xlane.f32.xlu0 %v1221
        %v1223 = vpop.xlane.xlu0 %1222
        %v1224 = vsel %vm383, %v1220, 0.0
        %1225 = vadd.xlane.f32.xlu0 %v1224
        %v1226 = vpop.xlane.xlu0 %1225
        %v1227 = vmul.f32 %v1223, %v390
        %v1228 = vmul.f32 %v1226, %v390
        %v1229 = vsub.f32 %v1219, %v1227
        %v1230 = vsub.f32 %v1220, %v1228
        %v1231 = vmul.f32 %v1229, %v1229
        %v1232 = vmul.f32 %v1230, %v1230
        %v1233 = vsel %vm383, %v1231, 0.0
        %1234 = vadd.xlane.f32.xlu0 %v1233
        %v1235 = vpop.xlane.xlu0 %1234
        %v1236 = vsel %vm383, %v1232, 0.0
        %1237 = vadd.xlane.f32.xlu0 %v1236
        %v1238 = vpop.xlane.xlu0 %1237
        %v1239 = vmul.f32 %v1235, %v390
        %v1240 = vmul.f32 %v1238, %v390
        %v1241 = vadd.f32 %v1239, 1e-05
        %v1242 = vadd.f32 %v1240, 1e-05
        %v1243 = vrsqrt.pop %v1241
        %v1244 = vrsqrt.pop %v1242
        %v1245 = vmul.f32 %v1229, %v1243
        %v1246 = vmul.f32 %v1230, %v1244
        %v1247 = vlaneseq
        %v1248 = vshrl.u32 %v1247, 7
        %v1249 = vsub.s32 0, %v1248
        %v1250 = vrot.slane %v382, %v1249
        %v1251 = vmul.f32 %v1245, %v1250
        %v1252 = vmul.f32 %v1246, %v1250
        %v1253 = vlaneseq
        %v1254 = vshrl.u32 %v1253, 7
        %v1255 = vsub.s32 1, %v1254
        %v1256 = vrot.slane %v382, %v1255
        %v1257 = vadd.f32 %v1251, %v1256
        %v1258 = vadd.f32 %v1252, %v1256
        %v1259 = vpack.c.bf16 %v1258, %v1257
        %v1260 = vld [vmem:[#allocation7] sm:$0xf]
        %v1261 = vld [vmem:[#allocation7 + $0x4] sm:$0xf]
        %v1262 = vld [vmem:[#allocation7 + $0x8] sm:$0xf]
        %v1263 = vld [vmem:[#allocation7 + $0xc] sm:$0xf]
        %v1264 = vld [vmem:[%s6] sm:$0x1]
        %v1266 = vlaneseq
        %v1267 = vshrl.u32 %v1266, 7
        %v1268 = vsub.s32 0, %v1267
        %v1269 = vrot.slane %v1264, %v1268
        %v1275 = vunpack.c.l.b16 %v1260
        %v1276 = vunpack.c.l.b16 %v1261
        %v1277 = vunpack.c.l.b16 %v1262
        %v1278 = vunpack.c.l.b16 %v1263
        %v1279 = vpack.c.b16 %v1276, %v1275
        %v1280 = vpack.c.b16 %v1278, %v1277
        %v1284 = vsel %vm383, %v1259, 0
        %1286 = vmatprep.subr.bf16.mxu0 0
        %1287 = vmatpush1.bf16.msra.mxu0 %v1279
        %1288 = vmatprep.subr.bf16.mxu0 0
        %1289 = vmatpush1.bf16.msra.mxu0 %v1280
        %1290 = vmatprep.subr.bf16.mxu0 0
        %1291 = vmatpush1.bf16.msra.mxu0 0
        %1292 = vmatprep.subr.bf16.mxu0 0
        %1293 = vmatpush1.bf16.msra.mxu0 0
        %1294 = vmatprep.subr.bf16.mxu0 0
        %1295 = vmatpush1.bf16.msra.mxu0 0
        %1296 = vmatprep.subr.bf16.mxu0 0
        %1297 = vmatpush1.bf16.msra.mxu0 0
        %1298 = vmatprep.subr.bf16.mxu0 0
        %1299 = vmatpush1.bf16.msra.mxu0 0
        %1300 = vmatprep.subr.bf16.mxu0 0
        %1301 = vmatpush1.bf16.msra.mxu0 0
        %1302 = vmatprep.subr.bf16.mxu0 0
        %1303 = vmatpush1.bf16.msra.mxu0 0
        %1304 = vmatprep.subr.bf16.mxu0 0
        %1305 = vmatpush1.bf16.msra.mxu0 0
        %1306 = vmatprep.subr.bf16.mxu0 0
        %1307 = vmatpush1.bf16.msra.mxu0 0
        %1308 = vmatprep.subr.bf16.mxu0 0
        %1309 = vmatpush1.bf16.msra.mxu0 0
        %1310 = vmatprep.subr.bf16.mxu0 0
        %1311 = vmatpush1.bf16.msra.mxu0 0
        %1312 = vmatprep.subr.bf16.mxu0 0
        %1313 = vmatpush1.bf16.msra.mxu0 0
        %1314 = vmatprep.subr.bf16.mxu0 0
        %1315 = vmatpush1.bf16.msra.mxu0 0
        %1316 = vmatprep.subr.bf16.mxu0 0
        %1317 = vmatpush1.bf16.msra.mxu0 0
        %1318 = vmatprep.mubr.bf16.mxu0 0
        %1319 = vmatmul.mubr.bf16.gmra.mrb[0].mxu0 %v1284
        %v1320 = vpop.f32.mrb[0].mxu0
        %v1321 = vadd.f32 %v1269, %v1320
        %v1322 = vpop.f32.mrb[0].mxu0
        %v1323 = vpop.f32.mrb[0].mxu0
        %v1324 = vadd.f32 %v1269, %v1323
        %v1325 = vpop.f32.mrb[0].mxu0
        %1326 = vdwg.mxu0
        %v1327 = vmul.f32 %v1321, 0.5
        %v1328 = vmul.f32 %v1324, 0.5
        %v1329 = vmul.f32 %v1321, 0.70710677
        %v1330 = vmul.f32 %v1324, 0.70710677
        %v1331 = vand.u32 2147483647, %v1329
        %v1332 = vand.u32 2147483647, %v1330
        %v1333 = vmul.f32 %v1331, 0.3275911
        %v1334 = vmul.f32 %v1332, 0.3275911
        %v1335 = vadd.f32 %v1333, 1.0
        %v1336 = vadd.f32 %v1334, 1.0
        %v1337 = vrcp.pop %v1335
        %v1338 = vrcp.pop %v1336
        %v1339 = vmul.f32 %v1337, 1.0614054
        %v1340 = vmul.f32 %v1338, 1.0614054
        %v1341 = vadd.f32 %v1339, -1.4531521
        %v1342 = vadd.f32 %v1340, -1.4531521
        %v1343 = vmul.f32 %v1341, %v1337
        %v1344 = vmul.f32 %v1342, %v1338
        %v1345 = vadd.f32 %v1343, 1.4214138
        %v1346 = vadd.f32 %v1344, 1.4214138
        %v1347 = vmul.f32 %v1345, %v1337
        %v1348 = vmul.f32 %v1346, %v1338
        %v1349 = vadd.f32 %v1347, -0.28449672
        %v1350 = vadd.f32 %v1348, -0.28449672
        %v1351 = vmul.f32 %v1349, %v1337
        %v1352 = vmul.f32 %v1350, %v1338
        %v1353 = vadd.f32 %v1351, 0.2548296
        %v1354 = vadd.f32 %v1352, 0.2548296
        %v1355 = vmul.f32 %v1353, %v1337
        %v1356 = vmul.f32 %v1354, %v1338
        %v1357 = vsub.f32 0.0, %v1331
        %v1358 = vsub.f32 0.0, %v1332
        %v1359 = vmul.f32 %v1357, %v1331
        %v1360 = vmul.f32 %v1358, %v1332
        %v1361 = vmul.f32 %v1359, 1.442695
        %v1362 = vpow.pop %v1361
        %v1363 = vmul.f32 %v1360, 1.442695
        %v1364 = vpow.pop %v1363
        %v1365 = vmul.f32 %v1355, %v1362
        %v1366 = vmul.f32 %v1356, %v1364
        %v1367 = vsub.f32 1.0, %v1365
        %v1368 = vsub.f32 1.0, %v1366
        %vm1369 = vcmp.ge.f32.partialorder %v1329, 0.0
        %vm1370 = vcmp.ge.f32.partialorder %v1330, 0.0
        %v1371 = vsub.f32 0.0, %v1367
        %v1372 = vsub.f32 0.0, %v1368
        %v1373 = vsel %vm1369, %v1367, %v1371
        %v1374 = vsel %vm1370, %v1368, %v1372
        %v1375 = vadd.f32 %v1373, 1.0
        %v1376 = vadd.f32 %v1374, 1.0
        %v1377 = vmul.f32 %v1327, %v1375
        %v1378 = vmul.f32 %v1328, %v1376
        %v1379 = vpack.c.bf16 %v1378, %v1377
        %v1380 = vld [vmem:[%s5] sm:$0xf]
        %v1381 = vld [vmem:[%s5 + $0x4] sm:$0xf]
        %v1382 = vld [vmem:[%s5 + $0x8] sm:$0xf]
        %v1383 = vld [vmem:[%s5 + $0xc] sm:$0xf]
        %v1384 = vld [vmem:[%s5 + $0x10] sm:$0xf]
        %v1385 = vld [vmem:[%s5 + $0x14] sm:$0xf]
        %v1386 = vld [vmem:[%s5 + $0x18] sm:$0xf]
        %v1387 = vld [vmem:[%s5 + $0x1c] sm:$0xf]
        %v1388 = vlaneseq
        %v1389 = vshrl.u32 %v1388, 7
        %v1390 = vsub.s32 2, %v1389
        %v1391 = vrot.slane %v382, %v1390
        %v1400 = vunpack.c.l.b16 %v1380
        %v1401 = vunpack.c.l.b16 %v1381
        %v1402 = vunpack.c.l.b16 %v1382
        %v1403 = vunpack.c.l.b16 %v1383
        %v1404 = vunpack.c.l.b16 %v1384
        %v1405 = vunpack.c.l.b16 %v1385
        %v1406 = vunpack.c.l.b16 %v1386
        %v1407 = vunpack.c.l.b16 %v1387
        %v1408 = vpack.c.b16 %v1401, %v1400
        %v1409 = vpack.c.b16 %v1403, %v1402
        %v1410 = vpack.c.b16 %v1405, %v1404
        %v1411 = vpack.c.b16 %v1407, %v1406
        %vm1416 = vcmask 523264
        %v1418 = vsel %vm1416, %v1379, 0
        %1420 = vmatprep.subr.bf16.mxu0 0
        %1421 = vmatpush1.bf16.msra.mxu0 %v1408
        %1422 = vmatprep.subr.bf16.mxu0 0
        %1423 = vmatpush1.bf16.msra.mxu0 %v1409
        %1424 = vmatprep.subr.bf16.mxu0 0
        %1425 = vmatpush1.bf16.msra.mxu0 %v1410
        %1426 = vmatprep.subr.bf16.mxu0 0
        %1427 = vmatpush1.bf16.msra.mxu0 %v1411
        %1428 = vmatprep.subr.bf16.mxu0 0
        %1429 = vmatpush1.bf16.msra.mxu0 0
        %1430 = vmatprep.subr.bf16.mxu0 0
        %1431 = vmatpush1.bf16.msra.mxu0 0
        %1432 = vmatprep.subr.bf16.mxu0 0
        %1433 = vmatpush1.bf16.msra.mxu0 0
        %1434 = vmatprep.subr.bf16.mxu0 0
        %1435 = vmatpush1.bf16.msra.mxu0 0
        %1436 = vmatprep.subr.bf16.mxu0 0
        %1437 = vmatpush1.bf16.msra.mxu0 0
        %1438 = vmatprep.subr.bf16.mxu0 0
        %1439 = vmatpush1.bf16.msra.mxu0 0
        %1440 = vmatprep.subr.bf16.mxu0 0
        %1441 = vmatpush1.bf16.msra.mxu0 0
        %1442 = vmatprep.subr.bf16.mxu0 0
        %1443 = vmatpush1.bf16.msra.mxu0 0
        %1444 = vmatprep.subr.bf16.mxu0 0
        %1445 = vmatpush1.bf16.msra.mxu0 0
        %1446 = vmatprep.subr.bf16.mxu0 0
        %1447 = vmatpush1.bf16.msra.mxu0 0
        %1448 = vmatprep.subr.bf16.mxu0 0
        %1449 = vmatpush1.bf16.msra.mxu0 0
        %1450 = vmatprep.subr.bf16.mxu0 0
        %1451 = vmatpush1.bf16.msra.mxu0 0
        %1452 = vmatprep.mubr.bf16.mxu0 0
        %1453 = vmatmul.mubr.bf16.gmra.mrb[0].mxu0 %v1418
        %v1454 = vpop.f32.mrb[0].mxu0
        %v1455 = vadd.f32 %v1391, %v1454
        %v1456 = vpop.f32.mrb[0].mxu0
        %v1457 = vpop.f32.mrb[0].mxu0
        %v1458 = vadd.f32 %v1391, %v1457
        %v1459 = vpop.f32.mrb[0].mxu0
        %1460 = vdwg.mxu0
        %v1461 = vadd.f32 %v1219, %v1455
        %v1462 = vadd.f32 %v1220, %v1458
        %s1463 = scalar_lea.vmem %s3, 16
        %v1464 = vld [vmem:[%s1463] sm:$0xff]
        %v1465 = vld [vmem:[%s1463 + $0x8] sm:$0x7]
        %v1466 = vsel %vm383, %v1461, 0.0
        %1467 = vadd.xlane.f32.xlu0 %v1466
        %v1468 = vpop.xlane.xlu0 %1467
        %v1469 = vsel %vm383, %v1462, 0.0
        %1470 = vadd.xlane.f32.xlu0 %v1469
        %v1471 = vpop.xlane.xlu0 %1470
        %v1472 = vmul.f32 %v1468, %v390
        %v1473 = vmul.f32 %v1471, %v390
        %v1474 = vsub.f32 %v1461, %v1472
        %v1475 = vsub.f32 %v1462, %v1473
        %v1476 = vmul.f32 %v1474, %v1474
        %v1477 = vmul.f32 %v1475, %v1475
        %v1478 = vsel %vm383, %v1476, 0.0
        %1479 = vadd.xlane.f32.xlu0 %v1478
        %v1480 = vpop.xlane.xlu0 %1479
        %v1481 = vsel %vm383, %v1477, 0.0
        %1482 = vadd.xlane.f32.xlu0 %v1481
        %v1483 = vpop.xlane.xlu0 %1482
        %v1484 = vmul.f32 %v1480, %v390
        %v1485 = vmul.f32 %v1483, %v390
        %v1486 = vadd.f32 %v1484, 1e-05
        %v1487 = vadd.f32 %v1485, 1e-05
        %v1488 = vrsqrt.pop %v1486
        %v1489 = vrsqrt.pop %v1487
        %v1490 = vmul.f32 %v1474, %v1488
        %v1491 = vmul.f32 %v1475, %v1489
        %v1492 = vlaneseq
        %v1493 = vshrl.u32 %v1492, 7
        %v1494 = vsub.s32 0, %v1493
        %v1495 = vrot.slane %v1464, %v1494
        %v1496 = vmul.f32 %v1490, %v1495
        %v1497 = vmul.f32 %v1491, %v1495
        %v1498 = vlaneseq
        %v1499 = vshrl.u32 %v1498, 7
        %v1500 = vsub.s32 1, %v1499
        %v1501 = vrot.slane %v1464, %v1500
        %v1502 = vadd.f32 %v1496, %v1501
        %v1503 = vadd.f32 %v1497, %v1501
        %v1504 = vpack.c.bf16 %v1503, %v1502
        %v1505 = vlaneseq
        %v1506 = vshrl.u32 %v1505, 7
        %v1507 = vsub.s32 2, %v1506
        %v1508 = vrot.slane %v1464, %v1507
        %v1509 = vmul.f32 %v436, %v1508
        %v1510 = vlaneseq
        %v1511 = vshrl.u32 %v1510, 7
        %v1512 = vsub.s32 3, %v1511
        %v1513 = vrot.slane %v1464, %v1512
        %v1514 = vadd.f32 %v1509, %v1513
        %v1515 = vpack.c.bf16 %v1514, %v1514
        %s1516 = scalar_lea.vmem %s2, 64
        %v1517 = vld [vmem:[%s1516] sm:$0xf]
        %v1518 = vld [vmem:[%s1516 + $0x4] sm:$0xf]
        %v1519 = vld [vmem:[%s1516 + $0x8] sm:$0xf]
        %v1520 = vld [vmem:[%s1516 + $0xc] sm:$0xf]
        %v1521 = vlaneseq
        %v1522 = vshrl.u32 %v1521, 7
        %v1523 = vsub.s32 4, %v1522
        %v1524 = vrot.slane %v1464, %v1523
        %v1529 = vunpack.c.l.b16 %v1517
        %v1530 = vunpack.c.l.b16 %v1518
        %v1531 = vunpack.c.l.b16 %v1519
        %v1532 = vunpack.c.l.b16 %v1520
        %v1533 = vpack.c.b16 %v1530, %v1529
        %v1534 = vpack.c.b16 %v1532, %v1531
        %v1538 = vsel %vm383, %v1504, 0
        %1540 = vmatprep.subr.bf16.mxu0 0
        %1541 = vmatpush1.bf16.msra.mxu0 %v1533
        %1542 = vmatprep.subr.bf16.mxu0 0
        %1543 = vmatpush1.bf16.msra.mxu0 %v1534
        %1544 = vmatprep.subr.bf16.mxu0 0
        %1545 = vmatpush1.bf16.msra.mxu0 0
        %1546 = vmatprep.subr.bf16.mxu0 0
        %1547 = vmatpush1.bf16.msra.mxu0 0
        %1548 = vmatprep.subr.bf16.mxu0 0
        %1549 = vmatpush1.bf16.msra.mxu0 0
        %1550 = vmatprep.subr.bf16.mxu0 0
        %1551 = vmatpush1.bf16.msra.mxu0 0
        %1552 = vmatprep.subr.bf16.mxu0 0
        %1553 = vmatpush1.bf16.msra.mxu0 0
        %1554 = vmatprep.subr.bf16.mxu0 0
        %1555 = vmatpush1.bf16.msra.mxu0 0
        %1556 = vmatprep.subr.bf16.mxu0 0
        %1557 = vmatpush1.bf16.msra.mxu0 0
        %1558 = vmatprep.subr.bf16.mxu0 0
        %1559 = vmatpush1.bf16.msra.mxu0 0
        %1560 = vmatprep.subr.bf16.mxu0 0
        %1561 = vmatpush1.bf16.msra.mxu0 0
        %1562 = vmatprep.subr.bf16.mxu0 0
        %1563 = vmatpush1.bf16.msra.mxu0 0
        %1564 = vmatprep.subr.bf16.mxu0 0
        %1565 = vmatpush1.bf16.msra.mxu0 0
        %1566 = vmatprep.subr.bf16.mxu0 0
        %1567 = vmatpush1.bf16.msra.mxu0 0
        %1568 = vmatprep.subr.bf16.mxu0 0
        %1569 = vmatpush1.bf16.msra.mxu0 0
        %1570 = vmatprep.subr.bf16.mxu0 0
        %1571 = vmatpush1.bf16.msra.mxu0 0
        %1572 = vmatprep.mubr.bf16.mxu0 0
        %1573 = vmatmul.mubr.bf16.gmra.mrb[0].mxu0 %v1538
        %v1574 = vpop.f32.mrb[0].mxu0
        %v1575 = vadd.f32 %v1524, %v1574
        %v1576 = vpop.f32.mrb[0].mxu0
        %v1577 = vpop.f32.mrb[0].mxu0
        %v1578 = vadd.f32 %v1524, %v1577
        %v1579 = vpop.f32.mrb[0].mxu0
        %1580 = vdwg.mxu0
        %v1581 = vpack.c.bf16 %v1578, %v1575
        %s1582 = scalar_lea.vmem %s2, 80
        %v1583 = vld [vmem:[%s1582] sm:$0xf]
        %v1584 = vld [vmem:[%s1582 + $0x4] sm:$0xf]
        %v1585 = vld [vmem:[%s1582 + $0x8] sm:$0xf]
        %v1586 = vld [vmem:[%s1582 + $0xc] sm:$0xf]
        %v1587 = vlaneseq
        %v1588 = vshrl.u32 %v1587, 7
        %v1589 = vsub.s32 5, %v1588
        %v1590 = vrot.slane %v1464, %v1589
        %v1595 = vunpack.c.l.b16 %v1583
        %v1596 = vunpack.c.l.b16 %v1584
        %v1597 = vunpack.c.l.b16 %v1585
        %v1598 = vunpack.c.l.b16 %v1586
        %v1599 = vpack.c.b16 %v1596, %v1595
        %v1600 = vpack.c.b16 %v1598, %v1597
        %v1604 = vsel %vm383, %v1515, 0
        %1606 = vmatprep.subr.bf16.mxu0 0
        %1607 = vmatpush1.bf16.msra.mxu0 %v1599
        %1608 = vmatprep.subr.bf16.mxu0 0
        %1609 = vmatpush1.bf16.msra.mxu0 %v1600
        %1610 = vmatprep.subr.bf16.mxu0 0
        %1611 = vmatpush1.bf16.msra.mxu0 0
        %1612 = vmatprep.subr.bf16.mxu0 0
        %1613 = vmatpush1.bf16.msra.mxu0 0
        %1614 = vmatprep.subr.bf16.mxu0 0
        %1615 = vmatpush1.bf16.msra.mxu0 0
        %1616 = vmatprep.subr.bf16.mxu0 0
        %1617 = vmatpush1.bf16.msra.mxu0 0
        %1618 = vmatprep.subr.bf16.mxu0 0
        %1619 = vmatpush1.bf16.msra.mxu0 0
        %1620 = vmatprep.subr.bf16.mxu0 0
        %1621 = vmatpush1.bf16.msra.mxu0 0
        %1622 = vmatprep.subr.bf16.mxu0 0
        %1623 = vmatpush1.bf16.msra.mxu0 0
        %1624 = vmatprep.subr.bf16.mxu0 0
        %1625 = vmatpush1.bf16.msra.mxu0 0
        %1626 = vmatprep.subr.bf16.mxu0 0
        %1627 = vmatpush1.bf16.msra.mxu0 0
        %1628 = vmatprep.subr.bf16.mxu0 0
        %1629 = vmatpush1.bf16.msra.mxu0 0
        %1630 = vmatprep.subr.bf16.mxu0 0
        %1631 = vmatpush1.bf16.msra.mxu0 0
        %1632 = vmatprep.subr.bf16.mxu0 0
        %1633 = vmatpush1.bf16.msra.mxu0 0
        %1634 = vmatprep.subr.bf16.mxu0 0
        %1635 = vmatpush1.bf16.msra.mxu0 0
        %1636 = vmatprep.subr.bf16.mxu0 0
        %1637 = vmatpush1.bf16.msra.mxu0 0
        %1638 = vmatprep.mubr.bf16.mxu0 0
        %1639 = vmatmul.mubr.bf16.gmra.mrb[0].mxu0 %v1604
        %v1640 = vpop.f32.mrb[0].mxu0
        %v1641 = vadd.f32 %v1590, %v1640
        %v1642 = vpop.f32.mrb[0].mxu0
        %v1643 = vpop.f32.mrb[0].mxu0
        %v1644 = vpop.f32.mrb[0].mxu0
        %1645 = vdwg.mxu0
        %v1646 = vpack.c.bf16 %v1641, %v1641
        %s1647 = scalar_lea.vmem %s2, 96
        %v1648 = vld [vmem:[%s1647] sm:$0xf]
        %v1649 = vld [vmem:[%s1647 + $0x4] sm:$0xf]
        %v1650 = vld [vmem:[%s1647 + $0x8] sm:$0xf]
        %v1651 = vld [vmem:[%s1647 + $0xc] sm:$0xf]
        %v1652 = vlaneseq
        %v1653 = vshrl.u32 %v1652, 7
        %v1654 = vsub.s32 6, %v1653
        %v1655 = vrot.slane %v1464, %v1654
        %v1660 = vunpack.c.l.b16 %v1648
        %v1661 = vunpack.c.l.b16 %v1649
        %v1662 = vunpack.c.l.b16 %v1650
        %v1663 = vunpack.c.l.b16 %v1651
        %v1664 = vpack.c.b16 %v1661, %v1660
        %v1665 = vpack.c.b16 %v1663, %v1662
        %1668 = vmatprep.subr.bf16.mxu0 0
        %1669 = vmatpush1.bf16.msra.mxu0 %v1664
        %1670 = vmatprep.subr.bf16.mxu0 0
        %1671 = vmatpush1.bf16.msra.mxu0 %v1665
        %1672 = vmatprep.subr.bf16.mxu0 0
        %1673 = vmatpush1.bf16.msra.mxu0 0
        %1674 = vmatprep.subr.bf16.mxu0 0
        %1675 = vmatpush1.bf16.msra.mxu0 0
        %1676 = vmatprep.subr.bf16.mxu0 0
        %1677 = vmatpush1.bf16.msra.mxu0 0
        %1678 = vmatprep.subr.bf16.mxu0 0
        %1679 = vmatpush1.bf16.msra.mxu0 0
        %1680 = vmatprep.subr.bf16.mxu0 0
        %1681 = vmatpush1.bf16.msra.mxu0 0
        %1682 = vmatprep.subr.bf16.mxu0 0
        %1683 = vmatpush1.bf16.msra.mxu0 0
        %1684 = vmatprep.subr.bf16.mxu0 0
        %1685 = vmatpush1.bf16.msra.mxu0 0
        %1686 = vmatprep.subr.bf16.mxu0 0
        %1687 = vmatpush1.bf16.msra.mxu0 0
        %1688 = vmatprep.subr.bf16.mxu0 0
        %1689 = vmatpush1.bf16.msra.mxu0 0
        %1690 = vmatprep.subr.bf16.mxu0 0
        %1691 = vmatpush1.bf16.msra.mxu0 0
        %1692 = vmatprep.subr.bf16.mxu0 0
        %1693 = vmatpush1.bf16.msra.mxu0 0
        %1694 = vmatprep.subr.bf16.mxu0 0
        %1695 = vmatpush1.bf16.msra.mxu0 0
        %1696 = vmatprep.subr.bf16.mxu0 0
        %1697 = vmatpush1.bf16.msra.mxu0 0
        %1698 = vmatprep.subr.bf16.mxu0 0
        %1699 = vmatpush1.bf16.msra.mxu0 0
        %1700 = vmatprep.mubr.bf16.mxu0 0
        %1701 = vmatmul.mubr.bf16.gmra.mrb[0].mxu0 %v1604
        %v1702 = vpop.f32.mrb[0].mxu0
        %v1703 = vadd.f32 %v1655, %v1702
        %v1704 = vpop.f32.mrb[0].mxu0
        %v1705 = vpop.f32.mrb[0].mxu0
        %v1706 = vpop.f32.mrb[0].mxu0
        %1707 = vdwg.mxu0
        %v1708 = vpack.c.bf16 %v1703, %v1703
        %v1710 = vsel %vm640, %v1581, 0
        %v1713 = vsel %vm640, %v1646, 0
        %1715 = vmatprep.subr.bf16.mxu0 0
        %1716 = vmatpush1.bf16.xpose.msra.mxu0 %v1713
        %1717 = vmatprep.subr.bf16.mxu0 0
        %1718 = vmatpush1.bf16.xpose.msra.mxu0 0
        %1719 = vmatprep.subr.bf16.mxu0 0
        %1720 = vmatpush1.bf16.xpose.msra.mxu0 0
        %1721 = vmatprep.subr.bf16.mxu0 0
        %1722 = vmatpush1.bf16.xpose.msra.mxu0 0
        %1723 = vmatprep.subr.bf16.mxu0 0
        %1724 = vmatpush1.bf16.xpose.msra.mxu0 0
        %1725 = vmatprep.subr.bf16.mxu0 0
        %1726 = vmatpush1.bf16.xpose.msra.mxu0 0
        %1727 = vmatprep.subr.bf16.mxu0 0
        %1728 = vmatpush1.bf16.xpose.msra.mxu0 0
        %1729 = vmatprep.subr.bf16.mxu0 0
        %1730 = vmatpush1.bf16.xpose.msra.mxu0 0
        %1731 = vmatprep.subr.bf16.mxu0 0
        %1732 = vmatpush1.bf16.xpose.msra.mxu0 0
        %1733 = vmatprep.subr.bf16.mxu0 0
        %1734 = vmatpush1.bf16.xpose.msra.mxu0 0
        %1735 = vmatprep.subr.bf16.mxu0 0
        %1736 = vmatpush1.bf16.xpose.msra.mxu0 0
        %1737 = vmatprep.subr.bf16.mxu0 0
        %1738 = vmatpush1.bf16.xpose.msra.mxu0 0
        %1739 = vmatprep.subr.bf16.mxu0 0
        %1740 = vmatpush1.bf16.xpose.msra.mxu0 0
        %1741 = vmatprep.subr.bf16.mxu0 0
        %1742 = vmatpush1.bf16.xpose.msra.mxu0 0
        %1743 = vmatprep.subr.bf16.mxu0 0
        %1744 = vmatpush1.bf16.xpose.msra.mxu0 0
        %1745 = vmatprep.subr.bf16.mxu0 0
        %1746 = vmatpush1.bf16.xpose.msra.mxu0 0
        %1747 = vmatprep.mubr.bf16.mxu0 0
        %1748 = vmatmul.mubr.bf16.gmra.mrb[0].mxu0 %v1710
        %v1749 = vpop.f32.mrb[0].mxu0
        %v1750 = vadd.f32 0.0, %v1749
        %v1751 = vpop.f32.mrb[0].mxu0
        %v1752 = vpop.f32.mrb[0].mxu0
        %v1753 = vadd.f32 0.0, %v1752
        %v1754 = vpop.f32.mrb[0].mxu0
        %1755 = vdwg.mxu0
        %v1756 = vsel %vm640, %v1750, -inf
        %1757 = vmax.xlane.f32.xlu0 %v1756
        %v1758 = vpop.xlane.xlu0 %1757
        %v1759 = vsel %vm640, %v1753, -inf
        %1760 = vmax.xlane.f32.xlu0 %v1759
        %v1761 = vpop.xlane.xlu0 %1760
        %v1762 = vsub.f32 %v1750, %v1758
        %v1763 = vsub.f32 %v1753, %v1761
        %v1764 = vmul.f32 %v1762, 1.442695
        %v1765 = vpow.pop %v1764
        %v1766 = vmul.f32 %v1763, 1.442695
        %v1767 = vpow.pop %v1766
        %v1768 = vsel %vm640, %v1765, 0.0
        %1769 = vadd.xlane.f32.xlu0 %v1768
        %v1770 = vpop.xlane.xlu0 %1769
        %v1771 = vsel %vm640, %v1767, 0.0
        %1772 = vadd.xlane.f32.xlu0 %v1771
        %v1773 = vpop.xlane.xlu0 %1772
        %v1774 = vrcp.pop %v1770
        %v1775 = vrcp.pop %v1773
        %v1776 = vmul.f32 %v1765, %v1774
        %v1777 = vmul.f32 %v1767, %v1775
        %v1778 = vpack.c.bf16 %v1777, %v1776
        %v1780 = vsel %vm640, %v1778, 0
        %v1783 = vsel %vm714, %v1708, 0
        %1785 = vmatprep.subr.bf16.mxu0 0
        %1786 = vmatpush1.bf16.msra.mxu0 %v1783
        %1787 = vmatprep.subr.bf16.mxu0 0
        %1788 = vmatpush1.bf16.msra.mxu0 0
        %1789 = vmatprep.subr.bf16.mxu0 0
        %1790 = vmatpush1.bf16.msra.mxu0 0
        %1791 = vmatprep.subr.bf16.mxu0 0
        %1792 = vmatpush1.bf16.msra.mxu0 0
        %1793 = vmatprep.subr.bf16.mxu0 0
        %1794 = vmatpush1.bf16.msra.mxu0 0
        %1795 = vmatprep.subr.bf16.mxu0 0
        %1796 = vmatpush1.bf16.msra.mxu0 0
        %1797 = vmatprep.subr.bf16.mxu0 0
        %1798 = vmatpush1.bf16.msra.mxu0 0
        %1799 = vmatprep.subr.bf16.mxu0 0
        %1800 = vmatpush1.bf16.msra.mxu0 0
        %1801 = vmatprep.subr.bf16.mxu0 0
        %1802 = vmatpush1.bf16.msra.mxu0 0
        %1803 = vmatprep.subr.bf16.mxu0 0
        %1804 = vmatpush1.bf16.msra.mxu0 0
        %1805 = vmatprep.subr.bf16.mxu0 0
        %1806 = vmatpush1.bf16.msra.mxu0 0
        %1807 = vmatprep.subr.bf16.mxu0 0
        %1808 = vmatpush1.bf16.msra.mxu0 0
        %1809 = vmatprep.subr.bf16.mxu0 0
        %1810 = vmatpush1.bf16.msra.mxu0 0
        %1811 = vmatprep.subr.bf16.mxu0 0
        %1812 = vmatpush1.bf16.msra.mxu0 0
        %1813 = vmatprep.subr.bf16.mxu0 0
        %1814 = vmatpush1.bf16.msra.mxu0 0
        %1815 = vmatprep.subr.bf16.mxu0 0
        %1816 = vmatpush1.bf16.msra.mxu0 0
        %1817 = vmatprep.mubr.bf16.mxu0 0
        %1818 = vmatmul.mubr.bf16.gmra.mrb[0].mxu0 %v1780
        %v1819 = vpop.f32.mrb[0].mxu0
        %v1820 = vadd.f32 0.0, %v1819
        %v1821 = vpop.f32.mrb[0].mxu0
        %v1822 = vpop.f32.mrb[0].mxu0
        %v1823 = vadd.f32 0.0, %v1822
        %v1824 = vpop.f32.mrb[0].mxu0
        %1825 = vdwg.mxu0
        %v1826 = vpack.c.bf16 %v1823, %v1820
        %1828 = vrot.lane.b32.xlu0 %v1581, 120
        %v1829 = vpop.permute.xlu0 %1828
        %1831 = vrot.lane.b32.xlu0 %v1646, 120
        %v1832 = vpop.permute.xlu0 %1831
        %v1834 = vsel %vm640, %v1829, 0
        %v1837 = vsel %vm640, %v1832, 0
        %1839 = vmatprep.subr.bf16.mxu0 0
        %1840 = vmatpush1.bf16.xpose.msra.mxu0 %v1837
        %1841 = vmatprep.subr.bf16.mxu0 0
        %1842 = vmatpush1.bf16.xpose.msra.mxu0 0
        %1843 = vmatprep.subr.bf16.mxu0 0
        %1844 = vmatpush1.bf16.xpose.msra.mxu0 0
        %1845 = vmatprep.subr.bf16.mxu0 0
        %1846 = vmatpush1.bf16.xpose.msra.mxu0 0
        %1847 = vmatprep.subr.bf16.mxu0 0
        %1848 = vmatpush1.bf16.xpose.msra.mxu0 0
        %1849 = vmatprep.subr.bf16.mxu0 0
        %1850 = vmatpush1.bf16.xpose.msra.mxu0 0
        %1851 = vmatprep.subr.bf16.mxu0 0
        %1852 = vmatpush1.bf16.xpose.msra.mxu0 0
        %1853 = vmatprep.subr.bf16.mxu0 0
        %1854 = vmatpush1.bf16.xpose.msra.mxu0 0
        %1855 = vmatprep.subr.bf16.mxu0 0
        %1856 = vmatpush1.bf16.xpose.msra.mxu0 0
        %1857 = vmatprep.subr.bf16.mxu0 0
        %1858 = vmatpush1.bf16.xpose.msra.mxu0 0
        %1859 = vmatprep.subr.bf16.mxu0 0
        %1860 = vmatpush1.bf16.xpose.msra.mxu0 0
        %1861 = vmatprep.subr.bf16.mxu0 0
        %1862 = vmatpush1.bf16.xpose.msra.mxu0 0
        %1863 = vmatprep.subr.bf16.mxu0 0
        %1864 = vmatpush1.bf16.xpose.msra.mxu0 0
        %1865 = vmatprep.subr.bf16.mxu0 0
        %1866 = vmatpush1.bf16.xpose.msra.mxu0 0
        %1867 = vmatprep.subr.bf16.mxu0 0
        %1868 = vmatpush1.bf16.xpose.msra.mxu0 0
        %1869 = vmatprep.subr.bf16.mxu0 0
        %1870 = vmatpush1.bf16.xpose.msra.mxu0 0
        %1871 = vmatprep.mubr.bf16.mxu0 0
        %1872 = vmatmul.mubr.bf16.gmra.mrb[0].mxu0 %v1834
        %v1873 = vpop.f32.mrb[0].mxu0
        %v1874 = vadd.f32 0.0, %v1873
        %v1875 = vpop.f32.mrb[0].mxu0
        %v1876 = vpop.f32.mrb[0].mxu0
        %v1877 = vadd.f32 0.0, %v1876
        %v1878 = vpop.f32.mrb[0].mxu0
        %1879 = vdwg.mxu0
        %v1880 = vsel %vm640, %v1874, -inf
        %1881 = vmax.xlane.f32.xlu0 %v1880
        %v1882 = vpop.xlane.xlu0 %1881
        %v1883 = vsel %vm640, %v1877, -inf
        %1884 = vmax.xlane.f32.xlu0 %v1883
        %v1885 = vpop.xlane.xlu0 %1884
        %v1886 = vsub.f32 %v1874, %v1882
        %v1887 = vsub.f32 %v1877, %v1885
        %v1888 = vmul.f32 %v1886, 1.442695
        %v1889 = vpow.pop %v1888
        %v1890 = vmul.f32 %v1887, 1.442695
        %v1891 = vpow.pop %v1890
        %v1892 = vsel %vm640, %v1889, 0.0
        %1893 = vadd.xlane.f32.xlu0 %v1892
        %v1894 = vpop.xlane.xlu0 %1893
        %v1895 = vsel %vm640, %v1891, 0.0
        %1896 = vadd.xlane.f32.xlu0 %v1895
        %v1897 = vpop.xlane.xlu0 %1896
        %v1898 = vrcp.pop %v1894
        %v1899 = vrcp.pop %v1897
        %v1900 = vmul.f32 %v1889, %v1898
        %v1901 = vmul.f32 %v1891, %v1899
        %v1902 = vpack.c.bf16 %v1901, %v1900
        %1904 = vrot.lane.b32.xlu0 %v1708, 120
        %v1905 = vpop.permute.xlu0 %1904
        %v1907 = vsel %vm640, %v1902, 0
        %v1910 = vsel %vm714, %v1905, 0
        %1912 = vmatprep.subr.bf16.mxu0 0
        %1913 = vmatpush1.bf16.msra.mxu0 %v1910
        %1914 = vmatprep.subr.bf16.mxu0 0
        %1915 = vmatpush1.bf16.msra.mxu0 0
        %1916 = vmatprep.subr.bf16.mxu0 0
        %1917 = vmatpush1.bf16.msra.mxu0 0
        %1918 = vmatprep.subr.bf16.mxu0 0
        %1919 = vmatpush1.bf16.msra.mxu0 0
        %1920 = vmatprep.subr.bf16.mxu0 0
        %1921 = vmatpush1.bf16.msra.mxu0 0
        %1922 = vmatprep.subr.bf16.mxu0 0
        %1923 = vmatpush1.bf16.msra.mxu0 0
        %1924 = vmatprep.subr.bf16.mxu0 0
        %1925 = vmatpush1.bf16.msra.mxu0 0
        %1926 = vmatprep.subr.bf16.mxu0 0
        %1927 = vmatpush1.bf16.msra.mxu0 0
        %1928 = vmatprep.subr.bf16.mxu0 0
        %1929 = vmatpush1.bf16.msra.mxu0 0
        %1930 = vmatprep.subr.bf16.mxu0 0
        %1931 = vmatpush1.bf16.msra.mxu0 0
        %1932 = vmatprep.subr.bf16.mxu0 0
        %1933 = vmatpush1.bf16.msra.mxu0 0
        %1934 = vmatprep.subr.bf16.mxu0 0
        %1935 = vmatpush1.bf16.msra.mxu0 0
        %1936 = vmatprep.subr.bf16.mxu0 0
        %1937 = vmatpush1.bf16.msra.mxu0 0
        %1938 = vmatprep.subr.bf16.mxu0 0
        %1939 = vmatpush1.bf16.msra.mxu0 0
        %1940 = vmatprep.subr.bf16.mxu0 0
        %1941 = vmatpush1.bf16.msra.mxu0 0
        %1942 = vmatprep.subr.bf16.mxu0 0
        %1943 = vmatpush1.bf16.msra.mxu0 0
        %1944 = vmatprep.mubr.bf16.mxu0 0
        %1945 = vmatmul.mubr.bf16.gmra.mrb[0].mxu0 %v1907
        %v1946 = vpop.f32.mrb[0].mxu0
        %v1947 = vadd.f32 0.0, %v1946
        %v1948 = vpop.f32.mrb[0].mxu0
        %v1949 = vpop.f32.mrb[0].mxu0
        %v1950 = vadd.f32 0.0, %v1949
        %v1951 = vpop.f32.mrb[0].mxu0
        %1952 = vdwg.mxu0
        %v1953 = vpack.c.bf16 %v1950, %v1947
        %1954 = vrot.lane.b32.xlu0 %v1581, 112
        %v1955 = vpop.permute.xlu0 %1954
        %1956 = vrot.lane.b32.xlu0 %v1646, 112
        %v1957 = vpop.permute.xlu0 %1956
        %v1959 = vsel %vm640, %v1955, 0
        %v1962 = vsel %vm640, %v1957, 0
        %1964 = vmatprep.subr.bf16.mxu0 0
        %1965 = vmatpush1.bf16.xpose.msra.mxu0 %v1962
        %1966 = vmatprep.subr.bf16.mxu0 0
        %1967 = vmatpush1.bf16.xpose.msra.mxu0 0
        %1968 = vmatprep.subr.bf16.mxu0 0
        %1969 = vmatpush1.bf16.xpose.msra.mxu0 0
        %1970 = vmatprep.subr.bf16.mxu0 0
        %1971 = vmatpush1.bf16.xpose.msra.mxu0 0
        %1972 = vmatprep.subr.bf16.mxu0 0
        %1973 = vmatpush1.bf16.xpose.msra.mxu0 0
        %1974 = vmatprep.subr.bf16.mxu0 0
        %1975 = vmatpush1.bf16.xpose.msra.mxu0 0
        %1976 = vmatprep.subr.bf16.mxu0 0
        %1977 = vmatpush1.bf16.xpose.msra.mxu0 0
        %1978 = vmatprep.subr.bf16.mxu0 0
        %1979 = vmatpush1.bf16.xpose.msra.mxu0 0
        %1980 = vmatprep.subr.bf16.mxu0 0
        %1981 = vmatpush1.bf16.xpose.msra.mxu0 0
        %1982 = vmatprep.subr.bf16.mxu0 0
        %1983 = vmatpush1.bf16.xpose.msra.mxu0 0
        %1984 = vmatprep.subr.bf16.mxu0 0
        %1985 = vmatpush1.bf16.xpose.msra.mxu0 0
        %1986 = vmatprep.subr.bf16.mxu0 0
        %1987 = vmatpush1.bf16.xpose.msra.mxu0 0
        %1988 = vmatprep.subr.bf16.mxu0 0
        %1989 = vmatpush1.bf16.xpose.msra.mxu0 0
        %1990 = vmatprep.subr.bf16.mxu0 0
        %1991 = vmatpush1.bf16.xpose.msra.mxu0 0
        %1992 = vmatprep.subr.bf16.mxu0 0
        %1993 = vmatpush1.bf16.xpose.msra.mxu0 0
        %1994 = vmatprep.subr.bf16.mxu0 0
        %1995 = vmatpush1.bf16.xpose.msra.mxu0 0
        %1996 = vmatprep.mubr.bf16.mxu0 0
        %1997 = vmatmul.mubr.bf16.gmra.mrb[0].mxu0 %v1959
        %v1998 = vpop.f32.mrb[0].mxu0
        %v1999 = vadd.f32 0.0, %v1998
        %v2000 = vpop.f32.mrb[0].mxu0
        %v2001 = vpop.f32.mrb[0].mxu0
        %v2002 = vadd.f32 0.0, %v2001
        %v2003 = vpop.f32.mrb[0].mxu0
        %2004 = vdwg.mxu0
        %v2005 = vsel %vm640, %v1999, -inf
        %2006 = vmax.xlane.f32.xlu0 %v2005
        %v2007 = vpop.xlane.xlu0 %2006
        %v2008 = vsel %vm640, %v2002, -inf
        %2009 = vmax.xlane.f32.xlu0 %v2008
        %v2010 = vpop.xlane.xlu0 %2009
        %v2011 = vsub.f32 %v1999, %v2007
        %v2012 = vsub.f32 %v2002, %v2010
        %v2013 = vmul.f32 %v2011, 1.442695
        %v2014 = vpow.pop %v2013
        %v2015 = vmul.f32 %v2012, 1.442695
        %v2016 = vpow.pop %v2015
        %v2017 = vsel %vm640, %v2014, 0.0
        %2018 = vadd.xlane.f32.xlu0 %v2017
        %v2019 = vpop.xlane.xlu0 %2018
        %v2020 = vsel %vm640, %v2016, 0.0
        %2021 = vadd.xlane.f32.xlu0 %v2020
        %v2022 = vpop.xlane.xlu0 %2021
        %v2023 = vrcp.pop %v2019
        %v2024 = vrcp.pop %v2022
        %v2025 = vmul.f32 %v2014, %v2023
        %v2026 = vmul.f32 %v2016, %v2024
        %v2027 = vpack.c.bf16 %v2026, %v2025
        %2028 = vrot.lane.b32.xlu0 %v1708, 112
        %v2029 = vpop.permute.xlu0 %2028
        %v2031 = vsel %vm640, %v2027, 0
        %v2034 = vsel %vm714, %v2029, 0
        %2036 = vmatprep.subr.bf16.mxu0 0
        %2037 = vmatpush1.bf16.msra.mxu0 %v2034
        %2038 = vmatprep.subr.bf16.mxu0 0
        %2039 = vmatpush1.bf16.msra.mxu0 0
        %2040 = vmatprep.subr.bf16.mxu0 0
        %2041 = vmatpush1.bf16.msra.mxu0 0
        %2042 = vmatprep.subr.bf16.mxu0 0
        %2043 = vmatpush1.bf16.msra.mxu0 0
        %2044 = vmatprep.subr.bf16.mxu0 0
        %2045 = vmatpush1.bf16.msra.mxu0 0
        %2046 = vmatprep.subr.bf16.mxu0 0
        %2047 = vmatpush1.bf16.msra.mxu0 0
        %2048 = vmatprep.subr.bf16.mxu0 0
        %2049 = vmatpush1.bf16.msra.mxu0 0
        %2050 = vmatprep.subr.bf16.mxu0 0
        %2051 = vmatpush1.bf16.msra.mxu0 0
        %2052 = vmatprep.subr.bf16.mxu0 0
        %2053 = vmatpush1.bf16.msra.mxu0 0
        %2054 = vmatprep.subr.bf16.mxu0 0
        %2055 = vmatpush1.bf16.msra.mxu0 0
        %2056 = vmatprep.subr.bf16.mxu0 0
        %2057 = vmatpush1.bf16.msra.mxu0 0
        %2058 = vmatprep.subr.bf16.mxu0 0
        %2059 = vmatpush1.bf16.msra.mxu0 0
        %2060 = vmatprep.subr.bf16.mxu0 0
        %2061 = vmatpush1.bf16.msra.mxu0 0
        %2062 = vmatprep.subr.bf16.mxu0 0
        %2063 = vmatpush1.bf16.msra.mxu0 0
        %2064 = vmatprep.subr.bf16.mxu0 0
        %2065 = vmatpush1.bf16.msra.mxu0 0
        %2066 = vmatprep.subr.bf16.mxu0 0
        %2067 = vmatpush1.bf16.msra.mxu0 0
        %2068 = vmatprep.mubr.bf16.mxu0 0
        %2069 = vmatmul.mubr.bf16.gmra.mrb[0].mxu0 %v2031
        %v2070 = vpop.f32.mrb[0].mxu0
        %v2071 = vadd.f32 0.0, %v2070
        %v2072 = vpop.f32.mrb[0].mxu0
        %v2073 = vpop.f32.mrb[0].mxu0
        %v2074 = vadd.f32 0.0, %v2073
        %v2075 = vpop.f32.mrb[0].mxu0
        %2076 = vdwg.mxu0
        %v2077 = vpack.c.bf16 %v2074, %v2071
        %2078 = vrot.lane.b32.xlu0 %v1581, 104
        %v2079 = vpop.permute.xlu0 %2078
        %2080 = vrot.lane.b32.xlu0 %v1646, 104
        %v2081 = vpop.permute.xlu0 %2080
        %v2083 = vsel %vm640, %v2079, 0
        %v2086 = vsel %vm640, %v2081, 0
        %2088 = vmatprep.subr.bf16.mxu0 0
        %2089 = vmatpush1.bf16.xpose.msra.mxu0 %v2086
        %2090 = vmatprep.subr.bf16.mxu0 0
        %2091 = vmatpush1.bf16.xpose.msra.mxu0 0
        %2092 = vmatprep.subr.bf16.mxu0 0
        %2093 = vmatpush1.bf16.xpose.msra.mxu0 0
        %2094 = vmatprep.subr.bf16.mxu0 0
        %2095 = vmatpush1.bf16.xpose.msra.mxu0 0
        %2096 = vmatprep.subr.bf16.mxu0 0
        %2097 = vmatpush1.bf16.xpose.msra.mxu0 0
        %2098 = vmatprep.subr.bf16.mxu0 0
        %2099 = vmatpush1.bf16.xpose.msra.mxu0 0
        %2100 = vmatprep.subr.bf16.mxu0 0
        %2101 = vmatpush1.bf16.xpose.msra.mxu0 0
        %2102 = vmatprep.subr.bf16.mxu0 0
        %2103 = vmatpush1.bf16.xpose.msra.mxu0 0
        %2104 = vmatprep.subr.bf16.mxu0 0
        %2105 = vmatpush1.bf16.xpose.msra.mxu0 0
        %2106 = vmatprep.subr.bf16.mxu0 0
        %2107 = vmatpush1.bf16.xpose.msra.mxu0 0
        %2108 = vmatprep.subr.bf16.mxu0 0
        %2109 = vmatpush1.bf16.xpose.msra.mxu0 0
        %2110 = vmatprep.subr.bf16.mxu0 0
        %2111 = vmatpush1.bf16.xpose.msra.mxu0 0
        %2112 = vmatprep.subr.bf16.mxu0 0
        %2113 = vmatpush1.bf16.xpose.msra.mxu0 0
        %2114 = vmatprep.subr.bf16.mxu0 0
        %2115 = vmatpush1.bf16.xpose.msra.mxu0 0
        %2116 = vmatprep.subr.bf16.mxu0 0
        %2117 = vmatpush1.bf16.xpose.msra.mxu0 0
        %2118 = vmatprep.subr.bf16.mxu0 0
        %2119 = vmatpush1.bf16.xpose.msra.mxu0 0
        %2120 = vmatprep.mubr.bf16.mxu0 0
        %2121 = vmatmul.mubr.bf16.gmra.mrb[0].mxu0 %v2083
        %v2122 = vpop.f32.mrb[0].mxu0
        %v2123 = vadd.f32 0.0, %v2122
        %v2124 = vpop.f32.mrb[0].mxu0
        %v2125 = vpop.f32.mrb[0].mxu0
        %v2126 = vadd.f32 0.0, %v2125
        %v2127 = vpop.f32.mrb[0].mxu0
        %2128 = vdwg.mxu0
        %v2129 = vsel %vm640, %v2123, -inf
        %2130 = vmax.xlane.f32.xlu0 %v2129
        %v2131 = vpop.xlane.xlu0 %2130
        %v2132 = vsel %vm640, %v2126, -inf
        %2133 = vmax.xlane.f32.xlu0 %v2132
        %v2134 = vpop.xlane.xlu0 %2133
        %v2135 = vsub.f32 %v2123, %v2131
        %v2136 = vsub.f32 %v2126, %v2134
        %v2137 = vmul.f32 %v2135, 1.442695
        %v2138 = vpow.pop %v2137
        %v2139 = vmul.f32 %v2136, 1.442695
        %v2140 = vpow.pop %v2139
        %v2141 = vsel %vm640, %v2138, 0.0
        %2142 = vadd.xlane.f32.xlu0 %v2141
        %v2143 = vpop.xlane.xlu0 %2142
        %v2144 = vsel %vm640, %v2140, 0.0
        %2145 = vadd.xlane.f32.xlu0 %v2144
        %v2146 = vpop.xlane.xlu0 %2145
        %v2147 = vrcp.pop %v2143
        %v2148 = vrcp.pop %v2146
        %v2149 = vmul.f32 %v2138, %v2147
        %v2150 = vmul.f32 %v2140, %v2148
        %v2151 = vpack.c.bf16 %v2150, %v2149
        %2152 = vrot.lane.b32.xlu0 %v1708, 104
        %v2153 = vpop.permute.xlu0 %2152
        %v2155 = vsel %vm640, %v2151, 0
        %v2158 = vsel %vm714, %v2153, 0
        %2160 = vmatprep.subr.bf16.mxu0 0
        %2161 = vmatpush1.bf16.msra.mxu0 %v2158
        %2162 = vmatprep.subr.bf16.mxu0 0
        %2163 = vmatpush1.bf16.msra.mxu0 0
        %2164 = vmatprep.subr.bf16.mxu0 0
        %2165 = vmatpush1.bf16.msra.mxu0 0
        %2166 = vmatprep.subr.bf16.mxu0 0
        %2167 = vmatpush1.bf16.msra.mxu0 0
        %2168 = vmatprep.subr.bf16.mxu0 0
        %2169 = vmatpush1.bf16.msra.mxu0 0
        %2170 = vmatprep.subr.bf16.mxu0 0
        %2171 = vmatpush1.bf16.msra.mxu0 0
        %2172 = vmatprep.subr.bf16.mxu0 0
        %2173 = vmatpush1.bf16.msra.mxu0 0
        %2174 = vmatprep.subr.bf16.mxu0 0
        %2175 = vmatpush1.bf16.msra.mxu0 0
        %2176 = vmatprep.subr.bf16.mxu0 0
        %2177 = vmatpush1.bf16.msra.mxu0 0
        %2178 = vmatprep.subr.bf16.mxu0 0
        %2179 = vmatpush1.bf16.msra.mxu0 0
        %2180 = vmatprep.subr.bf16.mxu0 0
        %2181 = vmatpush1.bf16.msra.mxu0 0
        %2182 = vmatprep.subr.bf16.mxu0 0
        %2183 = vmatpush1.bf16.msra.mxu0 0
        %2184 = vmatprep.subr.bf16.mxu0 0
        %2185 = vmatpush1.bf16.msra.mxu0 0
        %2186 = vmatprep.subr.bf16.mxu0 0
        %2187 = vmatpush1.bf16.msra.mxu0 0
        %2188 = vmatprep.subr.bf16.mxu0 0
        %2189 = vmatpush1.bf16.msra.mxu0 0
        %2190 = vmatprep.subr.bf16.mxu0 0
        %2191 = vmatpush1.bf16.msra.mxu0 0
        %2192 = vmatprep.mubr.bf16.mxu0 0
        %2193 = vmatmul.mubr.bf16.gmra.mrb[0].mxu0 %v2155
        %v2194 = vpop.f32.mrb[0].mxu0
        %v2195 = vadd.f32 0.0, %v2194
        %v2196 = vpop.f32.mrb[0].mxu0
        %v2197 = vpop.f32.mrb[0].mxu0
        %v2198 = vadd.f32 0.0, %v2197
        %v2199 = vpop.f32.mrb[0].mxu0
        %2200 = vdwg.mxu0
        %v2201 = vpack.c.bf16 %v2198, %v2195
        %2203 = vrot.lane.b32.xlu0 %v1953, 8
        %v2204 = vpop.permute.xlu0 %2203
        %2206 = vrot.lane.b32.xlu0 %v2077, 16
        %v2207 = vpop.permute.xlu0 %2206
        %2209 = vrot.lane.b32.xlu0 %v2201, 24
        %v2210 = vpop.permute.xlu0 %2209
        %v2213 = vsel %vm640, %v1826, %v2204
        %v2215 = vsel %vm1147, %v2213, %v2207
        %v2217 = vsel %vm1150, %v2215, %v2210
        %s2218 = scalar_lea.vmem %s2, 112
        %v2219 = vld [vmem:[%s2218] sm:$0xf]
        %v2220 = vld [vmem:[%s2218 + $0x4] sm:$0xf]
        %v2221 = vld [vmem:[%s2218 + $0x8] sm:$0xf]
        %v2222 = vld [vmem:[%s2218 + $0xc] sm:$0xf]
        %v2227 = vunpack.c.l.b16 %v2219
        %v2228 = vunpack.c.l.b16 %v2220
        %v2229 = vunpack.c.l.b16 %v2221
        %v2230 = vunpack.c.l.b16 %v2222
        %v2231 = vpack.c.b16 %v2228, %v2227
        %v2232 = vpack.c.b16 %v2230, %v2229
        %v2235 = vsel %vm383, %v2217, 0
        %2237 = vmatprep.subr.bf16.mxu0 0
        %2238 = vmatpush1.bf16.msra.mxu0 %v2231
        %2239 = vmatprep.subr.bf16.mxu0 0
        %2240 = vmatpush1.bf16.msra.mxu0 %v2232
        %2241 = vmatprep.subr.bf16.mxu0 0
        %2242 = vmatpush1.bf16.msra.mxu0 0
        %2243 = vmatprep.subr.bf16.mxu0 0
        %2244 = vmatpush1.bf16.msra.mxu0 0
        %2245 = vmatprep.subr.bf16.mxu0 0
        %2246 = vmatpush1.bf16.msra.mxu0 0
        %2247 = vmatprep.subr.bf16.mxu0 0
        %2248 = vmatpush1.bf16.msra.mxu0 0
        %2249 = vmatprep.subr.bf16.mxu0 0
        %2250 = vmatpush1.bf16.msra.mxu0 0
        %2251 = vmatprep.subr.bf16.mxu0 0
        %2252 = vmatpush1.bf16.msra.mxu0 0
        %2253 = vmatprep.subr.bf16.mxu0 0
        %2254 = vmatpush1.bf16.msra.mxu0 0
        %2255 = vmatprep.subr.bf16.mxu0 0
        %2256 = vmatpush1.bf16.msra.mxu0 0
        %2257 = vmatprep.subr.bf16.mxu0 0
        %2258 = vmatpush1.bf16.msra.mxu0 0
        %2259 = vmatprep.subr.bf16.mxu0 0
        %2260 = vmatpush1.bf16.msra.mxu0 0
        %2261 = vmatprep.subr.bf16.mxu0 0
        %2262 = vmatpush1.bf16.msra.mxu0 0
        %2263 = vmatprep.subr.bf16.mxu0 0
        %2264 = vmatpush1.bf16.msra.mxu0 0
        %2265 = vmatprep.subr.bf16.mxu0 0
        %2266 = vmatpush1.bf16.msra.mxu0 0
        %2267 = vmatprep.subr.bf16.mxu0 0
        %2268 = vmatpush1.bf16.msra.mxu0 0
        %2269 = vmatprep.mubr.bf16.mxu0 0
        %2270 = vmatmul.mubr.bf16.gmra.mrb[0].mxu0 %v2235
        %v2271 = vpop.f32.mrb[0].mxu0
        %v2272 = vadd.f32 0.0, %v2271
        %v2273 = vpop.f32.mrb[0].mxu0
        %v2274 = vpop.f32.mrb[0].mxu0
        %v2275 = vadd.f32 0.0, %v2274
        %v2276 = vpop.f32.mrb[0].mxu0
        %2277 = vdwg.mxu0
        %v2278 = vadd.f32 %v1461, %v2272
        %v2279 = vadd.f32 %v1462, %v2275
        %v2280 = vlaneseq
        %v2281 = vshrl.u32 %v2280, 7
        %v2282 = vsub.s32 7, %v2281
        %v2283 = vrot.slane %v1464, %v2282
        %v2284 = vadd.f32 %v2278, %v2283
        %v2285 = vadd.f32 %v2279, %v2283
        %v2286 = vsel %vm383, %v2284, 0.0
        %2287 = vadd.xlane.f32.xlu0 %v2286
        %v2288 = vpop.xlane.xlu0 %2287
        %v2289 = vsel %vm383, %v2285, 0.0
        %2290 = vadd.xlane.f32.xlu0 %v2289
        %v2291 = vpop.xlane.xlu0 %2290
        %v2292 = vmul.f32 %v2288, %v390
        %v2293 = vmul.f32 %v2291, %v390
        %v2294 = vsub.f32 %v2284, %v2292
        %v2295 = vsub.f32 %v2285, %v2293
        %v2296 = vmul.f32 %v2294, %v2294
        %v2297 = vmul.f32 %v2295, %v2295
        %v2298 = vsel %vm383, %v2296, 0.0
        %2299 = vadd.xlane.f32.xlu0 %v2298
        %v2300 = vpop.xlane.xlu0 %2299
        %v2301 = vsel %vm383, %v2297, 0.0
        %2302 = vadd.xlane.f32.xlu0 %v2301
        %v2303 = vpop.xlane.xlu0 %2302
        %v2304 = vmul.f32 %v2300, %v390
        %v2305 = vmul.f32 %v2303, %v390
        %v2306 = vadd.f32 %v2304, 1e-05
        %v2307 = vadd.f32 %v2305, 1e-05
        %v2308 = vrsqrt.pop %v2306
        %v2309 = vrsqrt.pop %v2307
        %v2310 = vmul.f32 %v2294, %v2308
        %v2311 = vmul.f32 %v2295, %v2309
        %v2312 = vlaneseq
        %v2313 = vshrl.u32 %v2312, 7
        %v2314 = vsub.s32 0, %v2313
        %v2315 = vrot.slane %v1465, %v2314
        %v2316 = vmul.f32 %v2310, %v2315
        %v2317 = vmul.f32 %v2311, %v2315
        %v2318 = vlaneseq
        %v2319 = vshrl.u32 %v2318, 7
        %v2320 = vsub.s32 1, %v2319
        %v2321 = vrot.slane %v1465, %v2320
        %v2322 = vadd.f32 %v2316, %v2321
        %v2323 = vadd.f32 %v2317, %v2321
        %v2324 = vpack.c.bf16 %v2323, %v2322
        %s2325 = scalar_lea.vmem [#allocation7], 16
        %v2326 = vld [vmem:[%s2325] sm:$0xf]
        %v2327 = vld [vmem:[%s2325 + $0x4] sm:$0xf]
        %v2328 = vld [vmem:[%s2325 + $0x8] sm:$0xf]
        %v2329 = vld [vmem:[%s2325 + $0xc] sm:$0xf]
        %s2330 = scalar_lea.vmem %s6, 1
        %v2331 = vld [vmem:[%s2330] sm:$0x1]
        %v2333 = vlaneseq
        %v2334 = vshrl.u32 %v2333, 7
        %v2335 = vsub.s32 0, %v2334
        %v2336 = vrot.slane %v2331, %v2335
        %v2342 = vunpack.c.l.b16 %v2326
        %v2343 = vunpack.c.l.b16 %v2327
        %v2344 = vunpack.c.l.b16 %v2328
        %v2345 = vunpack.c.l.b16 %v2329
        %v2346 = vpack.c.b16 %v2343, %v2342
        %v2347 = vpack.c.b16 %v2345, %v2344
        %v2351 = vsel %vm383, %v2324, 0
        %2353 = vmatprep.subr.bf16.mxu0 0
        %2354 = vmatpush1.bf16.msra.mxu0 %v2346
        %2355 = vmatprep.subr.bf16.mxu0 0
        %2356 = vmatpush1.bf16.msra.mxu0 %v2347
        %2357 = vmatprep.subr.bf16.mxu0 0
        %2358 = vmatpush1.bf16.msra.mxu0 0
        %2359 = vmatprep.subr.bf16.mxu0 0
        %2360 = vmatpush1.bf16.msra.mxu0 0
        %2361 = vmatprep.subr.bf16.mxu0 0
        %2362 = vmatpush1.bf16.msra.mxu0 0
        %2363 = vmatprep.subr.bf16.mxu0 0
        %2364 = vmatpush1.bf16.msra.mxu0 0
        %2365 = vmatprep.subr.bf16.mxu0 0
        %2366 = vmatpush1.bf16.msra.mxu0 0
        %2367 = vmatprep.subr.bf16.mxu0 0
        %2368 = vmatpush1.bf16.msra.mxu0 0
        %2369 = vmatprep.subr.bf16.mxu0 0
        %2370 = vmatpush1.bf16.msra.mxu0 0
        %2371 = vmatprep.subr.bf16.mxu0 0
        %2372 = vmatpush1.bf16.msra.mxu0 0
        %2373 = vmatprep.subr.bf16.mxu0 0
        %2374 = vmatpush1.bf16.msra.mxu0 0
        %2375 = vmatprep.subr.bf16.mxu0 0
        %2376 = vmatpush1.bf16.msra.mxu0 0
        %2377 = vmatprep.subr.bf16.mxu0 0
        %2378 = vmatpush1.bf16.msra.mxu0 0
        %2379 = vmatprep.subr.bf16.mxu0 0
        %2380 = vmatpush1.bf16.msra.mxu0 0
        %2381 = vmatprep.subr.bf16.mxu0 0
        %2382 = vmatpush1.bf16.msra.mxu0 0
        %2383 = vmatprep.subr.bf16.mxu0 0
        %2384 = vmatpush1.bf16.msra.mxu0 0
        %2385 = vmatprep.mubr.bf16.mxu0 0
        %2386 = vmatmul.mubr.bf16.gmra.mrb[0].mxu0 %v2351
        %v2387 = vpop.f32.mrb[0].mxu0
        %v2388 = vadd.f32 %v2336, %v2387
        %v2389 = vpop.f32.mrb[0].mxu0
        %v2390 = vpop.f32.mrb[0].mxu0
        %v2391 = vadd.f32 %v2336, %v2390
        %v2392 = vpop.f32.mrb[0].mxu0
        %2393 = vdwg.mxu0
        %v2394 = vmul.f32 %v2388, 0.5
        %v2395 = vmul.f32 %v2391, 0.5
        %v2396 = vmul.f32 %v2388, 0.70710677
        %v2397 = vmul.f32 %v2391, 0.70710677
        %v2398 = vand.u32 2147483647, %v2396
        %v2399 = vand.u32 2147483647, %v2397
        %v2400 = vmul.f32 %v2398, 0.3275911
        %v2401 = vmul.f32 %v2399, 0.3275911
        %v2402 = vadd.f32 %v2400, 1.0
        %v2403 = vadd.f32 %v2401, 1.0
        %v2404 = vrcp.pop %v2402
        %v2405 = vrcp.pop %v2403
        %v2406 = vmul.f32 %v2404, 1.0614054
        %v2407 = vmul.f32 %v2405, 1.0614054
        %v2408 = vadd.f32 %v2406, -1.4531521
        %v2409 = vadd.f32 %v2407, -1.4531521
        %v2410 = vmul.f32 %v2408, %v2404
        %v2411 = vmul.f32 %v2409, %v2405
        %v2412 = vadd.f32 %v2410, 1.4214138
        %v2413 = vadd.f32 %v2411, 1.4214138
        %v2414 = vmul.f32 %v2412, %v2404
        %v2415 = vmul.f32 %v2413, %v2405
        %v2416 = vadd.f32 %v2414, -0.28449672
        %v2417 = vadd.f32 %v2415, -0.28449672
        %v2418 = vmul.f32 %v2416, %v2404
        %v2419 = vmul.f32 %v2417, %v2405
        %v2420 = vadd.f32 %v2418, 0.2548296
        %v2421 = vadd.f32 %v2419, 0.2548296
        %v2422 = vmul.f32 %v2420, %v2404
        %v2423 = vmul.f32 %v2421, %v2405
        %v2424 = vsub.f32 0.0, %v2398
        %v2425 = vsub.f32 0.0, %v2399
        %v2426 = vmul.f32 %v2424, %v2398
        %v2427 = vmul.f32 %v2425, %v2399
        %v2428 = vmul.f32 %v2426, 1.442695
        %v2429 = vpow.pop %v2428
        %v2430 = vmul.f32 %v2427, 1.442695
        %v2431 = vpow.pop %v2430
        %v2432 = vmul.f32 %v2422, %v2429
        %v2433 = vmul.f32 %v2423, %v2431
        %v2434 = vsub.f32 1.0, %v2432
        %v2435 = vsub.f32 1.0, %v2433
        %vm2436 = vcmp.ge.f32.partialorder %v2396, 0.0
        %vm2437 = vcmp.ge.f32.partialorder %v2397, 0.0
        %v2438 = vsub.f32 0.0, %v2434
        %v2439 = vsub.f32 0.0, %v2435
        %v2440 = vsel %vm2436, %v2434, %v2438
        %v2441 = vsel %vm2437, %v2435, %v2439
        %v2442 = vadd.f32 %v2440, 1.0
        %v2443 = vadd.f32 %v2441, 1.0
        %v2444 = vmul.f32 %v2394, %v2442
        %v2445 = vmul.f32 %v2395, %v2443
        %v2446 = vpack.c.bf16 %v2445, %v2444
        %s2447 = scalar_lea.vmem %s5, 32
        %v2448 = vld [vmem:[%s2447] sm:$0xf]
        %v2449 = vld [vmem:[%s2447 + $0x4] sm:$0xf]
        %v2450 = vld [vmem:[%s2447 + $0x8] sm:$0xf]
        %v2451 = vld [vmem:[%s2447 + $0xc] sm:$0xf]
        %v2452 = vld [vmem:[%s2447 + $0x10] sm:$0xf]
        %v2453 = vld [vmem:[%s2447 + $0x14] sm:$0xf]
        %v2454 = vld [vmem:[%s2447 + $0x18] sm:$0xf]
        %v2455 = vld [vmem:[%s2447 + $0x1c] sm:$0xf]
        %v2456 = vlaneseq
        %v2457 = vshrl.u32 %v2456, 7
        %v2458 = vsub.s32 2, %v2457
        %v2459 = vrot.slane %v1465, %v2458
        %v2468 = vunpack.c.l.b16 %v2448
        %v2469 = vunpack.c.l.b16 %v2449
        %v2470 = vunpack.c.l.b16 %v2450
        %v2471 = vunpack.c.l.b16 %v2451
        %v2472 = vunpack.c.l.b16 %v2452
        %v2473 = vunpack.c.l.b16 %v2453
        %v2474 = vunpack.c.l.b16 %v2454
        %v2475 = vunpack.c.l.b16 %v2455
        %v2476 = vpack.c.b16 %v2469, %v2468
        %v2477 = vpack.c.b16 %v2471, %v2470
        %v2478 = vpack.c.b16 %v2473, %v2472
        %v2479 = vpack.c.b16 %v2475, %v2474
        %v2485 = vsel %vm1416, %v2446, 0
        %2487 = vmatprep.subr.bf16.mxu0 0
        %2488 = vmatpush1.bf16.msra.mxu0 %v2476
        %2489 = vmatprep.subr.bf16.mxu0 0
        %2490 = vmatpush1.bf16.msra.mxu0 %v2477
        %2491 = vmatprep.subr.bf16.mxu0 0
        %2492 = vmatpush1.bf16.msra.mxu0 %v2478
        %2493 = vmatprep.subr.bf16.mxu0 0
        %2494 = vmatpush1.bf16.msra.mxu0 %v2479
        %2495 = vmatprep.subr.bf16.mxu0 0
        %2496 = vmatpush1.bf16.msra.mxu0 0
        %2497 = vmatprep.subr.bf16.mxu0 0
        %2498 = vmatpush1.bf16.msra.mxu0 0
        %2499 = vmatprep.subr.bf16.mxu0 0
        %2500 = vmatpush1.bf16.msra.mxu0 0
        %2501 = vmatprep.subr.bf16.mxu0 0
        %2502 = vmatpush1.bf16.msra.mxu0 0
        %2503 = vmatprep.subr.bf16.mxu0 0
        %2504 = vmatpush1.bf16.msra.mxu0 0
        %2505 = vmatprep.subr.bf16.mxu0 0
        %2506 = vmatpush1.bf16.msra.mxu0 0
        %2507 = vmatprep.subr.bf16.mxu0 0
        %2508 = vmatpush1.bf16.msra.mxu0 0
        %2509 = vmatprep.subr.bf16.mxu0 0
        %2510 = vmatpush1.bf16.msra.mxu0 0
        %2511 = vmatprep.subr.bf16.mxu0 0
        %2512 = vmatpush1.bf16.msra.mxu0 0
        %2513 = vmatprep.subr.bf16.mxu0 0
        %2514 = vmatpush1.bf16.msra.mxu0 0
        %2515 = vmatprep.subr.bf16.mxu0 0
        %2516 = vmatpush1.bf16.msra.mxu0 0
        %2517 = vmatprep.subr.bf16.mxu0 0
        %2518 = vmatpush1.bf16.msra.mxu0 0
        %2519 = vmatprep.mubr.bf16.mxu0 0
        %2520 = vmatmul.mubr.bf16.gmra.mrb[0].mxu0 %v2485
        %v2521 = vpop.f32.mrb[0].mxu0
        %v2522 = vadd.f32 %v2459, %v2521
        %v2523 = vpop.f32.mrb[0].mxu0
        %v2524 = vpop.f32.mrb[0].mxu0
        %v2525 = vadd.f32 %v2459, %v2524
        %v2526 = vpop.f32.mrb[0].mxu0
        %2527 = vdwg.mxu0
        %v2528 = vadd.f32 %v2284, %v2522
        %v2529 = vadd.f32 %v2285, %v2525
        %v2530 = vld [vmem:[%s7] sm:$0x1]
        %v2531 = vld [vmem:[%s7 + $0x1] sm:$0x1]
        %v2532 = vsel %vm383, %v2528, 0.0
        %2533 = vadd.xlane.f32.xlu0 %v2532
        %v2534 = vpop.xlane.xlu0 %2533
        %v2535 = vsel %vm383, %v2529, 0.0
        %2536 = vadd.xlane.f32.xlu0 %v2535
        %v2537 = vpop.xlane.xlu0 %2536
        %v2538 = vmul.f32 %v2534, %v390
        %v2539 = vmul.f32 %v2537, %v390
        %v2540 = vsub.f32 %v2528, %v2538
        %v2541 = vsub.f32 %v2529, %v2539
        %v2542 = vmul.f32 %v2540, %v2540
        %v2543 = vmul.f32 %v2541, %v2541
        %v2544 = vsel %vm383, %v2542, 0.0
        %2545 = vadd.xlane.f32.xlu0 %v2544
        %v2546 = vpop.xlane.xlu0 %2545
        %v2547 = vsel %vm383, %v2543, 0.0
        %2548 = vadd.xlane.f32.xlu0 %v2547
        %v2549 = vpop.xlane.xlu0 %2548
        %v2550 = vmul.f32 %v2546, %v390
        %v2551 = vmul.f32 %v2549, %v390
        %v2552 = vadd.f32 %v2550, 1e-05
        %v2553 = vadd.f32 %v2551, 1e-05
        %v2554 = vrsqrt.pop %v2552
        %v2555 = vrsqrt.pop %v2553
        %v2556 = vmul.f32 %v2540, %v2554
        %v2557 = vmul.f32 %v2541, %v2555
        %v2558 = vlaneseq
        %v2559 = vshrl.u32 %v2558, 7
        %v2560 = vsub.s32 0, %v2559
        %v2561 = vrot.slane %v2530, %v2560
        %v2562 = vmul.f32 %v2556, %v2561
        %v2563 = vmul.f32 %v2557, %v2561
        %v2564 = vlaneseq
        %v2565 = vshrl.u32 %v2564, 7
        %v2566 = vsub.s32 0, %v2565
        %v2567 = vrot.slane %v2531, %v2566
        %v2568 = vadd.f32 %v2562, %v2567
        %v2569 = vadd.f32 %v2563, %v2567
        %2570 = vst.msk [vmem:[%s374] sm:$0xff] %vm383, %v2568
        %2571 = vst.msk [vmem:[%s374 + $0x8] sm:$0xff] %vm383, %v2569
        %s2572 = sand.u32 %s214, 1
        %s2573 = scalar_lea.sflag [#allocation4], %s2572
        %s2574 = sand.u32 %s214, 1
        %s2575 = smul.addr %s2574, 16
        %s2576 = scalar_lea.vmem [#allocation8], %s2575
        // Predicated region
        $region65: #{tpu_custom_call.1} parent=51 // pred_check
          %p2577 = pneg %p224
        $region66: #{tpu_custom_call.1} parent=51 // pred_check_branch
          %2579 = sbr.rel (%p2577) target = $region68
        $region67: #{tpu_custom_call.1} parent=51 // pred_region
          %s2580 = smul.u32 2, %s28
          %s2582 = ssub.s32 256, 256
          %2583 = vsyncadd %s2573, %s2582
          %s2584 = smul.addr %s2580, 128
          %s2585 = scalar_lea.hbm %s8, %s2584
          %s2586 = sshll.u32 %s2576, 4
          %s2587 = int_to_ptr.vmem [resolvable:$true] %s2586
          %2592 = dma.vmem_to_hbm [thread:$0]  %s2587, 256, %s2585, %s2573, 128, 128, 8
        $region68: #{tpu_custom_call.1} parent=51 // pred_fallthru
          _
      $region52: #{tpu_custom_call.1} parent=5 // pred_fallthru
        _
      %p2593 = scmp.le.s32.totalorder 2, %s23
      // Predicated region
      $region69: #{tpu_custom_call.1} parent=5 // pred_check
        %p2594 = pneg %p2593
      $region70: #{tpu_custom_call.1} parent=5 // pred_check_branch
        %2596 = sbr.rel (%p2594) target = $region72
      $region71: #{tpu_custom_call.1} parent=5 // pred_region
        %s2597 = ssub.s32 %s23, 2
        // Predicated region
        $region73: #{tpu_custom_call.1} parent=71 // pred_check
          %p2598 = pneg %p230
        $region74: #{tpu_custom_call.1} parent=71 // pred_check_branch
          %2600 = sbr.rel (%p2598) target = $region76
        $region75: #{tpu_custom_call.1} parent=71 // pred_region
          %s2601 = sand.u32 %s215, 1
          %s2602 = scalar_lea.sflag [#allocation4], %s2601
          %s2603 = sand.u32 %s215, 1
          %s2604 = smul.addr %s2603, 16
          %s2605 = scalar_lea.vmem [#allocation8], %s2604
          %2606 = dma.done %s2602, 256
        $region76: #{tpu_custom_call.1} parent=71 // pred_fallthru
          _
      $region72: #{tpu_custom_call.1} parent=5 // pred_fallthru
        _
    $region6: #{tpu_custom_call.1} parent=1 // loop_footer
      %s27 = sadd.s32 1, %s23
    $region7: #{tpu_custom_call.1} parent=1 // loop_footer_branch
      %22 = sbr.rel target = $region3
    $region8: #{tpu_custom_call.1} parent=1 // loop_exit
      _
    %2607 = vsyncpa [#allocation3], 1
    %s2608 = scalar_lea.sflag [#allocation3], 1
    %2609 = vsyncpa %s2608, 1
    %2610 = vsyncpa [#allocation6], 1
    %s2611 = scalar_lea.sflag [#allocation6], 1
    %2612 = vsyncpa %s2611, 1
    %2613 = vsyncpa [#allocation4], 1
    %s2614 = scalar_lea.sflag [#allocation4], 1
    %2615 = vsyncpa %s2614, 1

</llo_original>
